<compile_context>
chip_gen: v6e
topology: v6e:2x2x1
jax: 0.10.0
libtpu: 0.0.40
codegen_flags: <defaults>
</compile_context>

<pallas_src>
import functools

import jax
import jax.numpy as jnp
from jax.experimental import pallas as pl
from jax.experimental.pallas import tpu as pltpu

F32 = jnp.float32
LOG_SIG_MAX = 2.0
LOG_SIG_MIN = -20.0
_NEG = float(jnp.finfo(jnp.float32).min)   # bf16-unsafe sentinel kept in f32 path


def _round_up(x, m):
    return (x + m - 1) // m * m


# ---------------------------------------------------------------------------
# Encoder kernel: shared per-point MLP + masked online max-pool
# ---------------------------------------------------------------------------
def _pointnet_kernel(pos_ref, cls_ref, w1_ref, b1_ref, w2_ref, b2_ref,
                     out_ref, acc_ref, any_ref):
    """One (B_TILE, N_CHUNK) tile of the point encoder.

    pos:  (B_TILE, N_CHUNK, 3)   positions (zero rows = padding)
    cls:  (N_CHUNK, H)           per-point class bias = onehot @ W1[3:6]
    w1:   (3, H)   b1: (1, H)    position half of layer 1
    w2:   (H, F)   b2: (1, F)
    out:  (B_TILE, F)            masked max over all N chunks
    acc:  (B_TILE, F) scratch    running max (init to -max at first chunk)
    any:  (B_TILE, 1) scratch    "has any valid point" flag
    """
    ni = pl.program_id(1)

    @pl.when(ni == 0)
    def _():
        acc_ref[...] = jnp.full_like(acc_ref, _NEG)
        any_ref[...] = jnp.zeros_like(any_ref)

    pos = pos_ref[...]                                        # (bt, nc, 3)
    bt, nc, _ = pos.shape
    h_dim = w1_ref.shape[1]
    f_dim = w2_ref.shape[1]

    # PyTorch filter: points with pos.sum(dim=1) == 0 are dropped.
    valid = jnp.sum(pos, axis=-1, keepdims=True) != 0.0       # (bt, nc, 1)

    # Layer 1: pos @ W1[:3] + (onehot @ W1[3:] + b1)  -- single 2D matmul.
    h = jnp.dot(pos.reshape(bt * nc, 3), w1_ref[...],
                preferred_element_type=F32)
    h = h.reshape(bt, nc, h_dim) + (cls_ref[...] + b1_ref[...])[None]
    h = jnp.maximum(h, 0.0)

    # Layer 2: 2D matmul with M = bt*nc.
    y = jnp.dot(h.reshape(bt * nc, h_dim), w2_ref[...],
                preferred_element_type=F32) + b2_ref[...]
    y = y.reshape(bt, nc, f_dim)

    # Online masked max-pool.
    y = jnp.where(valid, y, _NEG)
    acc_ref[...] = jnp.maximum(acc_ref[...], jnp.max(y, axis=1))
    any_ref[...] = jnp.maximum(any_ref[...],
                               jnp.max(valid.astype(F32), axis=1))

    @pl.when(ni == pl.num_programs(1) - 1)
    def _():
        # Guard empty point clouds: emit 0 features instead of -3.4e38.
        out_ref[...] = jnp.where(any_ref[...] > 0.0, acc_ref[...], 0.0)


# ---------------------------------------------------------------------------
# Fused policy head: Linear-ReLU-Linear-ReLU -> mean, clamped log_std
# ---------------------------------------------------------------------------
def _policy_head_kernel(enc_ref, w1_ref, b1_ref, w2_ref, b2_ref,
                        wm_ref, bm_ref, ws_ref, bs_ref,
                        mean_ref, log_std_ref):
    h = jnp.dot(enc_ref[...], w1_ref[...], preferred_element_type=F32) + b1_ref[...]
    h = jnp.maximum(h, 0.0)
    h = jnp.dot(h, w2_ref[...], preferred_element_type=F32) + b2_ref[...]
    h = jnp.maximum(h, 0.0)
    mean_ref[...] = jnp.dot(h, wm_ref[...], preferred_element_type=F32) + bm_ref[...]
    log_std = jnp.dot(h, ws_ref[...], preferred_element_type=F32) + bs_ref[...]
    log_std_ref[...] = jnp.clip(log_std, LOG_SIG_MIN, LOG_SIG_MAX)


# ---------------------------------------------------------------------------
# pallas_call wrappers
# ---------------------------------------------------------------------------
def pointnet_encode(pos, cls_bias, enc_p, *, n_chunk=512, b_tile=8):
    """pos: (B, N, 3), cls_bias: (N, H) -> (B, feature_dim)."""
    B, N, _ = pos.shape
    w1_pos = enc_p["w1"][:3]                       # (3, H)
    h_dim = w1_pos.shape[1]
    f_dim = enc_p["w2"].shape[1]

    # Tile sizes: keep (8, 128) layout rules; pad with zero points (the
    # in-kernel pos.sum != 0 mask drops padding automatically).
    b_tile = B if B <= b_tile else b_tile
    b_pad = _round_up(B, b_tile)
    n_chunk = _round_up(min(n_chunk, _round_up(N, 8)), 8)
    n_pad = _round_up(N, n_chunk)
    if b_pad != B or n_pad != N:
        pos = jnp.pad(pos, ((0, b_pad - B), (0, n_pad - N), (0, 0)))
    if n_pad != N:
        cls_bias = jnp.pad(cls_bias, ((0, n_pad - N), (0, 0)))

    grid = (b_pad // b_tile, n_pad // n_chunk)

    cost = pl.CostEstimate(
        flops=2 * b_pad * n_pad * (3 * h_dim + h_dim * f_dim),
        transcendentals=0,
        bytes_accessed=4 * (b_pad * n_pad * 3 + n_pad * h_dim
                            + h_dim * f_dim + b_pad * f_dim),
    )

    enc = pl.pallas_call(
        _pointnet_kernel,
        out_shape=jax.ShapeDtypeStruct((b_pad, f_dim), F32),
        grid_spec=pltpu.PrefetchScalarGridSpec(
            num_scalar_prefetch=0,
            grid=grid,
            in_specs=[
                pl.BlockSpec((b_tile, n_chunk, 3), lambda bi, ni: (bi, ni, 0)),
                pl.BlockSpec((n_chunk, h_dim), lambda bi, ni: (ni, 0)),
                pl.BlockSpec((3, h_dim), lambda bi, ni: (0, 0)),
                pl.BlockSpec((1, h_dim), lambda bi, ni: (0, 0)),
                pl.BlockSpec((h_dim, f_dim), lambda bi, ni: (0, 0)),
                pl.BlockSpec((1, f_dim), lambda bi, ni: (0, 0)),
            ],
            out_specs=pl.BlockSpec((b_tile, f_dim), lambda bi, ni: (bi, 0)),
            scratch_shapes=[pltpu.VMEM((b_tile, f_dim), F32),
                            pltpu.VMEM((b_tile, 1), F32)],
        ),
        compiler_params=pltpu.CompilerParams(
            dimension_semantics=("parallel", "arbitrary"),
            vmem_limit_bytes=32 * 1024 * 1024),
        cost_estimate=cost,
    )(pos, cls_bias, w1_pos, enc_p["b1"], enc_p["w2"], enc_p["b2"])
    return enc[:B]


def policy_head(enc, head_p):
    """enc: (B, feature_dim) -> (mean, log_std), each (B, action_dim)."""
    B = enc.shape[0]
    a_dim = head_p["wm"].shape[1]
    vmem = functools.partial(pl.BlockSpec, memory_space=pltpu.MemorySpace.VMEM)
    return pl.pallas_call(
        _policy_head_kernel,
        out_shape=(jax.ShapeDtypeStruct((B, a_dim), F32),
                   jax.ShapeDtypeStruct((B, a_dim), F32)),
        in_specs=[vmem()] * 9,
        out_specs=(vmem(), vmem()),
    )(enc, head_p["w1"], head_p["b1"], head_p["w2"], head_p["b2"],
      head_p["wm"], head_p["bm"], head_p["ws"], head_p["bs"])


# ---------------------------------------------------------------------------
# Parameters (deterministic, in-script)
# ---------------------------------------------------------------------------
def _xavier_uniform(key, fan_in, fan_out):
    bound = (6.0 / (fan_in + fan_out)) ** 0.5     # weight_init: gain=1, bias=0
    return jax.random.uniform(key, (fan_in, fan_out), F32, -bound, bound)


def init_params(key, *, feature_dim, action_dim, hidden_dim, enc_hidden):
    ks = jax.random.split(key, 6)
    return {
        # TODO(synk): PointNetEncoder source is not provided in the reference;
        # implemented as the canonical PointNet (shared point MLP -> per-batch
        # masked max pool) with deterministic init, not checkpoint-exact.
        "enc": {
            "w1": _xavier_uniform(ks[0], 6, enc_hidden),       # [pos | onehot]
            "b1": jnp.zeros((1, enc_hidden), F32),
            "w2": _xavier_uniform(ks[1], enc_hidden, feature_dim),
            "b2": jnp.zeros((1, feature_dim), F32),
        },
        "head": {
            "w1": _xavier_uniform(ks[2], feature_dim, hidden_dim),
            "b1": jnp.zeros((1, hidden_dim), F32),
            "w2": _xavier_uniform(ks[3], hidden_dim, hidden_dim),
            "b2": jnp.zeros((1, hidden_dim), F32),
            "wm": _xavier_uniform(ks[4], hidden_dim, action_dim),
            "bm": jnp.zeros((1, action_dim), F32),
            "ws": _xavier_uniform(ks[5], hidden_dim, action_dim),
            "bs": jnp.zeros((1, action_dim), F32),
        },
    }


# ---------------------------------------------------------------------------
# Forward (mirrors PointGaussianPolicy.forward -> (mean, log_std))
# ---------------------------------------------------------------------------
def _class_onehot(dough_pts, tool_pts, goal_pts):
    # dough=[0,0,1], tool=[0,1,0], goal=[1,0,0], in point order [obs | goal].
    return jnp.concatenate(
        [jnp.tile(jnp.array([0.0, 0.0, 1.0], F32), (dough_pts, 1)),
         jnp.tile(jnp.array([0.0, 1.0, 0.0], F32), (tool_pts, 1)),
         jnp.tile(jnp.array([1.0, 0.0, 0.0], F32), (goal_pts, 1))], axis=0)


def point_gaussian_policy_forward(params, obs, obs_len, goal, goal_len, *,
                                  dough_pts, tool_pts, goal_pts,
                                  n_chunk=512, b_tile=8):
    """obs: (B, dough+tool, 3), goal: (B, goal, 3) -> (mean, log_std)."""
    # PyTorch uses obs_len/goal_len only to build the scatter batch index;
    # padding points are already zero and get masked in-kernel.
    del obs_len, goal_len
    pos = jnp.concatenate([obs, goal], axis=1)                       # (B, N, 3)

    # Fold the static per-point one-hot class feature into a layer-1 bias:
    # concat([pos, onehot]) @ W1 == pos @ W1[:3] + onehot @ W1[3:].
    onehot = _class_onehot(dough_pts, tool_pts, goal_pts)            # (N, 3)
    cls_bias = jnp.dot(onehot, params["enc"]["w1"][3:],
                       precision=jax.lax.Precision.HIGHEST)          # (N, H)

    enc = pointnet_encode(pos, cls_bias, params["enc"],
                          n_chunk=n_chunk, b_tile=b_tile)            # (B, F)
    mean, log_std = policy_head(enc, params["head"])
    return mean, log_std
    # TODO(synk): sample() (Normal.rsample + tanh log-prob correction) is a
    # host-side sampling path, not part of the deterministic forward kernel.


# ---------------------------------------------------------------------------
# Pure-JAX reference (for correctness check)
# ---------------------------------------------------------------------------
def _reference_forward(params, obs, goal, *, dough_pts, tool_pts, goal_pts):
    hp = jax.lax.Precision.HIGHEST
    B = obs.shape[0]
    pos = jnp.concatenate([obs, goal], axis=1)
    onehot = jnp.broadcast_to(_class_onehot(dough_pts, tool_pts, goal_pts)[None],
                              (B, pos.shape[1], 3))
    feats = jnp.concatenate([pos, onehot], axis=-1)
    e = params["enc"]
    h = jax.nn.relu(jnp.dot(feats, e["w1"], precision=hp) + e["b1"])
    y = jnp.dot(h, e["w2"], precision=hp) + e["b2"]
    valid = jnp.sum(pos, axis=-1, keepdims=True) != 0.0
    y = jnp.where(valid, y, -jnp.inf)
    enc = jnp.max(y, axis=1)
    enc = jnp.where(jnp.any(valid, axis=1), enc, 0.0)
    p = params["head"]
    h = jax.nn.relu(jnp.dot(enc, p["w1"], precision=hp) + p["b1"])
    h = jax.nn.relu(jnp.dot(h, p["w2"], precision=hp) + p["b2"])
    mean = jnp.dot(h, p["wm"], precision=hp) + p["bm"]
    log_std = jnp.clip(jnp.dot(h, p["ws"], precision=hp) + p["bs"],
                       LOG_SIG_MIN, LOG_SIG_MAX)
    return mean, log_std


if __name__ == "__main__":
    # Scaled-down max_pts (module uses dough=1000, tool=200/100, goal=1000).
    DOUGH, TOOL, GOAL = 32, 8, 32
    B, ACTION_DIM = 2, 8
    FEATURE_DIM = 1024                      # fixed by module (args.feature_dim)
    HIDDEN_DIM, ENC_HIDDEN = 256, 64

    root = jax.random.PRNGKey(0)
    k_param, k_obs, k_goal = jax.random.split(root, 3)
    params = init_params(k_param, feature_dim=FEATURE_DIM, action_dim=ACTION_DIM,
                         hidden_dim=HIDDEN_DIM, enc_hidden=ENC_HIDDEN)

    obs = jax.random.normal(k_obs, (B, DOUGH + TOOL, 3), F32)
    goal = jax.random.normal(k_goal, (B, GOAL, 3), F32)
    obs_len = jnp.array([[30, 8], [25, 6]], jnp.int32)     # (B, 2): dough, tool
    goal_len = jnp.array([[28], [32]], jnp.int32)          # (B, 1)

    # Zero-pad invalid points (matches the `pos.sum(dim=1) != 0` convention).
    dough_valid = jnp.arange(DOUGH)[None, :] < obs_len[:, 0:1]
    tool_valid = jnp.arange(TOOL)[None, :] < obs_len[:, 1:2]
    goal_valid = jnp.arange(GOAL)[None, :] < goal_len[:, 0:1]
    obs = obs * jnp.concatenate([dough_valid, tool_valid], axis=1)[..., None]
    goal = goal * goal_valid[..., None]

    fwd = jax.jit(functools.partial(
        point_gaussian_policy_forward,
        dough_pts=DOUGH, tool_pts=TOOL, goal_pts=GOAL,
        n_chunk=32, b_tile=8))              # small chunks to exercise the grid
    mean, log_std = jax.block_until_ready(fwd(params, obs, obs_len, goal, goal_len))

    assert mean.shape == (B, ACTION_DIM) and log_std.shape == (B, ACTION_DIM)
    assert bool(jnp.all(jnp.isfinite(mean))) and bool(jnp.all(jnp.isfinite(log_std)))

    ref_mean, ref_log_std = _reference_forward(
        params, obs, goal, dough_pts=DOUGH, tool_pts=TOOL, goal_pts=GOAL)
    assert bool(jnp.allclose(mean, ref_mean, atol=2e-2, rtol=2e-2))
    assert bool(jnp.allclose(log_std, ref_log_std, atol=2e-2, rtol=2e-2))
    print("KERNEL_OK")
</pallas_src>

<mosaic_0001>
module attributes {stable_mosaic.version = 11 : i64} {
  func.func @_pointnet_kernel(%arg0: i32, %arg1: i32, %arg2: memref<2x32x3xf32, #tpu.memory_space<vmem>>, %arg3: memref<32x64xf32, #tpu.memory_space<vmem>>, %arg4: memref<3x64xf32, #tpu.memory_space<vmem>>, %arg5: memref<1x64xf32, #tpu.memory_space<vmem>>, %arg6: memref<64x1024xf32, #tpu.memory_space<vmem>>, %arg7: memref<1x1024xf32, #tpu.memory_space<vmem>>, %arg8: memref<2x1024xf32, #tpu.memory_space<vmem>>, %arg9: memref<2x1024xf32, #tpu.memory_space<vmem>>, %arg10: memref<2x1xf32, #tpu.memory_space<vmem>>) attributes {dimension_semantics = [#tpu.dimension_semantics<parallel>, #tpu.dimension_semantics<arbitrary>], iteration_bounds = array<i64: 1, 3>, scalar_prefetch = 0 : i64, scratch_operands = 2 : i64, tpu.core_type = #tpu.core_type<tc>, window_params = [{transform_indices = @transform_0, window_bounds = array<i64: 2, 32, 3>}, {transform_indices = @transform_1, window_bounds = array<i64: 32, 64>}, {pipeline_mode = #tpu.pipeline_mode<synchronous>, transform_indices = @transform_2, window_bounds = array<i64: 3, 64>}, {pipeline_mode = #tpu.pipeline_mode<synchronous>, transform_indices = @transform_3, window_bounds = array<i64: 1, 64>}, {pipeline_mode = #tpu.pipeline_mode<synchronous>, transform_indices = @transform_4, window_bounds = array<i64: 64, 1024>}, {pipeline_mode = #tpu.pipeline_mode<synchronous>, transform_indices = @transform_5, window_bounds = array<i64: 1, 1024>}, {transform_indices = @transform_6, window_bounds = array<i64: 2, 1024>}]} {
    %c0_i32 = arith.constant 0 : i32
    %0 = arith.cmpi eq, %arg1, %c0_i32 : i32
    %1 = arith.extui %0 : i1 to i32
    %c0_i32_0 = arith.constant 0 : i32
    %2 = arith.cmpi ne, %1, %c0_i32_0 : i32
    scf.if %2 {
      %cst_29 = arith.constant -3.40282347E+38 : f32
      %45 = vector.broadcast %cst_29 : f32 to vector<2x1024xf32>
      %c0_30 = arith.constant 0 : index
      %c0_31 = arith.constant 0 : index
      %46 = vector.load %arg9[%c0_30, %c0_31] : memref<2x1024xf32, #tpu.memory_space<vmem>>, vector<2x1024xf32>
      tpu.vector_store %arg9[%c0_30, %c0_31], %45 {strides = array<i32>} : memref<2x1024xf32, #tpu.memory_space<vmem>>, vector<2x1024xf32>,
      %cst_32 = arith.constant 0.000000e+00 : f32
      %47 = vector.broadcast %cst_32 : f32 to vector<2x1xf32>
      %c0_33 = arith.constant 0 : index
      %c0_34 = arith.constant 0 : index
      %48 = vector.load %arg10[%c0_33, %c0_34] : memref<2x1xf32, #tpu.memory_space<vmem>>, vector<2x1xf32>
      tpu.vector_store %arg10[%c0_33, %c0_34], %47 {strides = array<i32>} : memref<2x1xf32, #tpu.memory_space<vmem>>, vector<2x1xf32>,
    } else {
    }
    %c0 = arith.constant 0 : index
    %c0_1 = arith.constant 0 : index
    %c0_2 = arith.constant 0 : index
    %3 = vector.load %arg2[%c0, %c0_1, %c0_2] : memref<2x32x3xf32, #tpu.memory_space<vmem>>, vector<2x32x3xf32>
    %cst = arith.constant dense<0.000000e+00> : vector<2x32xf32>
    %4 = vector.multi_reduction <add>, %3, %cst [2] : vector<2x32x3xf32> to vector<2x32xf32>
    %5 = vector.shape_cast %4 : vector<2x32xf32> to vector<2x32x1xf32>
    %cst_3 = arith.constant 0.000000e+00 : f32
    %6 = vector.broadcast %cst_3 : f32 to vector<2x32x1xf32>
    %7 = arith.cmpf one, %5, %6 : vector<2x32x1xf32>
    %8 = vector.shape_cast %3 : vector<2x32x3xf32> to vector<64x3xf32>
    %c0_4 = arith.constant 0 : index
    %c0_5 = arith.constant 0 : index
    %9 = vector.load %arg4[%c0_4, %c0_5] : memref<3x64xf32, #tpu.memory_space<vmem>>, vector<3x64xf32>
    %cst_6 = arith.constant dense<0.000000e+00> : vector<64x64xf32>
    %10 = tpu.matmul %8, %9, %cst_6 {dimension_numbers = #tpu.dot_dimension_numbers<[1], [0], [0], [1], [0, 0, 1, 1], [], []>} : vector<64x3xf32>, vector<3x64xf32>, vector<64x64xf32> -> vector<64x64xf32>
    %11 = vector.shape_cast %10 : vector<64x64xf32> to vector<2x32x64xf32>
    %c0_7 = arith.constant 0 : index
    %c0_8 = arith.constant 0 : index
    %12 = vector.load %arg3[%c0_7, %c0_8] : memref<32x64xf32, #tpu.memory_space<vmem>>, vector<32x64xf32>
    %c0_9 = arith.constant 0 : index
    %c0_10 = arith.constant 0 : index
    %13 = vector.load %arg5[%c0_9, %c0_10] : memref<1x64xf32, #tpu.memory_space<vmem>>, vector<1x64xf32>
    %14 = vector.broadcast %13 : vector<1x64xf32> to vector<32x64xf32>
    %15 = arith.addf %12, %14 : vector<32x64xf32>
    %16 = vector.shape_cast %15 : vector<32x64xf32> to vector<1x32x64xf32>
    %17 = vector.broadcast %16 : vector<1x32x64xf32> to vector<2x32x64xf32>
    %18 = arith.addf %11, %17 : vector<2x32x64xf32>
    %cst_11 = arith.constant 0.000000e+00 : f32
    %19 = vector.broadcast %cst_11 : f32 to vector<2x32x64xf32>
    %20 = arith.maximumf %18, %19 : vector<2x32x64xf32>
    %21 = vector.shape_cast %20 : vector<2x32x64xf32> to vector<64x64xf32>
    %c0_12 = arith.constant 0 : index
    %c0_13 = arith.constant 0 : index
    %22 = vector.load %arg6[%c0_12, %c0_13] : memref<64x1024xf32, #tpu.memory_space<vmem>>, vector<64x1024xf32>
    %cst_14 = arith.constant dense<0.000000e+00> : vector<64x1024xf32>
    %23 = tpu.matmul %21, %22, %cst_14 {dimension_numbers = #tpu.dot_dimension_numbers<[1], [0], [0], [1], [0, 0, 1, 1], [], []>} : vector<64x64xf32>, vector<64x1024xf32>, vector<64x1024xf32> -> vector<64x1024xf32>
    %c0_15 = arith.constant 0 : index
    %c0_16 = arith.constant 0 : index
    %24 = vector.load %arg7[%c0_15, %c0_16] : memref<1x1024xf32, #tpu.memory_space<vmem>>, vector<1x1024xf32>
    %25 = vector.broadcast %24 : vector<1x1024xf32> to vector<64x1024xf32>
    %26 = arith.addf %23, %25 : vector<64x1024xf32>
    %27 = vector.shape_cast %26 : vector<64x1024xf32> to vector<2x32x1024xf32>
    %cst_17 = arith.constant -3.40282347E+38 : f32
    %28 = vector.shape_cast %7 : vector<2x32x1xi1> to vector<2x32x1xi1>
    %29 = vector.broadcast %28 : vector<2x32x1xi1> to vector<2x32x1024xi1>
    %30 = vector.broadcast %cst_17 : f32 to vector<2x32x1024xf32>
    %31 = arith.select %29, %27, %30 : vector<2x32x1024xi1>, vector<2x32x1024xf32>
    %c0_18 = arith.constant 0 : index
    %c0_19 = arith.constant 0 : index
    %32 = vector.load %arg9[%c0_18, %c0_19] : memref<2x1024xf32, #tpu.memory_space<vmem>>, vector<2x1024xf32>
    %cst_20 = arith.constant dense<0xFF800000> : vector<2x1024xf32>
    %33 = vector.multi_reduction <maximumf>, %31, %cst_20 [1] : vector<2x32x1024xf32> to vector<2x1024xf32>
    %34 = arith.maximumf %32, %33 : vector<2x1024xf32>
    %c0_21 = arith.constant 0 : index
    %c0_22 = arith.constant 0 : index
    %35 = vector.load %arg9[%c0_21, %c0_22] : memref<2x1024xf32, #tpu.memory_space<vmem>>, vector<2x1024xf32>
    tpu.vector_store %arg9[%c0_21, %c0_22], %34 {strides = array<i32>} : memref<2x1024xf32, #tpu.memory_space<vmem>>, vector<2x1024xf32>,
    %c0_23 = arith.constant 0 : index
    %c0_24 = arith.constant 0 : index
    %36 = vector.load %arg10[%c0_23, %c0_24] : memref<2x1xf32, #tpu.memory_space<vmem>>, vector<2x1xf32>
    %37 = arith.extui %7 : vector<2x32x1xi1> to vector<2x32x1xi32>
    %38 = arith.sitofp %37 : vector<2x32x1xi32> to vector<2x32x1xf32>
    %cst_25 = arith.constant dense<0xFF800000> : vector<2x1xf32>
    %39 = vector.multi_reduction <maximumf>, %38, %cst_25 [1] : vector<2x32x1xf32> to vector<2x1xf32>
    %40 = arith.maximumf %36, %39 : vector<2x1xf32>
    %c0_26 = arith.constant 0 : index
    %c0_27 = arith.constant 0 : index
    %41 = vector.load %arg10[%c0_26, %c0_27] : memref<2x1xf32, #tpu.memory_space<vmem>>, vector<2x1xf32>
    tpu.vector_store %arg10[%c0_26, %c0_27], %40 {strides = array<i32>} : memref<2x1xf32, #tpu.memory_space<vmem>>, vector<2x1xf32>,
    %c2_i32 = arith.constant 2 : i32
    %42 = arith.cmpi eq, %arg1, %c2_i32 : i32
    %43 = arith.extui %42 : i1 to i32
    %c0_i32_28 = arith.constant 0 : i32
    %44 = arith.cmpi ne, %43, %c0_i32_28 : i32
    scf.if %44 {
      %c0_29 = arith.constant 0 : index
      %c0_30 = arith.constant 0 : index
      %45 = vector.load %arg10[%c0_29, %c0_30] : memref<2x1xf32, #tpu.memory_space<vmem>>, vector<2x1xf32>
      %cst_31 = arith.constant 0.000000e+00 : f32
      %46 = vector.broadcast %cst_31 : f32 to vector<2x1xf32>
      %47 = arith.cmpf ogt, %45, %46 : vector<2x1xf32>
      %c0_32 = arith.constant 0 : index
      %c0_33 = arith.constant 0 : index
      %48 = vector.load %arg9[%c0_32, %c0_33] : memref<2x1024xf32, #tpu.memory_space<vmem>>, vector<2x1024xf32>
      %cst_34 = arith.constant 0.000000e+00 : f32
      %49 = vector.shape_cast %47 : vector<2x1xi1> to vector<2x1xi1>
      %50 = vector.broadcast %49 : vector<2x1xi1> to vector<2x1024xi1>
      %51 = vector.broadcast %cst_34 : f32 to vector<2x1024xf32>
      %52 = arith.select %50, %48, %51 : vector<2x1024xi1>, vector<2x1024xf32>
      %c0_35 = arith.constant 0 : index
      %c0_36 = arith.constant 0 : index
      %53 = vector.load %arg8[%c0_35, %c0_36] : memref<2x1024xf32, #tpu.memory_space<vmem>>, vector<2x1024xf32>
      tpu.vector_store %arg8[%c0_35, %c0_36], %52 {strides = array<i32>} : memref<2x1024xf32, #tpu.memory_space<vmem>>, vector<2x1024xf32>,
    } else {
    }
    return
  }
  func.func @transform_0(%arg0: i32, %arg1: i32) -> (i32, i32, i32) {
    %c0_i32 = arith.constant 0 : i32
    %c0_i32_0 = arith.constant 0 : i32
    return %arg0, %arg1, %c0_i32 : i32, i32, i32
  }
  func.func @transform_1(%arg0: i32, %arg1: i32) -> (i32, i32) {
    %c0_i32 = arith.constant 0 : i32
    %c0_i32_0 = arith.constant 0 : i32
    return %arg1, %c0_i32 : i32, i32
  }
  func.func @transform_2(%arg0: i32, %arg1: i32) -> (i32, i32) {
    %c0_i32 = arith.constant 0 : i32
    %c0_i32_0 = arith.constant 0 : i32
    %c0_i32_1 = arith.constant 0 : i32
    return %c0_i32, %c0_i32_0 : i32, i32
  }
  func.func @transform_3(%arg0: i32, %arg1: i32) -> (i32, i32) {
    %c0_i32 = arith.constant 0 : i32
    %c0_i32_0 = arith.constant 0 : i32
    %c0_i32_1 = arith.constant 0 : i32
    return %c0_i32, %c0_i32_0 : i32, i32
  }
  func.func @transform_4(%arg0: i32, %arg1: i32) -> (i32, i32) {
    %c0_i32 = arith.constant 0 : i32
    %c0_i32_0 = arith.constant 0 : i32
    %c0_i32_1 = arith.constant 0 : i32
    return %c0_i32, %c0_i32_0 : i32, i32
  }
  func.func @transform_5(%arg0: i32, %arg1: i32) -> (i32, i32) {
    %c0_i32 = arith.constant 0 : i32
    %c0_i32_0 = arith.constant 0 : i32
    %c0_i32_1 = arith.constant 0 : i32
    return %c0_i32, %c0_i32_0 : i32, i32
  }
  func.func @transform_6(%arg0: i32, %arg1: i32) -> (i32, i32) {
    %c0_i32 = arith.constant 0 : i32
    %c0_i32_0 = arith.constant 0 : i32
    return %arg0, %c0_i32 : i32, i32
  }
}

module attributes {stable_mosaic.version = 11 : i64} {
  func.func @_policy_head_kernel(%arg0: memref<2x1024xf32, #tpu.memory_space<vmem>>, %arg1: memref<1024x256xf32, #tpu.memory_space<vmem>>, %arg2: memref<1x256xf32, #tpu.memory_space<vmem>>, %arg3: memref<256x256xf32, #tpu.memory_space<vmem>>, %arg4: memref<1x256xf32, #tpu.memory_space<vmem>>, %arg5: memref<256x8xf32, #tpu.memory_space<vmem>>, %arg6: memref<1x8xf32, #tpu.memory_space<vmem>>, %arg7: memref<256x8xf32, #tpu.memory_space<vmem>>, %arg8: memref<1x8xf32, #tpu.memory_space<vmem>>, %arg9: memref<2x8xf32, #tpu.memory_space<vmem>>, %arg10: memref<2x8xf32, #tpu.memory_space<vmem>>) attributes {dimension_semantics = [], scalar_prefetch = 0 : i64, scratch_operands = 0 : i64, tpu.core_type = #tpu.core_type<tc>} {
    %c0 = arith.constant 0 : index
    %c0_0 = arith.constant 0 : index
    %0 = vector.load %arg0[%c0, %c0_0] : memref<2x1024xf32, #tpu.memory_space<vmem>>, vector<2x1024xf32>
    %c0_1 = arith.constant 0 : index
    %c0_2 = arith.constant 0 : index
    %1 = vector.load %arg1[%c0_1, %c0_2] : memref<1024x256xf32, #tpu.memory_space<vmem>>, vector<1024x256xf32>
    %cst = arith.constant dense<0.000000e+00> : vector<2x256xf32>
    %2 = tpu.matmul %0, %1, %cst {dimension_numbers = #tpu.dot_dimension_numbers<[1], [0], [0], [1], [0, 0, 1, 1], [], []>} : vector<2x1024xf32>, vector<1024x256xf32>, vector<2x256xf32> -> vector<2x256xf32>
    %c0_3 = arith.constant 0 : index
    %c0_4 = arith.constant 0 : index
    %3 = vector.load %arg2[%c0_3, %c0_4] : memref<1x256xf32, #tpu.memory_space<vmem>>, vector<1x256xf32>
    %4 = vector.broadcast %3 : vector<1x256xf32> to vector<2x256xf32>
    %5 = arith.addf %2, %4 : vector<2x256xf32>
    %cst_5 = arith.constant 0.000000e+00 : f32
    %6 = vector.broadcast %cst_5 : f32 to vector<2x256xf32>
    %7 = arith.maximumf %5, %6 : vector<2x256xf32>
    %c0_6 = arith.constant 0 : index
    %c0_7 = arith.constant 0 : index
    %8 = vector.load %arg3[%c0_6, %c0_7] : memref<256x256xf32, #tpu.memory_space<vmem>>, vector<256x256xf32>
    %cst_8 = arith.constant dense<0.000000e+00> : vector<2x256xf32>
    %9 = tpu.matmul %7, %8, %cst_8 {dimension_numbers = #tpu.dot_dimension_numbers<[1], [0], [0], [1], [0, 0, 1, 1], [], []>} : vector<2x256xf32>, vector<256x256xf32>, vector<2x256xf32> -> vector<2x256xf32>
    %c0_9 = arith.constant 0 : index
    %c0_10 = arith.constant 0 : index
    %10 = vector.load %arg4[%c0_9, %c0_10] : memref<1x256xf32, #tpu.memory_space<vmem>>, vector<1x256xf32>
    %11 = vector.broadcast %10 : vector<1x256xf32> to vector<2x256xf32>
    %12 = arith.addf %9, %11 : vector<2x256xf32>
    %cst_11 = arith.constant 0.000000e+00 : f32
    %13 = vector.broadcast %cst_11 : f32 to vector<2x256xf32>
    %14 = arith.maximumf %12, %13 : vector<2x256xf32>
    %c0_12 = arith.constant 0 : index
    %c0_13 = arith.constant 0 : index
    %15 = vector.load %arg5[%c0_12, %c0_13] : memref<256x8xf32, #tpu.memory_space<vmem>>, vector<256x8xf32>
    %cst_14 = arith.constant dense<0.000000e+00> : vector<2x8xf32>
    %16 = tpu.matmul %14, %15, %cst_14 {dimension_numbers = #tpu.dot_dimension_numbers<[1], [0], [0], [1], [0, 0, 1, 1], [], []>} : vector<2x256xf32>, vector<256x8xf32>, vector<2x8xf32> -> vector<2x8xf32>
    %c0_15 = arith.constant 0 : index
    %c0_16 = arith.constant 0 : index
    %17 = vector.load %arg6[%c0_15, %c0_16] : memref<1x8xf32, #tpu.memory_space<vmem>>, vector<1x8xf32>
    %18 = vector.broadcast %17 : vector<1x8xf32> to vector<2x8xf32>
    %19 = arith.addf %16, %18 : vector<2x8xf32>
    %c0_17 = arith.constant 0 : index
    %c0_18 = arith.constant 0 : index
    %20 = vector.load %arg9[%c0_17, %c0_18] : memref<2x8xf32, #tpu.memory_space<vmem>>, vector<2x8xf32>
    tpu.vector_store %arg9[%c0_17, %c0_18], %19 {strides = array<i32>} : memref<2x8xf32, #tpu.memory_space<vmem>>, vector<2x8xf32>,
    %c0_19 = arith.constant 0 : index
    %c0_20 = arith.constant 0 : index
    %21 = vector.load %arg7[%c0_19, %c0_20] : memref<256x8xf32, #tpu.memory_space<vmem>>, vector<256x8xf32>
    %cst_21 = arith.constant dense<0.000000e+00> : vector<2x8xf32>
    %22 = tpu.matmul %14, %21, %cst_21 {dimension_numbers = #tpu.dot_dimension_numbers<[1], [0], [0], [1], [0, 0, 1, 1], [], []>} : vector<2x256xf32>, vector<256x8xf32>, vector<2x8xf32> -> vector<2x8xf32>
    %c0_22 = arith.constant 0 : index
    %c0_23 = arith.constant 0 : index
    %23 = vector.load %arg8[%c0_22, %c0_23] : memref<1x8xf32, #tpu.memory_space<vmem>>, vector<1x8xf32>
    %24 = vector.broadcast %23 : vector<1x8xf32> to vector<2x8xf32>
    %25 = arith.addf %22, %24 : vector<2x8xf32>
    %cst_24 = arith.constant -2.000000e+01 : f32
    %cst_25 = arith.constant 2.000000e+00 : f32
    %26 = vector.broadcast %cst_24 : f32 to vector<2x8xf32>
    %27 = arith.maximumf %26, %25 : vector<2x8xf32>
    %28 = vector.broadcast %cst_25 : f32 to vector<2x8xf32>
    %29 = arith.minimumf %28, %27 : vector<2x8xf32>
    %c0_26 = arith.constant 0 : index
    %c0_27 = arith.constant 0 : index
    %30 = vector.load %arg10[%c0_26, %c0_27] : memref<2x8xf32, #tpu.memory_space<vmem>>, vector<2x8xf32>
    tpu.vector_store %arg10[%c0_26, %c0_27], %29 {strides = array<i32>} : memref<2x8xf32, #tpu.memory_space<vmem>>, vector<2x8xf32>,
    return
  }
}

</mosaic_0001>

<llo_original>
// kernel: point_gaussian_policy_forward.2
$region0: #{point_gaussian_policy_forward.2}
  #allocation0 [shape = 'u32[]', space=smem, size = 0x4, offset = 0x4, fixed_abs, tag = 'smem constant byte address 0x4 - core index']
  #allocation1 [shape = 'u32[144,128]{1,0:T(1,128)}', space=vmem, size = 0x12000, scoped, tag = 'internal scratch']
  #allocation2 [shape = 'f32[2,1024]{1,0:T(2,128)}', space=vmem, size = 0x2000, scoped, tag = 'scratch operand']
  #allocation3 [shape = 'f32[2,1]{1,0:T(2,128)}', space=vmem, size = 0x400, scoped, tag = 'scratch operand']
  %s0 = inlined_call_operand.vmem [shape: f32[2,96,3], index: 0, kind: input, shape index: {}]
  %s1 = inlined_call_operand.vmem [shape: f32[96,64], index: 1, kind: input, shape index: {}]
  %s2 = inlined_call_operand.vmem [shape: f32[3,64], index: 2, kind: input, shape index: {}]
  %s3 = inlined_call_operand.hbm [shape: f32[1,64], index: 3, kind: input, shape index: {}]
  %s4 = inlined_call_operand.hbm [shape: f32[64,1024], index: 4, kind: input, shape index: {}]
  %s5 = inlined_call_operand.hbm [shape: f32[1,1024], index: 5, kind: input, shape index: {}]
  %s6 = inlined_call_operand.vmem [shape: f32[2,1024], index: 6, kind: output, shape index: {}]
  %s7 = sld [smem:[#allocation0]]
  $region115: #{point_gaussian_policy_forward.2} parent=0
    _
  %s9 = ssub.s32 1, %s7
  %s10 = scalar_select 0, %s9, %s7
  $region1: #{point_gaussian_policy_forward.2} parent=0
    #allocation4 [shape = 'u8[65536]{0}', space=vmem, size = 0x10000, scoped, tag = 'input window, operand 0']
    #allocation5 [shape = 'u8[512]{0}', space=vmem, size = 0x400, scoped, tag = 'input window, operand 3, single buffered']
    #allocation6 [shape = 's32[2]{0}', space=sflag, size = 0x8, scoped, tag = 'scoped memory for point_gaussian_policy_forward.2']
    #allocation7 [shape = 'u8[262144]{0}', space=vmem, size = 0x40000, scoped, tag = 'input window, operand 4, single buffered']
    #allocation8 [shape = 's32[1]{0}', space=sflag, size = 0x4, scoped, tag = 'scoped memory for point_gaussian_policy_forward.2']
    #allocation9 [shape = 'u8[4096]{0}', space=vmem, size = 0x1000, scoped, tag = 'input window, operand 5, single buffered']
    %11 = vsyncpa [#allocation6], 0
    %12 = vsyncpa [#allocation8], 0
    loop: start=0, step=1, limit=5
    $region2: #{point_gaussian_policy_forward.2} parent=1 // loop_pre_header
      _
    $region3: #{point_gaussian_policy_forward.2} parent=1 // loop_header
      %s14 = sphi 0, %s18
      %p15 = scmp.ge.s32.totalorder %s14, 5
      %s21 = sphi 0, %s33
      %s22 = sphi 0, %s29
      %s23 = sphi 0, %s21
      %s24 = sphi 0, %s22
      %s25 = sphi 0, %s23
      %s26 = sphi 0, %s24
      %s38 = sphi 0, %s40
      %s41 = sphi 0, %s38
      %s42 = sphi 0, %s41
      %s58 = sphi 0, %s42
      %s64 = sphi 0, %s66
      %s67 = sphi 0, %s64
      %s68 = sphi 0, %s67
      %s84 = sphi 0, %s68
      %s88 = sphi 0, %s88
      %s90 = sphi 0, %s88
      %s91 = sphi 0, %s90
      %s105 = sphi 0, %s91
      %s109 = sphi 0, %s109
      %s111 = sphi 0, %s109
      %s112 = sphi 0, %s111
      %s126 = sphi 0, %s112
      %s130 = sphi 0, %s130
      %s132 = sphi 0, %s130
      %s133 = sphi 0, %s132
      %s147 = sphi 0, %s133
      %s151 = sphi 0, %s151
      %s153 = sphi 0, %s151
      %s154 = sphi 0, %s153
      %s168 = sphi 0, %s154
      %s174 = sphi 0, %s176
      %s177 = sphi 0, %s174
      %s178 = sphi 0, %s177
      %s194 = sphi 0, %s178
    $region4: #{point_gaussian_policy_forward.2} parent=1 // loop_header_branch
      %17 = sbr.rel (%p15) target = $region8
    $region5: #{point_gaussian_policy_forward.2} parent=1 // loop_body
      %s19 = ssub.s32 %s14, 1
      %s20 = ssub.s32 %s14, 2
      %s27 = sadd.s32 1, %s22
      %p28 = scmp.ge.s32.totalorder %s27, 3
      %s29 = scalar_select %p28, 0, %s27
      %s30 = sadd.s32 1, %s21
      %s31 = scalar_select %p28, %s30, %s21
      %p32 = scmp.ge.s32.totalorder %s31, 1
      %s33 = scalar_select %p32, 0, %s31
      %s34 = ssub.s32 %s21, %s33
      %s35 = ssub.s32 %s22, %s29
      %s36 = sor.u32 %s34, %s35
      %p37 = scmp.eq.s32.totalorder %s36, 0
      %s39 = sadd.s32 %s38, 1
      %s40 = scalar_select %p37, %s38, %s39
      %p43 = pneg %p37
      %p44 = scmp.eq.s32.totalorder %s14, 2
      %p45 = por %p43, %p44
      %p46 = scmp.ne.s32.totalorder %s38, %s41
      %p47 = scmp.eq.s32.totalorder %s14, 0
      %p48 = por %p46, %p47
      %p49 = scmp.ne.s32.totalorder %s38, %s41
      %p50 = scmp.eq.s32.totalorder %s19, 2
      %p51 = por %p49, %p50
      %p52 = scmp.ne.s32.totalorder %s41, %s42
      %p53 = scmp.eq.s32.totalorder %s19, 0
      %p54 = por %p52, %p53
      %p55 = scmp.ne.s32.totalorder %s41, %s42
      %p56 = scmp.eq.s32.totalorder %s20, 2
      %p57 = por %p55, %p56
      %p59 = scmp.ne.s32.totalorder %s42, %s58
      %p60 = scmp.eq.s32.totalorder %s20, 0
      %p61 = por %p59, %p60
      %s62 = ssub.s32 %s22, %s29
      %p63 = scmp.eq.s32.totalorder %s62, 0
      %s65 = sadd.s32 %s64, 1
      %s66 = scalar_select %p63, %s64, %s65
      %p69 = pneg %p63
      %p70 = scmp.eq.s32.totalorder %s14, 2
      %p71 = por %p69, %p70
      %p72 = scmp.ne.s32.totalorder %s64, %s67
      %p73 = scmp.eq.s32.totalorder %s14, 0
      %p74 = por %p72, %p73
      %p75 = scmp.ne.s32.totalorder %s64, %s67
      %p76 = scmp.eq.s32.totalorder %s19, 2
      %p77 = por %p75, %p76
      %p78 = scmp.ne.s32.totalorder %s67, %s68
      %p79 = scmp.eq.s32.totalorder %s19, 0
      %p80 = por %p78, %p79
      %p81 = scmp.ne.s32.totalorder %s67, %s68
      %p82 = scmp.eq.s32.totalorder %s20, 2
      %p83 = por %p81, %p82
      %p85 = scmp.ne.s32.totalorder %s68, %s84
      %p86 = scmp.eq.s32.totalorder %s20, 0
      %p87 = por %p85, %p86
      %s89 = sadd.s32 %s88, 1
      %p92 = scmp.eq.s32.totalorder %s14, 2
      %p93 = scmp.ne.s32.totalorder %s88, %s90
      %p94 = scmp.eq.s32.totalorder %s14, 0
      %p95 = por %p93, %p94
      %p96 = scmp.ne.s32.totalorder %s88, %s90
      %p97 = scmp.eq.s32.totalorder %s19, 2
      %p98 = por %p96, %p97
      %p99 = scmp.ne.s32.totalorder %s90, %s91
      %p100 = scmp.eq.s32.totalorder %s19, 0
      %p101 = por %p99, %p100
      %p102 = scmp.ne.s32.totalorder %s90, %s91
      %p103 = scmp.eq.s32.totalorder %s20, 2
      %p104 = por %p102, %p103
      %p106 = scmp.ne.s32.totalorder %s91, %s105
      %p107 = scmp.eq.s32.totalorder %s20, 0
      %p108 = por %p106, %p107
      %s110 = sadd.s32 %s109, 1
      %p113 = scmp.eq.s32.totalorder %s14, 2
      %p114 = scmp.ne.s32.totalorder %s109, %s111
      %p115 = scmp.eq.s32.totalorder %s14, 0
      %p116 = por %p114, %p115
      %p117 = scmp.ne.s32.totalorder %s109, %s111
      %p118 = scmp.eq.s32.totalorder %s19, 2
      %p119 = por %p117, %p118
      %p120 = scmp.ne.s32.totalorder %s111, %s112
      %p121 = scmp.eq.s32.totalorder %s19, 0
      %p122 = por %p120, %p121
      %p123 = scmp.ne.s32.totalorder %s111, %s112
      %p124 = scmp.eq.s32.totalorder %s20, 2
      %p125 = por %p123, %p124
      %p127 = scmp.ne.s32.totalorder %s112, %s126
      %p128 = scmp.eq.s32.totalorder %s20, 0
      %p129 = por %p127, %p128
      %s131 = sadd.s32 %s130, 1
      %p134 = scmp.eq.s32.totalorder %s14, 2
      %p135 = scmp.ne.s32.totalorder %s130, %s132
      %p136 = scmp.eq.s32.totalorder %s14, 0
      %p137 = por %p135, %p136
      %p138 = scmp.ne.s32.totalorder %s130, %s132
      %p139 = scmp.eq.s32.totalorder %s19, 2
      %p140 = por %p138, %p139
      %p141 = scmp.ne.s32.totalorder %s132, %s133
      %p142 = scmp.eq.s32.totalorder %s19, 0
      %p143 = por %p141, %p142
      %p144 = scmp.ne.s32.totalorder %s132, %s133
      %p145 = scmp.eq.s32.totalorder %s20, 2
      %p146 = por %p144, %p145
      %p148 = scmp.ne.s32.totalorder %s133, %s147
      %p149 = scmp.eq.s32.totalorder %s20, 0
      %p150 = por %p148, %p149
      %s152 = sadd.s32 %s151, 1
      %p155 = scmp.eq.s32.totalorder %s14, 2
      %p156 = scmp.ne.s32.totalorder %s151, %s153
      %p157 = scmp.eq.s32.totalorder %s14, 0
      %p158 = por %p156, %p157
      %p159 = scmp.ne.s32.totalorder %s151, %s153
      %p160 = scmp.eq.s32.totalorder %s19, 2
      %p161 = por %p159, %p160
      %p162 = scmp.ne.s32.totalorder %s153, %s154
      %p163 = scmp.eq.s32.totalorder %s19, 0
      %p164 = por %p162, %p163
      %p165 = scmp.ne.s32.totalorder %s153, %s154
      %p166 = scmp.eq.s32.totalorder %s20, 2
      %p167 = por %p165, %p166
      %p169 = scmp.ne.s32.totalorder %s154, %s168
      %p170 = scmp.eq.s32.totalorder %s20, 0
      %p171 = por %p169, %p170
      %s172 = ssub.s32 %s21, %s33
      %p173 = scmp.eq.s32.totalorder %s172, 0
      %s175 = sadd.s32 %s174, 1
      %s176 = scalar_select %p173, %s174, %s175
      %p179 = pneg %p173
      %p180 = scmp.eq.s32.totalorder %s14, 2
      %p181 = por %p179, %p180
      %p182 = scmp.ne.s32.totalorder %s174, %s177
      %p183 = scmp.eq.s32.totalorder %s14, 0
      %p184 = por %p182, %p183
      %p185 = scmp.ne.s32.totalorder %s174, %s177
      %p186 = scmp.eq.s32.totalorder %s19, 2
      %p187 = por %p185, %p186
      %p188 = scmp.ne.s32.totalorder %s177, %s178
      %p189 = scmp.eq.s32.totalorder %s19, 0
      %p190 = por %p188, %p189
      %p191 = scmp.ne.s32.totalorder %s177, %s178
      %p192 = scmp.eq.s32.totalorder %s20, 2
      %p193 = por %p191, %p192
      %p195 = scmp.ne.s32.totalorder %s178, %s194
      %p196 = scmp.eq.s32.totalorder %s20, 0
      %p197 = por %p195, %p196
      %p198 = scmp.le.s32.totalorder 1, %s14
      %p199 = scmp.lt.s32.totalorder %s14, 4
      %p200 = pnand %p198, %p199
      %p201 = pneg %p200
      // Predicated region
      $region9: #{point_gaussian_policy_forward.2} parent=5 // pred_check
        _
      $region10: #{point_gaussian_policy_forward.2} parent=5 // pred_check_branch
        %203 = sbr.rel (%p200) target = $region12
      $region11: #{point_gaussian_policy_forward.2} parent=5 // pred_region
        %s204 = ssub.s32 %s14, 1
        // Predicated region
        $region13: #{point_gaussian_policy_forward.2} parent=11 // pred_check
          %p205 = pneg %p101
        $region14: #{point_gaussian_policy_forward.2} parent=11 // pred_check_branch
          %207 = sbr.rel (%p205) target = $region16
        $region15: #{point_gaussian_policy_forward.2} parent=11 // pred_region
          _
        $region16: #{point_gaussian_policy_forward.2} parent=11 // pred_fallthru
          _
        // Predicated region
        $region17: #{point_gaussian_policy_forward.2} parent=11 // pred_check
          %p208 = pneg %p122
        $region18: #{point_gaussian_policy_forward.2} parent=11 // pred_check_branch
          %210 = sbr.rel (%p208) target = $region20
        $region19: #{point_gaussian_policy_forward.2} parent=11 // pred_region
          %s212 = ssub.s32 16, 16
          %213 = vsyncadd [#allocation6], %s212
          %s215 = sshll.u32 [#allocation5], 4
          %s216 = int_to_ptr.vmem [resolvable:$true] %s215
          %218 = dma.hbm_to_vmem [thread:$0]  %s3, 16, %s216, [#allocation6]
        $region20: #{point_gaussian_policy_forward.2} parent=11 // pred_fallthru
          _
        // Predicated region
        $region21: #{point_gaussian_policy_forward.2} parent=11 // pred_check
          %p219 = pneg %p143
        $region22: #{point_gaussian_policy_forward.2} parent=11 // pred_check_branch
          %221 = sbr.rel (%p219) target = $region24
        $region23: #{point_gaussian_policy_forward.2} parent=11 // pred_region
          %s223 = ssub.s32 8192, 8192
          %224 = vsyncadd [#allocation8], %s223
          %s225 = sshll.u32 [#allocation7], 4
          %s226 = int_to_ptr.vmem [resolvable:$true] %s225
          %231 = dma.hbm_to_vmem [thread:$0]  %s4, 8192, %s226, [#allocation8], 1024, 1024, 64
        $region24: #{point_gaussian_policy_forward.2} parent=11 // pred_fallthru
          _
        // Predicated region
        $region25: #{point_gaussian_policy_forward.2} parent=11 // pred_check
          %p232 = pneg %p164
        $region26: #{point_gaussian_policy_forward.2} parent=11 // pred_check_branch
          %234 = sbr.rel (%p232) target = $region28
        $region27: #{point_gaussian_policy_forward.2} parent=11 // pred_region
          %s236 = ssub.s32 128, 128
          %237 = vsyncadd [#allocation8], %s236
          %s239 = sshll.u32 [#allocation9], 4
          %s240 = int_to_ptr.vmem [resolvable:$true] %s239
          %242 = dma.hbm_to_vmem [thread:$0]  %s5, 128, %s240, [#allocation8]
        $region28: #{point_gaussian_policy_forward.2} parent=11 // pred_fallthru
          _
      $region12: #{point_gaussian_policy_forward.2} parent=5 // pred_fallthru
        _
      %p243 = scmp.lt.s32.totalorder %s14, 3
      // Predicated region
      $region29: #{point_gaussian_policy_forward.2} parent=5 // pred_check
        %p244 = pneg %p243
      $region30: #{point_gaussian_policy_forward.2} parent=5 // pred_check_branch
        %246 = sbr.rel (%p244) target = $region32
      $region31: #{point_gaussian_policy_forward.2} parent=5 // pred_region
        // Predicated region
        $region33: #{point_gaussian_policy_forward.2} parent=31 // pred_check
          %p247 = pneg %p48
        $region34: #{point_gaussian_policy_forward.2} parent=31 // pred_check_branch
          %249 = sbr.rel (%p247) target = $region36
        $region35: #{point_gaussian_policy_forward.2} parent=31 // pred_region
          %s250 = sand.u32 %s38, 1
          %s251 = sand.u32 %s38, 1
          %s252 = smul.addr %s251, 64
          %s253 = scalar_lea.vmem [#allocation4], %s252
          %s254 = smul.u32 2, %s21
          %s255 = smul.u32 4, %s22
          %s256 = smul.addr %s254, 12
          %s257 = sadd.s32 %s255, %s256
          %s258 = smul.addr %s257, 8
          %s259 = scalar_lea.vmem %s0, %s258
          // Predicated region
          $region37: #{point_gaussian_policy_forward.2} parent=35 // pred_check
            _
          $region38: #{point_gaussian_policy_forward.2} parent=35 // pred_check_branch
            %261 = sbr.rel (0) target = $region40
          $region39: #{point_gaussian_policy_forward.2} parent=35 // pred_region
            // Predicated region
            $region41: #{point_gaussian_policy_forward.2} parent=39 // pred_check
              _
            $region42: #{point_gaussian_policy_forward.2} parent=39 // pred_check_branch
              %263 = sbr.rel (0) target = $region44
            $region43: #{point_gaussian_policy_forward.2} parent=39 // pred_region
              // Predicated region
              $region56: #{point_gaussian_policy_forward.2} parent=43 // pred_check
                _
              $region57: #{point_gaussian_policy_forward.2} parent=43 // pred_check_branch
                %293 = sbr.rel (0) target = $region59
              $region58: #{point_gaussian_policy_forward.2} parent=43 // pred_region
                loop: start=0, step=1, limit=1
                $region60: #{point_gaussian_policy_forward.2} parent=58 // loop_pre_header
                  _
                $region61: #{point_gaussian_policy_forward.2} parent=58 // loop_header
                  %s295 = sphi 0, %s299
                  %p296 = scmp.ge.s32.totalorder %s295, 1
                  %s300 = sphi %s259, %s259
                  %s301 = sphi %s253, %s253
                $region62: #{point_gaussian_policy_forward.2} parent=58 // loop_header_branch
                  %298 = sbr.rel (%p296) target = $region66
                $region63: #{point_gaussian_policy_forward.2} parent=58 // loop_body
                  %v302 = vld [vmem:[%s300] sm:$0xff]
                  %303 = vst [vmem:[%s301] sm:$0xff] %v302
                  %v304 = vld [vmem:[%s300 + $0x8] sm:$0xff]
                  %305 = vst [vmem:[%s301 + $0x8] sm:$0xff] %v304
                  %v306 = vld [vmem:[%s300 + $0x10] sm:$0xff]
                  %307 = vst [vmem:[%s301 + $0x10] sm:$0xff] %v306
                  %v308 = vld [vmem:[%s300 + $0x18] sm:$0xff]
                  %309 = vst [vmem:[%s301 + $0x18] sm:$0xff] %v308
                  %v310 = vld [vmem:[%s300 + $0x60] sm:$0xff]
                  %311 = vst [vmem:[%s301 + $0x20] sm:$0xff] %v310
                  %v312 = vld [vmem:[%s300 + $0x68] sm:$0xff]
                  %313 = vst [vmem:[%s301 + $0x28] sm:$0xff] %v312
                  %v314 = vld [vmem:[%s300 + $0x70] sm:$0xff]
                  %315 = vst [vmem:[%s301 + $0x30] sm:$0xff] %v314
                  %v316 = vld [vmem:[%s300 + $0x78] sm:$0xff]
                  %317 = vst [vmem:[%s301 + $0x38] sm:$0xff] %v316
                $region64: #{point_gaussian_policy_forward.2} parent=58 // loop_footer
                  %s299 = sadd.s32 1, %s295
                $region65: #{point_gaussian_policy_forward.2} parent=58 // loop_footer_branch
                  %294 = sbr.rel target = $region61
                $region66: #{point_gaussian_policy_forward.2} parent=58 // loop_exit
                  _
              $region59: #{point_gaussian_policy_forward.2} parent=43 // pred_fallthru
                _
              // Predicated region
              $region67: #{point_gaussian_policy_forward.2} parent=43 // pred_check
                _
              $region68: #{point_gaussian_policy_forward.2} parent=43 // pred_check_branch
                %319 = sbr.rel target = $region70
              $region69: #{point_gaussian_policy_forward.2} parent=43 // pred_region
                _
              $region70: #{point_gaussian_policy_forward.2} parent=43 // pred_fallthru
                _
            $region44: #{point_gaussian_policy_forward.2} parent=39 // pred_fallthru
              _
            // Predicated region
            $region45: #{point_gaussian_policy_forward.2} parent=39 // pred_check
              _
            $region46: #{point_gaussian_policy_forward.2} parent=39 // pred_check_branch
              %265 = sbr.rel target = $region48
            $region47: #{point_gaussian_policy_forward.2} parent=39 // pred_region
              %s267 = ssub.s32 256, 1
              loop: start=0, step=1, limit=1
              $region49: #{point_gaussian_policy_forward.2} parent=47 // loop_pre_header
                _
              $region50: #{point_gaussian_policy_forward.2} parent=47 // loop_header
                %s269 = sphi 0, %s273
                %p270 = scmp.ge.s32.totalorder %s269, 1
                %s274 = sphi %s259, %s259
                %s275 = sphi %s253, %s253
              $region51: #{point_gaussian_policy_forward.2} parent=47 // loop_header_branch
                %272 = sbr.rel (%p270) target = $region55
              $region52: #{point_gaussian_policy_forward.2} parent=47 // loop_body
                %v276 = vld [vmem:[%s274] sm:%s267]
                %277 = vst [vmem:[%s275] sm:%s267] %v276
                %v278 = vld [vmem:[%s274 + $0x8] sm:%s267]
                %279 = vst [vmem:[%s275 + $0x8] sm:%s267] %v278
                %v280 = vld [vmem:[%s274 + $0x10] sm:%s267]
                %281 = vst [vmem:[%s275 + $0x10] sm:%s267] %v280
                %v282 = vld [vmem:[%s274 + $0x18] sm:%s267]
                %283 = vst [vmem:[%s275 + $0x18] sm:%s267] %v282
                %v284 = vld [vmem:[%s274 + $0x60] sm:%s267]
                %285 = vst [vmem:[%s275 + $0x20] sm:%s267] %v284
                %v286 = vld [vmem:[%s274 + $0x68] sm:%s267]
                %287 = vst [vmem:[%s275 + $0x28] sm:%s267] %v286
                %v288 = vld [vmem:[%s274 + $0x70] sm:%s267]
                %289 = vst [vmem:[%s275 + $0x30] sm:%s267] %v288
                %v290 = vld [vmem:[%s274 + $0x78] sm:%s267]
                %291 = vst [vmem:[%s275 + $0x38] sm:%s267] %v290
              $region53: #{point_gaussian_policy_forward.2} parent=47 // loop_footer
                %s273 = sadd.s32 1, %s269
              $region54: #{point_gaussian_policy_forward.2} parent=47 // loop_footer_branch
                %268 = sbr.rel target = $region50
              $region55: #{point_gaussian_policy_forward.2} parent=47 // loop_exit
                _
            $region48: #{point_gaussian_policy_forward.2} parent=39 // pred_fallthru
              _
          $region40: #{point_gaussian_policy_forward.2} parent=35 // pred_fallthru
            _
          %320 = vnop
        $region36: #{point_gaussian_policy_forward.2} parent=31 // pred_fallthru
          _
        // Predicated region
        $region71: #{point_gaussian_policy_forward.2} parent=31 // pred_check
          %p321 = pneg %p74
        $region72: #{point_gaussian_policy_forward.2} parent=31 // pred_check_branch
          %323 = sbr.rel (%p321) target = $region74
        $region73: #{point_gaussian_policy_forward.2} parent=31 // pred_region
          %s324 = smul.u32 4, %s22
          %p325 = scmp.lt.s32.totalorder %s324, 11
          %s326 = scalar_select %p325, %s324, 11
          %s327 = smul.addr %s326, 8
          %s328 = scalar_lea.vmem %s1, %s327
          %s329 = smul.u32 4, %s22
        $region74: #{point_gaussian_policy_forward.2} parent=31 // pred_fallthru
          _
      $region32: #{point_gaussian_policy_forward.2} parent=5 // pred_fallthru
        _
      %p330 = scmp.le.s32.totalorder 1, %s14
      %p331 = scmp.lt.s32.totalorder %s14, 4
      %p332 = pnand %p330, %p331
      %p333 = pneg %p332
      // Predicated region
      $region75: #{point_gaussian_policy_forward.2} parent=5 // pred_check
        _
      $region76: #{point_gaussian_policy_forward.2} parent=5 // pred_check_branch
        %335 = sbr.rel (%p332) target = $region78
      $region77: #{point_gaussian_policy_forward.2} parent=5 // pred_region
        %s336 = ssub.s32 %s14, 1
        %s337 = sand.u32 %s41, 1
        %s338 = sand.u32 %s41, 1
        %s339 = smul.addr %s338, 64
        %s340 = scalar_lea.vmem [#allocation4], %s339
        // Predicated region
        $region79: #{point_gaussian_policy_forward.2} parent=77 // pred_check
          %p341 = pneg %p54
        $region80: #{point_gaussian_policy_forward.2} parent=77 // pred_check_branch
          %343 = sbr.rel (%p341) target = $region82
        $region81: #{point_gaussian_policy_forward.2} parent=77 // pred_region
          _
        $region82: #{point_gaussian_policy_forward.2} parent=77 // pred_fallthru
          _
        // Predicated region
        $region83: #{point_gaussian_policy_forward.2} parent=77 // pred_check
          %p344 = pneg %p122
        $region84: #{point_gaussian_policy_forward.2} parent=77 // pred_check_branch
          %346 = sbr.rel (%p344) target = $region86
        $region85: #{point_gaussian_policy_forward.2} parent=77 // pred_region
          %347 = dma.done [#allocation6], 16
        $region86: #{point_gaussian_policy_forward.2} parent=77 // pred_fallthru
          _
        // Predicated region
        $region87: #{point_gaussian_policy_forward.2} parent=77 // pred_check
          %p348 = pneg %p143
        $region88: #{point_gaussian_policy_forward.2} parent=77 // pred_check_branch
          %350 = sbr.rel (%p348) target = $region90
        $region89: #{point_gaussian_policy_forward.2} parent=77 // pred_region
          %351 = dma.done [#allocation8], 8192
        $region90: #{point_gaussian_policy_forward.2} parent=77 // pred_fallthru
          _
        // Predicated region
        $region91: #{point_gaussian_policy_forward.2} parent=77 // pred_check
          %p352 = pneg %p164
        $region92: #{point_gaussian_policy_forward.2} parent=77 // pred_check_branch
          %354 = sbr.rel (%p352) target = $region94
        $region93: #{point_gaussian_policy_forward.2} parent=77 // pred_region
          %355 = dma.done [#allocation8], 128
        $region94: #{point_gaussian_policy_forward.2} parent=77 // pred_fallthru
          _
        %s356 = sand.u32 %s41, 1
        %s357 = sand.u32 %s41, 1
        %s358 = smul.addr %s357, 64
        %s359 = scalar_lea.vmem [#allocation4], %s358
        %p360 = pneg %p54
        %p361 = pneg %p51
        %s362 = smul.u32 4, %s24
        %p363 = scmp.lt.s32.totalorder %s362, 11
        %s364 = scalar_select %p363, %s362, 11
        %s365 = smul.addr %s364, 8
        %s366 = scalar_lea.vmem %s1, %s365
        %p367 = pneg %p80
        %p368 = pneg %p77
        %p369 = pneg %p101
        %p370 = pneg %p98
        %p371 = pneg %p122
        %p372 = pneg %p119
        %p373 = pneg %p143
        %p374 = pneg %p140
        %p375 = pneg %p164
        %p376 = pneg %p161
        %p377 = pneg %p190
        %p378 = pneg %p187
        %p379 = scmp.lt.s32.totalorder %s23, 0
        %s380 = scalar_select %p379, %s23, 0
        %s381 = smul.addr %s380, 8
        %s382 = smul.addr %s381, 2
        %s383 = scalar_lea.vmem %s6, %s382
        %s384 = smul.u32 2, %s23
        %s385 = smul.u32 4, %s24
        %s386 = smul.u32 4, %s24
        %p387 = scmp.lt.s32.totalorder %s386, 11
        %s388 = scalar_select %p387, %s386, 11
        %s389 = smul.addr %s388, 8
        %s390 = scalar_lea.vmem %s1, %s389
        %s391 = smul.u32 4, %s24
        %p392 = scmp.lt.s32.totalorder %s23, 0
        %s393 = scalar_select %p392, %s23, 0
        %s394 = smul.addr %s393, 8
        %s395 = smul.addr %s394, 2
        %s396 = scalar_lea.vmem %s6, %s395
        %p397 = scmp.eq.s32.totalorder %s24, 0
        // Predicated region
        $region95: #{point_gaussian_policy_forward.2} parent=77 // pred_check
          %p398 = pneg %p397
        $region96: #{point_gaussian_policy_forward.2} parent=77 // pred_check_branch
          %400 = sbr.rel (%p398) target = $region98
        $region97: #{point_gaussian_policy_forward.2} parent=77 // pred_region
          %401 = vst [vmem:[#allocation2] sm:$0xff] -3.4028235e+38
          %402 = vst [vmem:[#allocation2 + $0x8] sm:$0xff] -3.4028235e+38
          %vm403 = vcmask 1024
          %404 = vst.msk [vmem:[#allocation3] sm:$0x3] %vm403, 0.0
        $region98: #{point_gaussian_policy_forward.2} parent=77 // pred_fallthru
          _
        %v405 = vld [vmem:[%s340] sm:$0xff]
        %v406 = vld [vmem:[%s340 + $0x8] sm:$0xff]
        %v407 = vld [vmem:[%s340 + $0x10] sm:$0xff]
        %v408 = vld [vmem:[%s340 + $0x18] sm:$0xff]
        %v409 = vld [vmem:[%s340 + $0x20] sm:$0xff]
        %v410 = vld [vmem:[%s340 + $0x28] sm:$0xff]
        %v411 = vld [vmem:[%s340 + $0x30] sm:$0xff]
        %v412 = vld [vmem:[%s340 + $0x38] sm:$0xff]
        %vm413 = vcmask 23552
        %v414 = vsel %vm413, %v405, 0.0
        %415 = vadd.xlane.f32.xlu0 %v414
        %v416 = vpop.xlane.xlu0 %415
        %v417 = vsel %vm413, %v406, 0.0
        %418 = vadd.xlane.f32.xlu0 %v417
        %v419 = vpop.xlane.xlu0 %418
        %v420 = vsel %vm413, %v407, 0.0
        %421 = vadd.xlane.f32.xlu0 %v420
        %v422 = vpop.xlane.xlu0 %421
        %v423 = vsel %vm413, %v408, 0.0
        %424 = vadd.xlane.f32.xlu0 %v423
        %v425 = vpop.xlane.xlu0 %424
        %v426 = vsel %vm413, %v409, 0.0
        %427 = vadd.xlane.f32.xlu0 %v426
        %v428 = vpop.xlane.xlu0 %427
        %v429 = vsel %vm413, %v410, 0.0
        %430 = vadd.xlane.f32.xlu0 %v429
        %v431 = vpop.xlane.xlu0 %430
        %v432 = vsel %vm413, %v411, 0.0
        %433 = vadd.xlane.f32.xlu0 %v432
        %v434 = vpop.xlane.xlu0 %433
        %v435 = vsel %vm413, %v412, 0.0
        %436 = vadd.xlane.f32.xlu0 %v435
        %v437 = vpop.xlane.xlu0 %436
        %vm438 = vcmp.ne.f32.partialorder %v416, 0.0
        %vm439 = vcmp.ne.f32.partialorder %v419, 0.0
        %vm440 = vcmp.ne.f32.partialorder %v422, 0.0
        %vm441 = vcmp.ne.f32.partialorder %v425, 0.0
        %vm442 = vcmp.ne.f32.partialorder %v428, 0.0
        %vm443 = vcmp.ne.f32.partialorder %v431, 0.0
        %vm444 = vcmp.ne.f32.partialorder %v434, 0.0
        %vm445 = vcmp.ne.f32.partialorder %v437, 0.0
        %v446 = vld [vmem:[%s2] sm:$0x7]
        %v448 = vsel %vm413, %v405, 0
        %v451 = vsel %vm413, %v406, 0
        %v454 = vsel %vm413, %v407, 0
        %v457 = vsel %vm413, %v408, 0
        %v460 = vsel %vm413, %v409, 0
        %v463 = vsel %vm413, %v410, 0
        %v466 = vsel %vm413, %v411, 0
        %v469 = vsel %vm413, %v412, 0
        %vm471 = vcmask 1042432
        %v473 = vsel %vm471, %v446, 0
        %475 = vmatprep.subr.mxu0 0.0
        %476 = vmatpush1.msra.mxu0 0.0
        %477 = vmatprep.subr.mxu0 0.0
        %478 = vmatpush1.msra.mxu0 0.0
        %479 = vmatprep.subr.mxu0 0.0
        %480 = vmatpush1.msra.mxu0 0.0
        %481 = vmatprep.subr.mxu0 0.0
        %482 = vmatpush1.msra.mxu0 0.0
        %483 = vmatprep.subr.mxu0 0.0
        %484 = vmatpush1.msra.mxu0 0.0
        %485 = vmatprep.subr.mxu0 0.0
        %486 = vmatpush1.msra.mxu0 0.0
        %487 = vmatprep.subr.mxu0 0.0
        %488 = vmatpush1.msra.mxu0 0.0
        %489 = vmatprep.subr.mxu0 0.0
        %490 = vmatpush1.msra.mxu0 0.0
        %491 = vmatprep.subr.mxu0 0.0
        %492 = vmatpush1.msra.mxu0 0.0
        %493 = vmatprep.subr.mxu0 0.0
        %494 = vmatpush1.msra.mxu0 0.0
        %495 = vmatprep.subr.mxu0 0.0
        %496 = vmatpush1.msra.mxu0 0.0
        %497 = vmatprep.subr.mxu0 0.0
        %498 = vmatpush1.msra.mxu0 0.0
        %499 = vmatprep.subr.mxu0 0.0
        %500 = vmatpush1.msra.mxu0 0.0
        %501 = vmatprep.subr.mxu0 0.0
        %502 = vmatpush1.msra.mxu0 0.0
        %503 = vmatprep.subr.mxu0 0.0
        %504 = vmatpush1.msra.mxu0 0.0
        %505 = vmatprep.subr.mxu0 0.0
        %506 = vmatpush1.msra.mxu0 %v473
        %507 = vmatprep.subr.mxu0 0.0
        %508 = vmatpush2.msra.mxu0 0.0
        %509 = vmatprep.subr.mxu0 0.0
        %510 = vmatpush2.msra.mxu0 0.0
        %511 = vmatprep.subr.mxu0 0.0
        %512 = vmatpush2.msra.mxu0 0.0
        %513 = vmatprep.subr.mxu0 0.0
        %514 = vmatpush2.msra.mxu0 0.0
        %515 = vmatprep.subr.mxu0 0.0
        %516 = vmatpush2.msra.mxu0 0.0
        %517 = vmatprep.subr.mxu0 0.0
        %518 = vmatpush2.msra.mxu0 0.0
        %519 = vmatprep.subr.mxu0 0.0
        %520 = vmatpush2.msra.mxu0 0.0
        %521 = vmatprep.subr.mxu0 0.0
        %522 = vmatpush2.msra.mxu0 0.0
        %523 = vmatprep.subr.mxu0 0.0
        %524 = vmatpush2.msra.mxu0 0.0
        %525 = vmatprep.subr.mxu0 0.0
        %526 = vmatpush2.msra.mxu0 0.0
        %527 = vmatprep.subr.mxu0 0.0
        %528 = vmatpush2.msra.mxu0 0.0
        %529 = vmatprep.subr.mxu0 0.0
        %530 = vmatpush2.msra.mxu0 0.0
        %531 = vmatprep.subr.mxu0 0.0
        %532 = vmatpush2.msra.mxu0 0.0
        %533 = vmatprep.subr.mxu0 0.0
        %534 = vmatpush2.msra.mxu0 0.0
        %535 = vmatprep.subr.mxu0 0.0
        %536 = vmatpush2.msra.mxu0 0.0
        %537 = vmatprep.subr.mxu0 0.0
        %538 = vmatpush2.msra.mxu0 0.0
        %539 = vmatprep.mubr.f32.mxu0 0.0
        %540 = vmatmul.mubr.f32.gmra.mxu0 %v448
        %v541 = vpop.f32.mrf.mxu0
        %v542 = vadd.f32 0.0, %v541
        %v543 = vpop.f32.mrf.mxu0
        %544 = vmatprep.mubr.f32.mxu0 0.0
        %545 = vmatmul.mubr.f32.gmra.mxu0 %v451
        %v546 = vpop.f32.mrf.mxu0
        %v547 = vadd.f32 0.0, %v546
        %v548 = vpop.f32.mrf.mxu0
        %549 = vmatprep.mubr.f32.mxu0 0.0
        %550 = vmatmul.mubr.f32.gmra.mxu0 %v454
        %v551 = vpop.f32.mrf.mxu0
        %v552 = vadd.f32 0.0, %v551
        %v553 = vpop.f32.mrf.mxu0
        %554 = vmatprep.mubr.f32.mxu0 0.0
        %555 = vmatmul.mubr.f32.gmra.mxu0 %v457
        %v556 = vpop.f32.mrf.mxu0
        %v557 = vadd.f32 0.0, %v556
        %v558 = vpop.f32.mrf.mxu0
        %559 = vmatprep.mubr.f32.mxu0 0.0
        %560 = vmatmul.mubr.f32.gmra.mxu0 %v460
        %v561 = vpop.f32.mrf.mxu0
        %v562 = vadd.f32 0.0, %v561
        %v563 = vpop.f32.mrf.mxu0
        %564 = vmatprep.mubr.f32.mxu0 0.0
        %565 = vmatmul.mubr.f32.gmra.mxu0 %v463
        %v566 = vpop.f32.mrf.mxu0
        %v567 = vadd.f32 0.0, %v566
        %v568 = vpop.f32.mrf.mxu0
        %569 = vmatprep.mubr.f32.mxu0 0.0
        %570 = vmatmul.mubr.f32.gmra.mxu0 %v466
        %v571 = vpop.f32.mrf.mxu0
        %v572 = vadd.f32 0.0, %v571
        %v573 = vpop.f32.mrf.mxu0
        %574 = vmatprep.mubr.f32.mxu0 0.0
        %575 = vmatmul.mubr.f32.gmra.mxu0 %v469
        %v576 = vpop.f32.mrf.mxu0
        %v577 = vadd.f32 0.0, %v576
        %v578 = vpop.f32.mrf.mxu0
        %579 = vdwg.mxu0
        %v580 = vld [vmem:[%s390] sm:$0xff]
        %v581 = vld [vmem:[%s390 + $0x8] sm:$0xff]
        %v582 = vld [vmem:[%s390 + $0x10] sm:$0xff]
        %v583 = vld [vmem:[%s390 + $0x18] sm:$0xff]
        %v584 = vld [vmem:[#allocation5] sm:$0x1]
        %v586 = vlaneseq
        %v587 = vshrl.u32 %v586, 7
        %v588 = vsub.s32 0, %v587
        %v589 = vrot.slane %v584, %v588
        %v591 = vadd.f32 %v580, %v589
        %v592 = vadd.f32 %v581, %v589
        %v593 = vadd.f32 %v582, %v589
        %v594 = vadd.f32 %v583, %v589
        %v595 = vadd.f32 %v542, %v591
        %v596 = vadd.f32 %v547, %v592
        %v597 = vadd.f32 %v552, %v593
        %v598 = vadd.f32 %v557, %v594
        %v599 = vadd.f32 %v562, %v591
        %v600 = vadd.f32 %v567, %v592
        %v601 = vadd.f32 %v572, %v593
        %v602 = vadd.f32 %v577, %v594
        %v603 = vmax.f32 %v595, 0.0
        %v604 = vmax.f32 %v596, 0.0
        %v605 = vmax.f32 %v597, 0.0
        %v606 = vmax.f32 %v598, 0.0
        %v607 = vmax.f32 %v599, 0.0
        %v608 = vmax.f32 %v600, 0.0
        %v609 = vmax.f32 %v601, 0.0
        %v610 = vmax.f32 %v602, 0.0
        %v611 = vld [vmem:[#allocation7] sm:$0xff]
        %v612 = vld [vmem:[#allocation7 + $0x8] sm:$0xff]
        %v613 = vld [vmem:[#allocation7 + $0x10] sm:$0xff]
        %v614 = vld [vmem:[#allocation7 + $0x18] sm:$0xff]
        %v615 = vld [vmem:[#allocation7 + $0x20] sm:$0xff]
        %v616 = vld [vmem:[#allocation7 + $0x28] sm:$0xff]
        %v617 = vld [vmem:[#allocation7 + $0x30] sm:$0xff]
        %v618 = vld [vmem:[#allocation7 + $0x38] sm:$0xff]
        %v619 = vld [vmem:[#allocation7 + $0x40] sm:$0xff]
        %v620 = vld [vmem:[#allocation7 + $0x48] sm:$0xff]
        %v621 = vld [vmem:[#allocation7 + $0x50] sm:$0xff]
        %v622 = vld [vmem:[#allocation7 + $0x58] sm:$0xff]
        %v623 = vld [vmem:[#allocation7 + $0x60] sm:$0xff]
        %v624 = vld [vmem:[#allocation7 + $0x68] sm:$0xff]
        %v625 = vld [vmem:[#allocation7 + $0x70] sm:$0xff]
        %v626 = vld [vmem:[#allocation7 + $0x78] sm:$0xff]
        %v627 = vld [vmem:[#allocation7 + $0x80] sm:$0xff]
        %v628 = vld [vmem:[#allocation7 + $0x88] sm:$0xff]
        %v629 = vld [vmem:[#allocation7 + $0x90] sm:$0xff]
        %v630 = vld [vmem:[#allocation7 + $0x98] sm:$0xff]
        %v631 = vld [vmem:[#allocation7 + $0xa0] sm:$0xff]
        %v632 = vld [vmem:[#allocation7 + $0xa8] sm:$0xff]
        %v633 = vld [vmem:[#allocation7 + $0xb0] sm:$0xff]
        %v634 = vld [vmem:[#allocation7 + $0xb8] sm:$0xff]
        %v635 = vld [vmem:[#allocation7 + $0xc0] sm:$0xff]
        %v636 = vld [vmem:[#allocation7 + $0xc8] sm:$0xff]
        %v637 = vld [vmem:[#allocation7 + $0xd0] sm:$0xff]
        %v638 = vld [vmem:[#allocation7 + $0xd8] sm:$0xff]
        %v639 = vld [vmem:[#allocation7 + $0xe0] sm:$0xff]
        %v640 = vld [vmem:[#allocation7 + $0xe8] sm:$0xff]
        %v641 = vld [vmem:[#allocation7 + $0xf0] sm:$0xff]
        %v642 = vld [vmem:[#allocation7 + $0xf8] sm:$0xff]
        %v643 = vld [vmem:[#allocation7 + $0x100] sm:$0xff]
        %v644 = vld [vmem:[#allocation7 + $0x108] sm:$0xff]
        %v645 = vld [vmem:[#allocation7 + $0x110] sm:$0xff]
        %v646 = vld [vmem:[#allocation7 + $0x118] sm:$0xff]
        %v647 = vld [vmem:[#allocation7 + $0x120] sm:$0xff]
        %v648 = vld [vmem:[#allocation7 + $0x128] sm:$0xff]
        %v649 = vld [vmem:[#allocation7 + $0x130] sm:$0xff]
        %v650 = vld [vmem:[#allocation7 + $0x138] sm:$0xff]
        %v651 = vld [vmem:[#allocation7 + $0x140] sm:$0xff]
        %v652 = vld [vmem:[#allocation7 + $0x148] sm:$0xff]
        %v653 = vld [vmem:[#allocation7 + $0x150] sm:$0xff]
        %v654 = vld [vmem:[#allocation7 + $0x158] sm:$0xff]
        %v655 = vld [vmem:[#allocation7 + $0x160] sm:$0xff]
        %v656 = vld [vmem:[#allocation7 + $0x168] sm:$0xff]
        %v657 = vld [vmem:[#allocation7 + $0x170] sm:$0xff]
        %v658 = vld [vmem:[#allocation7 + $0x178] sm:$0xff]
        %v659 = vld [vmem:[#allocation7 + $0x180] sm:$0xff]
        %v660 = vld [vmem:[#allocation7 + $0x188] sm:$0xff]
        %v661 = vld [vmem:[#allocation7 + $0x190] sm:$0xff]
        %v662 = vld [vmem:[#allocation7 + $0x198] sm:$0xff]
        %v663 = vld [vmem:[#allocation7 + $0x1a0] sm:$0xff]
        %v664 = vld [vmem:[#allocation7 + $0x1a8] sm:$0xff]
        %v665 = vld [vmem:[#allocation7 + $0x1b0] sm:$0xff]
        %v666 = vld [vmem:[#allocation7 + $0x1b8] sm:$0xff]
        %v667 = vld [vmem:[#allocation7 + $0x1c0] sm:$0xff]
        %v668 = vld [vmem:[#allocation7 + $0x1c8] sm:$0xff]
        %v669 = vld [vmem:[#allocation7 + $0x1d0] sm:$0xff]
        %v670 = vld [vmem:[#allocation7 + $0x1d8] sm:$0xff]
        %v671 = vld [vmem:[#allocation7 + $0x1e0] sm:$0xff]
        %v672 = vld [vmem:[#allocation7 + $0x1e8] sm:$0xff]
        %v673 = vld [vmem:[#allocation7 + $0x1f0] sm:$0xff]
        %v674 = vld [vmem:[#allocation7 + $0x1f8] sm:$0xff]
        %v675 = vld [vmem:[#allocation9] sm:$0xff]
        %v677 = vlaneseq
        %v678 = vshrl.u32 %v677, 7
        %v679 = vsub.s32 0, %v678
        %v680 = vrot.slane %v675, %v679
        %v681 = vlaneseq
        %v682 = vshrl.u32 %v681, 7
        %v683 = vsub.s32 1, %v682
        %v684 = vrot.slane %v675, %v683
        %v685 = vlaneseq
        %v686 = vshrl.u32 %v685, 7
        %v687 = vsub.s32 2, %v686
        %v688 = vrot.slane %v675, %v687
        %v689 = vlaneseq
        %v690 = vshrl.u32 %v689, 7
        %v691 = vsub.s32 3, %v690
        %v692 = vrot.slane %v675, %v691
        %v693 = vlaneseq
        %v694 = vshrl.u32 %v693, 7
        %v695 = vsub.s32 4, %v694
        %v696 = vrot.slane %v675, %v695
        %v697 = vlaneseq
        %v698 = vshrl.u32 %v697, 7
        %v699 = vsub.s32 5, %v698
        %v700 = vrot.slane %v675, %v699
        %v701 = vlaneseq
        %v702 = vshrl.u32 %v701, 7
        %v703 = vsub.s32 6, %v702
        %v704 = vrot.slane %v675, %v703
        %v705 = vlaneseq
        %v706 = vshrl.u32 %v705, 7
        %v707 = vsub.s32 7, %v706
        %v708 = vrot.slane %v675, %v707
        %vm717 = vcmask 523264
        %v719 = vsel %vm717, %v603, 0
        %v722 = vsel %vm717, %v604, 0
        %v725 = vsel %vm717, %v605, 0
        %v728 = vsel %vm717, %v606, 0
        %v731 = vsel %vm717, %v607, 0
        %v734 = vsel %vm717, %v608, 0
        %v737 = vsel %vm717, %v609, 0
        %v740 = vsel %vm717, %v610, 0
        %742 = vmatprep.subr.mxu0 0.0
        %743 = vmatpush1.msra.mxu0 0.0
        %744 = vmatprep.subr.mxu0 0.0
        %745 = vmatpush1.msra.mxu0 0.0
        %746 = vmatprep.subr.mxu0 0.0
        %747 = vmatpush1.msra.mxu0 0.0
        %748 = vmatprep.subr.mxu0 0.0
        %749 = vmatpush1.msra.mxu0 0.0
        %750 = vmatprep.subr.mxu0 0.0
        %751 = vmatpush1.msra.mxu0 0.0
        %752 = vmatprep.subr.mxu0 0.0
        %753 = vmatpush1.msra.mxu0 0.0
        %754 = vmatprep.subr.mxu0 0.0
        %755 = vmatpush1.msra.mxu0 0.0
        %756 = vmatprep.subr.mxu0 0.0
        %757 = vmatpush1.msra.mxu0 0.0
        %758 = vmatprep.subr.mxu0 %v668
        %759 = vmatpush1.msra.mxu0 %v667
        %760 = vmatprep.subr.mxu0 %v660
        %761 = vmatpush1.msra.mxu0 %v659
        %762 = vmatprep.subr.mxu0 %v652
        %763 = vmatpush1.msra.mxu0 %v651
        %764 = vmatprep.subr.mxu0 %v644
        %765 = vmatpush1.msra.mxu0 %v643
        %766 = vmatprep.subr.mxu0 %v636
        %767 = vmatpush1.msra.mxu0 %v635
        %768 = vmatprep.subr.mxu0 %v628
        %769 = vmatpush1.msra.mxu0 %v627
        %770 = vmatprep.subr.mxu0 %v620
        %771 = vmatpush1.msra.mxu0 %v619
        %772 = vmatprep.subr.mxu0 %v612
        %773 = vmatpush1.msra.mxu0 %v611
        %774 = vmatprep.subr.mxu0 0.0
        %775 = vmatpush2.msra.mxu0 0.0
        %776 = vmatprep.subr.mxu0 0.0
        %777 = vmatpush2.msra.mxu0 0.0
        %778 = vmatprep.subr.mxu0 0.0
        %779 = vmatpush2.msra.mxu0 0.0
        %780 = vmatprep.subr.mxu0 0.0
        %781 = vmatpush2.msra.mxu0 0.0
        %782 = vmatprep.subr.mxu0 0.0
        %783 = vmatpush2.msra.mxu0 0.0
        %784 = vmatprep.subr.mxu0 0.0
        %785 = vmatpush2.msra.mxu0 0.0
        %786 = vmatprep.subr.mxu0 0.0
        %787 = vmatpush2.msra.mxu0 0.0
        %788 = vmatprep.subr.mxu0 0.0
        %789 = vmatpush2.msra.mxu0 0.0
        %790 = vmatprep.subr.mxu0 0.0
        %791 = vmatpush2.msra.mxu0 0.0
        %792 = vmatprep.subr.mxu0 0.0
        %793 = vmatpush2.msra.mxu0 0.0
        %794 = vmatprep.subr.mxu0 0.0
        %795 = vmatpush2.msra.mxu0 0.0
        %796 = vmatprep.subr.mxu0 0.0
        %797 = vmatpush2.msra.mxu0 0.0
        %798 = vmatprep.subr.mxu0 0.0
        %799 = vmatpush2.msra.mxu0 0.0
        %800 = vmatprep.subr.mxu0 0.0
        %801 = vmatpush2.msra.mxu0 0.0
        %802 = vmatprep.subr.mxu0 0.0
        %803 = vmatpush2.msra.mxu0 0.0
        %804 = vmatprep.subr.mxu0 0.0
        %805 = vmatpush2.msra.mxu0 0.0
        %806 = vmatprep.mubr.f32.mxu0 0.0
        %807 = vmatmul.mubr.f32.gmra.mxu0 %v719
        %v808 = vpop.f32.mrf.mxu0
        %v809 = vadd.f32 %v680, %v808
        %v810 = vpop.f32.mrf.mxu0
        %v811 = vadd.f32 %v684, %v810
        %812 = vmatprep.mubr.f32.mxu0 0.0
        %813 = vmatmul.mubr.f32.gmra.mxu0 %v722
        %v814 = vpop.f32.mrf.mxu0
        %v815 = vadd.f32 %v680, %v814
        %v816 = vpop.f32.mrf.mxu0
        %v817 = vadd.f32 %v684, %v816
        %818 = vmatprep.mubr.f32.mxu0 0.0
        %819 = vmatmul.mubr.f32.gmra.mxu0 %v725
        %v820 = vpop.f32.mrf.mxu0
        %v821 = vadd.f32 %v680, %v820
        %v822 = vpop.f32.mrf.mxu0
        %v823 = vadd.f32 %v684, %v822
        %824 = vmatprep.mubr.f32.mxu0 0.0
        %825 = vmatmul.mubr.f32.gmra.mxu0 %v728
        %v826 = vpop.f32.mrf.mxu0
        %v827 = vadd.f32 %v680, %v826
        %v828 = vpop.f32.mrf.mxu0
        %v829 = vadd.f32 %v684, %v828
        %830 = vmatprep.mubr.f32.mxu0 0.0
        %831 = vmatmul.mubr.f32.gmra.mxu0 %v731
        %v832 = vpop.f32.mrf.mxu0
        %v833 = vadd.f32 %v680, %v832
        %v834 = vpop.f32.mrf.mxu0
        %v835 = vadd.f32 %v684, %v834
        %836 = vmatprep.mubr.f32.mxu0 0.0
        %837 = vmatmul.mubr.f32.gmra.mxu0 %v734
        %v838 = vpop.f32.mrf.mxu0
        %v839 = vadd.f32 %v680, %v838
        %v840 = vpop.f32.mrf.mxu0
        %v841 = vadd.f32 %v684, %v840
        %842 = vmatprep.mubr.f32.mxu0 0.0
        %843 = vmatmul.mubr.f32.gmra.mxu0 %v737
        %v844 = vpop.f32.mrf.mxu0
        %v845 = vadd.f32 %v680, %v844
        %v846 = vpop.f32.mrf.mxu0
        %v847 = vadd.f32 %v684, %v846
        %848 = vmatprep.mubr.f32.mxu0 0.0
        %849 = vmatmul.mubr.f32.gmra.mxu0 %v740
        %v850 = vpop.f32.mrf.mxu0
        %v851 = vadd.f32 %v680, %v850
        %v852 = vpop.f32.mrf.mxu0
        %v853 = vadd.f32 %v684, %v852
        %854 = vdwg.mxu0
        %855 = vmatprep.subr.mxu0 0.0
        %856 = vmatpush1.msra.mxu0 0.0
        %857 = vmatprep.subr.mxu0 0.0
        %858 = vmatpush1.msra.mxu0 0.0
        %859 = vmatprep.subr.mxu0 0.0
        %860 = vmatpush1.msra.mxu0 0.0
        %861 = vmatprep.subr.mxu0 0.0
        %862 = vmatpush1.msra.mxu0 0.0
        %863 = vmatprep.subr.mxu0 0.0
        %864 = vmatpush1.msra.mxu0 0.0
        %865 = vmatprep.subr.mxu0 0.0
        %866 = vmatpush1.msra.mxu0 0.0
        %867 = vmatprep.subr.mxu0 0.0
        %868 = vmatpush1.msra.mxu0 0.0
        %869 = vmatprep.subr.mxu0 0.0
        %870 = vmatpush1.msra.mxu0 0.0
        %871 = vmatprep.subr.mxu0 %v670
        %872 = vmatpush1.msra.mxu0 %v669
        %873 = vmatprep.subr.mxu0 %v662
        %874 = vmatpush1.msra.mxu0 %v661
        %875 = vmatprep.subr.mxu0 %v654
        %876 = vmatpush1.msra.mxu0 %v653
        %877 = vmatprep.subr.mxu0 %v646
        %878 = vmatpush1.msra.mxu0 %v645
        %879 = vmatprep.subr.mxu0 %v638
        %880 = vmatpush1.msra.mxu0 %v637
        %881 = vmatprep.subr.mxu0 %v630
        %882 = vmatpush1.msra.mxu0 %v629
        %883 = vmatprep.subr.mxu0 %v622
        %884 = vmatpush1.msra.mxu0 %v621
        %885 = vmatprep.subr.mxu0 %v614
        %886 = vmatpush1.msra.mxu0 %v613
        %887 = vmatprep.subr.mxu0 0.0
        %888 = vmatpush2.msra.mxu0 0.0
        %889 = vmatprep.subr.mxu0 0.0
        %890 = vmatpush2.msra.mxu0 0.0
        %891 = vmatprep.subr.mxu0 0.0
        %892 = vmatpush2.msra.mxu0 0.0
        %893 = vmatprep.subr.mxu0 0.0
        %894 = vmatpush2.msra.mxu0 0.0
        %895 = vmatprep.subr.mxu0 0.0
        %896 = vmatpush2.msra.mxu0 0.0
        %897 = vmatprep.subr.mxu0 0.0
        %898 = vmatpush2.msra.mxu0 0.0
        %899 = vmatprep.subr.mxu0 0.0
        %900 = vmatpush2.msra.mxu0 0.0
        %901 = vmatprep.subr.mxu0 0.0
        %902 = vmatpush2.msra.mxu0 0.0
        %903 = vmatprep.subr.mxu0 0.0
        %904 = vmatpush2.msra.mxu0 0.0
        %905 = vmatprep.subr.mxu0 0.0
        %906 = vmatpush2.msra.mxu0 0.0
        %907 = vmatprep.subr.mxu0 0.0
        %908 = vmatpush2.msra.mxu0 0.0
        %909 = vmatprep.subr.mxu0 0.0
        %910 = vmatpush2.msra.mxu0 0.0
        %911 = vmatprep.subr.mxu0 0.0
        %912 = vmatpush2.msra.mxu0 0.0
        %913 = vmatprep.subr.mxu0 0.0
        %914 = vmatpush2.msra.mxu0 0.0
        %915 = vmatprep.subr.mxu0 0.0
        %916 = vmatpush2.msra.mxu0 0.0
        %917 = vmatprep.subr.mxu0 0.0
        %918 = vmatpush2.msra.mxu0 0.0
        %919 = vmatprep.mubr.f32.mxu0 0.0
        %920 = vmatmul.mubr.f32.gmra.mxu0 %v719
        %v921 = vpop.f32.mrf.mxu0
        %v922 = vadd.f32 %v688, %v921
        %v923 = vpop.f32.mrf.mxu0
        %v924 = vadd.f32 %v692, %v923
        %925 = vmatprep.mubr.f32.mxu0 0.0
        %926 = vmatmul.mubr.f32.gmra.mxu0 %v722
        %v927 = vpop.f32.mrf.mxu0
        %v928 = vadd.f32 %v688, %v927
        %v929 = vpop.f32.mrf.mxu0
        %v930 = vadd.f32 %v692, %v929
        %931 = vmatprep.mubr.f32.mxu0 0.0
        %932 = vmatmul.mubr.f32.gmra.mxu0 %v725
        %v933 = vpop.f32.mrf.mxu0
        %v934 = vadd.f32 %v688, %v933
        %v935 = vpop.f32.mrf.mxu0
        %v936 = vadd.f32 %v692, %v935
        %937 = vmatprep.mubr.f32.mxu0 0.0
        %938 = vmatmul.mubr.f32.gmra.mxu0 %v728
        %v939 = vpop.f32.mrf.mxu0
        %v940 = vadd.f32 %v688, %v939
        %v941 = vpop.f32.mrf.mxu0
        %v942 = vadd.f32 %v692, %v941
        %943 = vmatprep.mubr.f32.mxu0 0.0
        %944 = vmatmul.mubr.f32.gmra.mxu0 %v731
        %v945 = vpop.f32.mrf.mxu0
        %v946 = vadd.f32 %v688, %v945
        %v947 = vpop.f32.mrf.mxu0
        %v948 = vadd.f32 %v692, %v947
        %949 = vmatprep.mubr.f32.mxu0 0.0
        %950 = vmatmul.mubr.f32.gmra.mxu0 %v734
        %v951 = vpop.f32.mrf.mxu0
        %v952 = vadd.f32 %v688, %v951
        %v953 = vpop.f32.mrf.mxu0
        %v954 = vadd.f32 %v692, %v953
        %955 = vmatprep.mubr.f32.mxu0 0.0
        %956 = vmatmul.mubr.f32.gmra.mxu0 %v737
        %v957 = vpop.f32.mrf.mxu0
        %v958 = vadd.f32 %v688, %v957
        %v959 = vpop.f32.mrf.mxu0
        %v960 = vadd.f32 %v692, %v959
        %961 = vmatprep.mubr.f32.mxu0 0.0
        %962 = vmatmul.mubr.f32.gmra.mxu0 %v740
        %v963 = vpop.f32.mrf.mxu0
        %v964 = vadd.f32 %v688, %v963
        %v965 = vpop.f32.mrf.mxu0
        %v966 = vadd.f32 %v692, %v965
        %967 = vdwg.mxu0
        %968 = vmatprep.subr.mxu0 0.0
        %969 = vmatpush1.msra.mxu0 0.0
        %970 = vmatprep.subr.mxu0 0.0
        %971 = vmatpush1.msra.mxu0 0.0
        %972 = vmatprep.subr.mxu0 0.0
        %973 = vmatpush1.msra.mxu0 0.0
        %974 = vmatprep.subr.mxu0 0.0
        %975 = vmatpush1.msra.mxu0 0.0
        %976 = vmatprep.subr.mxu0 0.0
        %977 = vmatpush1.msra.mxu0 0.0
        %978 = vmatprep.subr.mxu0 0.0
        %979 = vmatpush1.msra.mxu0 0.0
        %980 = vmatprep.subr.mxu0 0.0
        %981 = vmatpush1.msra.mxu0 0.0
        %982 = vmatprep.subr.mxu0 0.0
        %983 = vmatpush1.msra.mxu0 0.0
        %984 = vmatprep.subr.mxu0 %v672
        %985 = vmatpush1.msra.mxu0 %v671
        %986 = vmatprep.subr.mxu0 %v664
        %987 = vmatpush1.msra.mxu0 %v663
        %988 = vmatprep.subr.mxu0 %v656
        %989 = vmatpush1.msra.mxu0 %v655
        %990 = vmatprep.subr.mxu0 %v648
        %991 = vmatpush1.msra.mxu0 %v647
        %992 = vmatprep.subr.mxu0 %v640
        %993 = vmatpush1.msra.mxu0 %v639
        %994 = vmatprep.subr.mxu0 %v632
        %995 = vmatpush1.msra.mxu0 %v631
        %996 = vmatprep.subr.mxu0 %v624
        %997 = vmatpush1.msra.mxu0 %v623
        %998 = vmatprep.subr.mxu0 %v616
        %999 = vmatpush1.msra.mxu0 %v615
        %1000 = vmatprep.subr.mxu0 0.0
        %1001 = vmatpush2.msra.mxu0 0.0
        %1002 = vmatprep.subr.mxu0 0.0
        %1003 = vmatpush2.msra.mxu0 0.0
        %1004 = vmatprep.subr.mxu0 0.0
        %1005 = vmatpush2.msra.mxu0 0.0
        %1006 = vmatprep.subr.mxu0 0.0
        %1007 = vmatpush2.msra.mxu0 0.0
        %1008 = vmatprep.subr.mxu0 0.0
        %1009 = vmatpush2.msra.mxu0 0.0
        %1010 = vmatprep.subr.mxu0 0.0
        %1011 = vmatpush2.msra.mxu0 0.0
        %1012 = vmatprep.subr.mxu0 0.0
        %1013 = vmatpush2.msra.mxu0 0.0
        %1014 = vmatprep.subr.mxu0 0.0
        %1015 = vmatpush2.msra.mxu0 0.0
        %1016 = vmatprep.subr.mxu0 0.0
        %1017 = vmatpush2.msra.mxu0 0.0
        %1018 = vmatprep.subr.mxu0 0.0
        %1019 = vmatpush2.msra.mxu0 0.0
        %1020 = vmatprep.subr.mxu0 0.0
        %1021 = vmatpush2.msra.mxu0 0.0
        %1022 = vmatprep.subr.mxu0 0.0
        %1023 = vmatpush2.msra.mxu0 0.0
        %1024 = vmatprep.subr.mxu0 0.0
        %1025 = vmatpush2.msra.mxu0 0.0
        %1026 = vmatprep.subr.mxu0 0.0
        %1027 = vmatpush2.msra.mxu0 0.0
        %1028 = vmatprep.subr.mxu0 0.0
        %1029 = vmatpush2.msra.mxu0 0.0
        %1030 = vmatprep.subr.mxu0 0.0
        %1031 = vmatpush2.msra.mxu0 0.0
        %1032 = vmatprep.mubr.f32.mxu0 0.0
        %1033 = vmatmul.mubr.f32.gmra.mxu0 %v719
        %v1034 = vpop.f32.mrf.mxu0
        %v1035 = vadd.f32 %v696, %v1034
        %v1036 = vpop.f32.mrf.mxu0
        %v1037 = vadd.f32 %v700, %v1036
        %1038 = vmatprep.mubr.f32.mxu0 0.0
        %1039 = vmatmul.mubr.f32.gmra.mxu0 %v722
        %v1040 = vpop.f32.mrf.mxu0
        %v1041 = vadd.f32 %v696, %v1040
        %v1042 = vpop.f32.mrf.mxu0
        %v1043 = vadd.f32 %v700, %v1042
        %1044 = vmatprep.mubr.f32.mxu0 0.0
        %1045 = vmatmul.mubr.f32.gmra.mxu0 %v725
        %v1046 = vpop.f32.mrf.mxu0
        %v1047 = vadd.f32 %v696, %v1046
        %v1048 = vpop.f32.mrf.mxu0
        %v1049 = vadd.f32 %v700, %v1048
        %1050 = vmatprep.mubr.f32.mxu0 0.0
        %1051 = vmatmul.mubr.f32.gmra.mxu0 %v728
        %v1052 = vpop.f32.mrf.mxu0
        %v1053 = vadd.f32 %v696, %v1052
        %v1054 = vpop.f32.mrf.mxu0
        %v1055 = vadd.f32 %v700, %v1054
        %1056 = vmatprep.mubr.f32.mxu0 0.0
        %1057 = vmatmul.mubr.f32.gmra.mxu0 %v731
        %v1058 = vpop.f32.mrf.mxu0
        %v1059 = vadd.f32 %v696, %v1058
        %v1060 = vpop.f32.mrf.mxu0
        %v1061 = vadd.f32 %v700, %v1060
        %1062 = vmatprep.mubr.f32.mxu0 0.0
        %1063 = vmatmul.mubr.f32.gmra.mxu0 %v734
        %v1064 = vpop.f32.mrf.mxu0
        %v1065 = vadd.f32 %v696, %v1064
        %v1066 = vpop.f32.mrf.mxu0
        %v1067 = vadd.f32 %v700, %v1066
        %1068 = vmatprep.mubr.f32.mxu0 0.0
        %1069 = vmatmul.mubr.f32.gmra.mxu0 %v737
        %v1070 = vpop.f32.mrf.mxu0
        %v1071 = vadd.f32 %v696, %v1070
        %v1072 = vpop.f32.mrf.mxu0
        %v1073 = vadd.f32 %v700, %v1072
        %1074 = vmatprep.mubr.f32.mxu0 0.0
        %1075 = vmatmul.mubr.f32.gmra.mxu0 %v740
        %v1076 = vpop.f32.mrf.mxu0
        %v1077 = vadd.f32 %v696, %v1076
        %v1078 = vpop.f32.mrf.mxu0
        %v1079 = vadd.f32 %v700, %v1078
        %1080 = vdwg.mxu0
        %1081 = vmatprep.subr.mxu0 0.0
        %1082 = vmatpush1.msra.mxu0 0.0
        %1083 = vmatprep.subr.mxu0 0.0
        %1084 = vmatpush1.msra.mxu0 0.0
        %1085 = vmatprep.subr.mxu0 0.0
        %1086 = vmatpush1.msra.mxu0 0.0
        %1087 = vmatprep.subr.mxu0 0.0
        %1088 = vmatpush1.msra.mxu0 0.0
        %1089 = vmatprep.subr.mxu0 0.0
        %1090 = vmatpush1.msra.mxu0 0.0
        %1091 = vmatprep.subr.mxu0 0.0
        %1092 = vmatpush1.msra.mxu0 0.0
        %1093 = vmatprep.subr.mxu0 0.0
        %1094 = vmatpush1.msra.mxu0 0.0
        %1095 = vmatprep.subr.mxu0 0.0
        %1096 = vmatpush1.msra.mxu0 0.0
        %1097 = vmatprep.subr.mxu0 %v674
        %1098 = vmatpush1.msra.mxu0 %v673
        %1099 = vmatprep.subr.mxu0 %v666
        %1100 = vmatpush1.msra.mxu0 %v665
        %1101 = vmatprep.subr.mxu0 %v658
        %1102 = vmatpush1.msra.mxu0 %v657
        %1103 = vmatprep.subr.mxu0 %v650
        %1104 = vmatpush1.msra.mxu0 %v649
        %1105 = vmatprep.subr.mxu0 %v642
        %1106 = vmatpush1.msra.mxu0 %v641
        %1107 = vmatprep.subr.mxu0 %v634
        %1108 = vmatpush1.msra.mxu0 %v633
        %1109 = vmatprep.subr.mxu0 %v626
        %1110 = vmatpush1.msra.mxu0 %v625
        %1111 = vmatprep.subr.mxu0 %v618
        %1112 = vmatpush1.msra.mxu0 %v617
        %1113 = vmatprep.subr.mxu0 0.0
        %1114 = vmatpush2.msra.mxu0 0.0
        %1115 = vmatprep.subr.mxu0 0.0
        %1116 = vmatpush2.msra.mxu0 0.0
        %1117 = vmatprep.subr.mxu0 0.0
        %1118 = vmatpush2.msra.mxu0 0.0
        %1119 = vmatprep.subr.mxu0 0.0
        %1120 = vmatpush2.msra.mxu0 0.0
        %1121 = vmatprep.subr.mxu0 0.0
        %1122 = vmatpush2.msra.mxu0 0.0
        %1123 = vmatprep.subr.mxu0 0.0
        %1124 = vmatpush2.msra.mxu0 0.0
        %1125 = vmatprep.subr.mxu0 0.0
        %1126 = vmatpush2.msra.mxu0 0.0
        %1127 = vmatprep.subr.mxu0 0.0
        %1128 = vmatpush2.msra.mxu0 0.0
        %1129 = vmatprep.subr.mxu0 0.0
        %1130 = vmatpush2.msra.mxu0 0.0
        %1131 = vmatprep.subr.mxu0 0.0
        %1132 = vmatpush2.msra.mxu0 0.0
        %1133 = vmatprep.subr.mxu0 0.0
        %1134 = vmatpush2.msra.mxu0 0.0
        %1135 = vmatprep.subr.mxu0 0.0
        %1136 = vmatpush2.msra.mxu0 0.0
        %1137 = vmatprep.subr.mxu0 0.0
        %1138 = vmatpush2.msra.mxu0 0.0
        %1139 = vmatprep.subr.mxu0 0.0
        %1140 = vmatpush2.msra.mxu0 0.0
        %1141 = vmatprep.subr.mxu0 0.0
        %1142 = vmatpush2.msra.mxu0 0.0
        %1143 = vmatprep.subr.mxu0 0.0
        %1144 = vmatpush2.msra.mxu0 0.0
        %1145 = vmatprep.mubr.f32.mxu0 0.0
        %1146 = vmatmul.mubr.f32.gmra.mxu0 %v719
        %v1147 = vpop.f32.mrf.mxu0
        %v1148 = vadd.f32 %v704, %v1147
        %v1149 = vpop.f32.mrf.mxu0
        %v1150 = vadd.f32 %v708, %v1149
        %1151 = vmatprep.mubr.f32.mxu0 0.0
        %1152 = vmatmul.mubr.f32.gmra.mxu0 %v722
        %v1153 = vpop.f32.mrf.mxu0
        %v1154 = vadd.f32 %v704, %v1153
        %v1155 = vpop.f32.mrf.mxu0
        %v1156 = vadd.f32 %v708, %v1155
        %1157 = vmatprep.mubr.f32.mxu0 0.0
        %1158 = vmatmul.mubr.f32.gmra.mxu0 %v725
        %v1159 = vpop.f32.mrf.mxu0
        %v1160 = vadd.f32 %v704, %v1159
        %v1161 = vpop.f32.mrf.mxu0
        %v1162 = vadd.f32 %v708, %v1161
        %1163 = vmatprep.mubr.f32.mxu0 0.0
        %1164 = vmatmul.mubr.f32.gmra.mxu0 %v728
        %v1165 = vpop.f32.mrf.mxu0
        %v1166 = vadd.f32 %v704, %v1165
        %v1167 = vpop.f32.mrf.mxu0
        %v1168 = vadd.f32 %v708, %v1167
        %1169 = vmatprep.mubr.f32.mxu0 0.0
        %1170 = vmatmul.mubr.f32.gmra.mxu0 %v731
        %v1171 = vpop.f32.mrf.mxu0
        %v1172 = vadd.f32 %v704, %v1171
        %v1173 = vpop.f32.mrf.mxu0
        %v1174 = vadd.f32 %v708, %v1173
        %1175 = vmatprep.mubr.f32.mxu0 0.0
        %1176 = vmatmul.mubr.f32.gmra.mxu0 %v734
        %v1177 = vpop.f32.mrf.mxu0
        %v1178 = vadd.f32 %v704, %v1177
        %v1179 = vpop.f32.mrf.mxu0
        %v1180 = vadd.f32 %v708, %v1179
        %1181 = vmatprep.mubr.f32.mxu0 0.0
        %1182 = vmatmul.mubr.f32.gmra.mxu0 %v737
        %v1183 = vpop.f32.mrf.mxu0
        %v1184 = vadd.f32 %v704, %v1183
        %v1185 = vpop.f32.mrf.mxu0
        %v1186 = vadd.f32 %v708, %v1185
        %1187 = vmatprep.mubr.f32.mxu0 0.0
        %1188 = vmatmul.mubr.f32.gmra.mxu0 %v740
        %v1189 = vpop.f32.mrf.mxu0
        %v1190 = vadd.f32 %v704, %v1189
        %v1191 = vpop.f32.mrf.mxu0
        %v1192 = vadd.f32 %v708, %v1191
        %1193 = vdwg.mxu0
        %v1194 = vsel %vm438, 1, 0
        %v1195 = vsel %vm439, 1, 0
        %v1196 = vsel %vm440, 1, 0
        %v1197 = vsel %vm441, 1, 0
        %v1198 = vsel %vm442, 1, 0
        %v1199 = vsel %vm443, 1, 0
        %v1200 = vsel %vm444, 1, 0
        %v1201 = vsel %vm445, 1, 0
        %vm1202 = vcmp.eq.s32.totalorder %v1194, 1
        %vm1203 = vcmp.eq.s32.totalorder %v1195, 1
        %vm1204 = vcmp.eq.s32.totalorder %v1196, 1
        %vm1205 = vcmp.eq.s32.totalorder %v1197, 1
        %vm1206 = vcmp.eq.s32.totalorder %v1198, 1
        %vm1207 = vcmp.eq.s32.totalorder %v1199, 1
        %vm1208 = vcmp.eq.s32.totalorder %v1200, 1
        %vm1209 = vcmp.eq.s32.totalorder %v1201, 1
        %v1210 = vsel %vm1202, %v809, -3.4028235e+38
        %v1211 = vsel %vm1202, %v811, -3.4028235e+38
        %v1212 = vsel %vm1202, %v922, -3.4028235e+38
        %v1213 = vsel %vm1202, %v924, -3.4028235e+38
        %v1214 = vsel %vm1202, %v1035, -3.4028235e+38
        %v1215 = vsel %vm1202, %v1037, -3.4028235e+38
        %v1216 = vsel %vm1202, %v1148, -3.4028235e+38
        %v1217 = vsel %vm1202, %v1150, -3.4028235e+38
        %v1218 = vsel %vm1203, %v815, -3.4028235e+38
        %v1219 = vsel %vm1203, %v817, -3.4028235e+38
        %v1220 = vsel %vm1203, %v928, -3.4028235e+38
        %v1221 = vsel %vm1203, %v930, -3.4028235e+38
        %v1222 = vsel %vm1203, %v1041, -3.4028235e+38
        %v1223 = vsel %vm1203, %v1043, -3.4028235e+38
        %v1224 = vsel %vm1203, %v1154, -3.4028235e+38
        %v1225 = vsel %vm1203, %v1156, -3.4028235e+38
        %v1226 = vsel %vm1204, %v821, -3.4028235e+38
        %v1227 = vsel %vm1204, %v823, -3.4028235e+38
        %v1228 = vsel %vm1204, %v934, -3.4028235e+38
        %v1229 = vsel %vm1204, %v936, -3.4028235e+38
        %v1230 = vsel %vm1204, %v1047, -3.4028235e+38
        %v1231 = vsel %vm1204, %v1049, -3.4028235e+38
        %v1232 = vsel %vm1204, %v1160, -3.4028235e+38
        %v1233 = vsel %vm1204, %v1162, -3.4028235e+38
        %v1234 = vsel %vm1205, %v827, -3.4028235e+38
        %v1235 = vsel %vm1205, %v829, -3.4028235e+38
        %v1236 = vsel %vm1205, %v940, -3.4028235e+38
        %v1237 = vsel %vm1205, %v942, -3.4028235e+38
        %v1238 = vsel %vm1205, %v1053, -3.4028235e+38
        %v1239 = vsel %vm1205, %v1055, -3.4028235e+38
        %v1240 = vsel %vm1205, %v1166, -3.4028235e+38
        %v1241 = vsel %vm1205, %v1168, -3.4028235e+38
        %v1242 = vsel %vm1206, %v833, -3.4028235e+38
        %v1243 = vsel %vm1206, %v835, -3.4028235e+38
        %v1244 = vsel %vm1206, %v946, -3.4028235e+38
        %v1245 = vsel %vm1206, %v948, -3.4028235e+38
        %v1246 = vsel %vm1206, %v1059, -3.4028235e+38
        %v1247 = vsel %vm1206, %v1061, -3.4028235e+38
        %v1248 = vsel %vm1206, %v1172, -3.4028235e+38
        %v1249 = vsel %vm1206, %v1174, -3.4028235e+38
        %v1250 = vsel %vm1207, %v839, -3.4028235e+38
        %v1251 = vsel %vm1207, %v841, -3.4028235e+38
        %v1252 = vsel %vm1207, %v952, -3.4028235e+38
        %v1253 = vsel %vm1207, %v954, -3.4028235e+38
        %v1254 = vsel %vm1207, %v1065, -3.4028235e+38
        %v1255 = vsel %vm1207, %v1067, -3.4028235e+38
        %v1256 = vsel %vm1207, %v1178, -3.4028235e+38
        %v1257 = vsel %vm1207, %v1180, -3.4028235e+38
        %v1258 = vsel %vm1208, %v845, -3.4028235e+38
        %v1259 = vsel %vm1208, %v847, -3.4028235e+38
        %v1260 = vsel %vm1208, %v958, -3.4028235e+38
        %v1261 = vsel %vm1208, %v960, -3.4028235e+38
        %v1262 = vsel %vm1208, %v1071, -3.4028235e+38
        %v1263 = vsel %vm1208, %v1073, -3.4028235e+38
        %v1264 = vsel %vm1208, %v1184, -3.4028235e+38
        %v1265 = vsel %vm1208, %v1186, -3.4028235e+38
        %v1266 = vsel %vm1209, %v851, -3.4028235e+38
        %v1267 = vsel %vm1209, %v853, -3.4028235e+38
        %v1268 = vsel %vm1209, %v964, -3.4028235e+38
        %v1269 = vsel %vm1209, %v966, -3.4028235e+38
        %v1270 = vsel %vm1209, %v1077, -3.4028235e+38
        %v1271 = vsel %vm1209, %v1079, -3.4028235e+38
        %v1272 = vsel %vm1209, %v1190, -3.4028235e+38
        %v1273 = vsel %vm1209, %v1192, -3.4028235e+38
        %v1274 = vld [vmem:[#allocation2] sm:$0xff]
        %v1275 = vld [vmem:[#allocation2 + $0x8] sm:$0xff]
        %v1276 = vmax.f32 %v1210, %v1218
        %v1277 = vmax.f32 %v1276, %v1226
        %v1278 = vmax.f32 %v1277, %v1234
        %v1279 = vrot.slane %v1278, 4
        %v1280 = vmax.f32 %v1278, %v1279
        %v1281 = vrot.slane %v1280, 2
        %v1282 = vmax.f32 %v1280, %v1281
        %v1283 = vrot.slane %v1282, 1
        %v1284 = vmax.f32 %v1282, %v1283
        %v1285 = vmax.f32 %v1211, %v1219
        %v1286 = vmax.f32 %v1285, %v1227
        %v1287 = vmax.f32 %v1286, %v1235
        %v1288 = vrot.slane %v1287, 4
        %v1289 = vmax.f32 %v1287, %v1288
        %v1290 = vrot.slane %v1289, 2
        %v1291 = vmax.f32 %v1289, %v1290
        %v1292 = vrot.slane %v1291, 1
        %v1293 = vmax.f32 %v1291, %v1292
        %v1294 = vmax.f32 %v1212, %v1220
        %v1295 = vmax.f32 %v1294, %v1228
        %v1296 = vmax.f32 %v1295, %v1236
        %v1297 = vrot.slane %v1296, 4
        %v1298 = vmax.f32 %v1296, %v1297
        %v1299 = vrot.slane %v1298, 2
        %v1300 = vmax.f32 %v1298, %v1299
        %v1301 = vrot.slane %v1300, 1
        %v1302 = vmax.f32 %v1300, %v1301
        %v1303 = vmax.f32 %v1213, %v1221
        %v1304 = vmax.f32 %v1303, %v1229
        %v1305 = vmax.f32 %v1304, %v1237
        %v1306 = vrot.slane %v1305, 4
        %v1307 = vmax.f32 %v1305, %v1306
        %v1308 = vrot.slane %v1307, 2
        %v1309 = vmax.f32 %v1307, %v1308
        %v1310 = vrot.slane %v1309, 1
        %v1311 = vmax.f32 %v1309, %v1310
        %v1312 = vmax.f32 %v1214, %v1222
        %v1313 = vmax.f32 %v1312, %v1230
        %v1314 = vmax.f32 %v1313, %v1238
        %v1315 = vrot.slane %v1314, 4
        %v1316 = vmax.f32 %v1314, %v1315
        %v1317 = vrot.slane %v1316, 2
        %v1318 = vmax.f32 %v1316, %v1317
        %v1319 = vrot.slane %v1318, 1
        %v1320 = vmax.f32 %v1318, %v1319
        %v1321 = vmax.f32 %v1215, %v1223
        %v1322 = vmax.f32 %v1321, %v1231
        %v1323 = vmax.f32 %v1322, %v1239
        %v1324 = vrot.slane %v1323, 4
        %v1325 = vmax.f32 %v1323, %v1324
        %v1326 = vrot.slane %v1325, 2
        %v1327 = vmax.f32 %v1325, %v1326
        %v1328 = vrot.slane %v1327, 1
        %v1329 = vmax.f32 %v1327, %v1328
        %v1330 = vmax.f32 %v1216, %v1224
        %v1331 = vmax.f32 %v1330, %v1232
        %v1332 = vmax.f32 %v1331, %v1240
        %v1333 = vrot.slane %v1332, 4
        %v1334 = vmax.f32 %v1332, %v1333
        %v1335 = vrot.slane %v1334, 2
        %v1336 = vmax.f32 %v1334, %v1335
        %v1337 = vrot.slane %v1336, 1
        %v1338 = vmax.f32 %v1336, %v1337
        %v1339 = vmax.f32 %v1217, %v1225
        %v1340 = vmax.f32 %v1339, %v1233
        %v1341 = vmax.f32 %v1340, %v1241
        %v1342 = vrot.slane %v1341, 4
        %v1343 = vmax.f32 %v1341, %v1342
        %v1344 = vrot.slane %v1343, 2
        %v1345 = vmax.f32 %v1343, %v1344
        %v1346 = vrot.slane %v1345, 1
        %v1347 = vmax.f32 %v1345, %v1346
        %v1348 = vmax.f32 %v1242, %v1250
        %v1349 = vmax.f32 %v1348, %v1258
        %v1350 = vmax.f32 %v1349, %v1266
        %v1351 = vrot.slane %v1350, 4
        %v1352 = vmax.f32 %v1350, %v1351
        %v1353 = vrot.slane %v1352, 2
        %v1354 = vmax.f32 %v1352, %v1353
        %v1355 = vrot.slane %v1354, 1
        %v1356 = vmax.f32 %v1354, %v1355
        %v1357 = vmax.f32 %v1243, %v1251
        %v1358 = vmax.f32 %v1357, %v1259
        %v1359 = vmax.f32 %v1358, %v1267
        %v1360 = vrot.slane %v1359, 4
        %v1361 = vmax.f32 %v1359, %v1360
        %v1362 = vrot.slane %v1361, 2
        %v1363 = vmax.f32 %v1361, %v1362
        %v1364 = vrot.slane %v1363, 1
        %v1365 = vmax.f32 %v1363, %v1364
        %v1366 = vmax.f32 %v1244, %v1252
        %v1367 = vmax.f32 %v1366, %v1260
        %v1368 = vmax.f32 %v1367, %v1268
        %v1369 = vrot.slane %v1368, 4
        %v1370 = vmax.f32 %v1368, %v1369
        %v1371 = vrot.slane %v1370, 2
        %v1372 = vmax.f32 %v1370, %v1371
        %v1373 = vrot.slane %v1372, 1
        %v1374 = vmax.f32 %v1372, %v1373
        %v1375 = vmax.f32 %v1245, %v1253
        %v1376 = vmax.f32 %v1375, %v1261
        %v1377 = vmax.f32 %v1376, %v1269
        %v1378 = vrot.slane %v1377, 4
        %v1379 = vmax.f32 %v1377, %v1378
        %v1380 = vrot.slane %v1379, 2
        %v1381 = vmax.f32 %v1379, %v1380
        %v1382 = vrot.slane %v1381, 1
        %v1383 = vmax.f32 %v1381, %v1382
        %v1384 = vmax.f32 %v1246, %v1254
        %v1385 = vmax.f32 %v1384, %v1262
        %v1386 = vmax.f32 %v1385, %v1270
        %v1387 = vrot.slane %v1386, 4
        %v1388 = vmax.f32 %v1386, %v1387
        %v1389 = vrot.slane %v1388, 2
        %v1390 = vmax.f32 %v1388, %v1389
        %v1391 = vrot.slane %v1390, 1
        %v1392 = vmax.f32 %v1390, %v1391
        %v1393 = vmax.f32 %v1247, %v1255
        %v1394 = vmax.f32 %v1393, %v1263
        %v1395 = vmax.f32 %v1394, %v1271
        %v1396 = vrot.slane %v1395, 4
        %v1397 = vmax.f32 %v1395, %v1396
        %v1398 = vrot.slane %v1397, 2
        %v1399 = vmax.f32 %v1397, %v1398
        %v1400 = vrot.slane %v1399, 1
        %v1401 = vmax.f32 %v1399, %v1400
        %v1402 = vmax.f32 %v1248, %v1256
        %v1403 = vmax.f32 %v1402, %v1264
        %v1404 = vmax.f32 %v1403, %v1272
        %v1405 = vrot.slane %v1404, 4
        %v1406 = vmax.f32 %v1404, %v1405
        %v1407 = vrot.slane %v1406, 2
        %v1408 = vmax.f32 %v1406, %v1407
        %v1409 = vrot.slane %v1408, 1
        %v1410 = vmax.f32 %v1408, %v1409
        %v1411 = vmax.f32 %v1249, %v1257
        %v1412 = vmax.f32 %v1411, %v1265
        %v1413 = vmax.f32 %v1412, %v1273
        %v1414 = vrot.slane %v1413, 4
        %v1415 = vmax.f32 %v1413, %v1414
        %v1416 = vrot.slane %v1415, 2
        %v1417 = vmax.f32 %v1415, %v1416
        %v1418 = vrot.slane %v1417, 1
        %v1419 = vmax.f32 %v1417, %v1418
        %v1436 = vcombine.low %v1284, %v1293
        %v1437 = vcombine.low %v1302, %v1311
        %v1439 = vunpack.c.l.s4 1983009808
        %v1440 = vunpack.c.0.s8 %v1439
        %v1441 = vlaneseq
        %v1442 = vshrl.u32 %v1441, 7
        %v1443 = vsub.s32 %v1440, %v1442
        %v1444 = vrot.slane %v1436, %v1443
        %v1446 = vunpack.c.l.s4 1983009808
        %v1447 = vunpack.c.0.s8 %v1446
        %v1448 = vlaneseq
        %v1449 = vshrl.u32 %v1448, 7
        %v1450 = vsub.s32 %v1447, %v1449
        %v1451 = vrot.slane %v1437, %v1450
        %v1452 = vcombine.low %v1444, %v1451
        %v1453 = vcombine.low %v1320, %v1329
        %v1454 = vcombine.low %v1338, %v1347
        %v1456 = vunpack.c.l.s4 1983009808
        %v1457 = vunpack.c.0.s8 %v1456
        %v1458 = vlaneseq
        %v1459 = vshrl.u32 %v1458, 7
        %v1460 = vsub.s32 %v1457, %v1459
        %v1461 = vrot.slane %v1453, %v1460
        %v1463 = vunpack.c.l.s4 1983009808
        %v1464 = vunpack.c.0.s8 %v1463
        %v1465 = vlaneseq
        %v1466 = vshrl.u32 %v1465, 7
        %v1467 = vsub.s32 %v1464, %v1466
        %v1468 = vrot.slane %v1454, %v1467
        %v1469 = vcombine.low %v1461, %v1468
        %v1470 = vcombine.low %v1356, %v1365
        %v1471 = vcombine.low %v1374, %v1383
        %v1473 = vunpack.c.l.s4 1983009808
        %v1474 = vunpack.c.0.s8 %v1473
        %v1475 = vlaneseq
        %v1476 = vshrl.u32 %v1475, 7
        %v1477 = vsub.s32 %v1474, %v1476
        %v1478 = vrot.slane %v1470, %v1477
        %v1480 = vunpack.c.l.s4 1983009808
        %v1481 = vunpack.c.0.s8 %v1480
        %v1482 = vlaneseq
        %v1483 = vshrl.u32 %v1482, 7
        %v1484 = vsub.s32 %v1481, %v1483
        %v1485 = vrot.slane %v1471, %v1484
        %v1486 = vcombine.low %v1478, %v1485
        %v1487 = vcombine.low %v1392, %v1401
        %v1488 = vcombine.low %v1410, %v1419
        %v1490 = vunpack.c.l.s4 1983009808
        %v1491 = vunpack.c.0.s8 %v1490
        %v1492 = vlaneseq
        %v1493 = vshrl.u32 %v1492, 7
        %v1494 = vsub.s32 %v1491, %v1493
        %v1495 = vrot.slane %v1487, %v1494
        %v1497 = vunpack.c.l.s4 1983009808
        %v1498 = vunpack.c.0.s8 %v1497
        %v1499 = vlaneseq
        %v1500 = vshrl.u32 %v1499, 7
        %v1501 = vsub.s32 %v1498, %v1500
        %v1502 = vrot.slane %v1488, %v1501
        %v1503 = vcombine.low %v1495, %v1502
        %vm1504 = vcmask 1044484
        %v1505 = vsel %vm1504, %v1452, %v1452
        %vm1506 = vcmask 1046534
        %v1507 = vsel %vm1506, %v1452, %v1505
        %v1508 = vrot.slane %v1486, 7
        %vm1509 = vcmask 1041409
        %v1510 = vsel %vm1509, %v1508, %v1507
        %vm1511 = vcmask 1043459
        %v1512 = vsel %vm1511, %v1508, %v1510
        %vm1513 = vcmask 1045509
        %v1514 = vsel %vm1513, %v1508, %v1512
        %vm1515 = vcmask 1047559
        %v1516 = vsel %vm1515, %v1508, %v1514
        %v1517 = vsel %vm1504, %v1469, %v1469
        %v1518 = vsel %vm1506, %v1469, %v1517
        %v1519 = vrot.slane %v1503, 7
        %v1520 = vsel %vm1509, %v1519, %v1518
        %v1521 = vsel %vm1511, %v1519, %v1520
        %v1522 = vsel %vm1513, %v1519, %v1521
        %v1523 = vsel %vm1515, %v1519, %v1522
        %v1526 = vmax.f32 %v1274, %v1516
        %v1527 = vmax.f32 %v1275, %v1523
        %1528 = vst [vmem:[#allocation2] sm:$0xff] %v1526
        %1529 = vst [vmem:[#allocation2 + $0x8] sm:$0xff] %v1527
        %v1530 = vld [vmem:[#allocation3] sm:$0x3]
        %v1531 = vcvt.s32.f32 %v1194
        %v1532 = vcvt.s32.f32 %v1195
        %v1533 = vcvt.s32.f32 %v1196
        %v1534 = vcvt.s32.f32 %v1197
        %v1535 = vcvt.s32.f32 %v1198
        %v1536 = vcvt.s32.f32 %v1199
        %v1537 = vcvt.s32.f32 %v1200
        %v1538 = vcvt.s32.f32 %v1201
        %v1539 = vmax.f32 %v1531, %v1533
        %v1540 = vmax.f32 %v1532, %v1534
        %v1541 = vmax.f32 %v1539, %v1540
        %v1542 = vrot.slane %v1541, 4
        %v1543 = vmax.f32 %v1541, %v1542
        %v1544 = vrot.slane %v1543, 2
        %v1545 = vmax.f32 %v1543, %v1544
        %v1546 = vrot.slane %v1545, 1
        %v1547 = vmax.f32 %v1545, %v1546
        %v1548 = vmax.f32 %v1535, %v1537
        %v1549 = vmax.f32 %v1536, %v1538
        %v1550 = vmax.f32 %v1548, %v1549
        %v1551 = vrot.slane %v1550, 4
        %v1552 = vmax.f32 %v1550, %v1551
        %v1553 = vrot.slane %v1552, 2
        %v1554 = vmax.f32 %v1552, %v1553
        %v1555 = vrot.slane %v1554, 1
        %v1556 = vmax.f32 %v1554, %v1555
        %v1559 = vsel %vm1509, %v1556, %v1547
        %v1561 = vmax.f32 %v1530, %v1559
        %vm1562 = vcmask 1024
        %1563 = vst.msk [vmem:[#allocation3] sm:$0x3] %vm1562, %v1561
        %p1564 = scmp.eq.s32.totalorder %s24, 2
        // Predicated region
        $region99: #{point_gaussian_policy_forward.2} parent=77 // pred_check
          %p1565 = pneg %p1564
        $region100: #{point_gaussian_policy_forward.2} parent=77 // pred_check_branch
          %1567 = sbr.rel (%p1565) target = $region102
        $region101: #{point_gaussian_policy_forward.2} parent=77 // pred_region
          %v1568 = vld [vmem:[#allocation3] sm:$0x3]
          %vm1569 = vcmp.gt.f32.partialorder %v1568, 0.0
          %v1570 = vld [vmem:[#allocation2] sm:$0xff]
          %v1571 = vld [vmem:[#allocation2 + $0x8] sm:$0xff]
          %v1572 = vsel %vm1569, 1, 0
          %1573 = vset.pattern.permute.xlu0 0
          %1574 = vperm.xlu0 %1573, %v1572
          %v1575 = vpop.permute.xlu0 %1574
          %vm1576 = vcmp.eq.s32.totalorder %v1575, 1
          %v1579 = vcombine.high %v1570, %v1570
          %v1581 = vunpack.c.l.s4 1983009808
          %v1582 = vunpack.c.0.s8 %v1581
          %v1583 = vlaneseq
          %v1584 = vshrl.u32 %v1583, 7
          %v1585 = vsub.s32 %v1582, %v1584
          %v1586 = vrot.slane %v1570, %v1585
          %v1588 = vunpack.c.l.s4 1983009808
          %v1589 = vunpack.c.0.s8 %v1588
          %v1590 = vlaneseq
          %v1591 = vshrl.u32 %v1590, 7
          %v1592 = vsub.s32 %v1589, %v1591
          %v1593 = vrot.slane %v1579, %v1592
          %v1594 = vcombine.high %v1586, %v1586
          %v1595 = vcombine.high %v1593, %v1593
          %v1596 = vcombine.high %v1571, %v1571
          %v1598 = vunpack.c.l.s4 1983009808
          %v1599 = vunpack.c.0.s8 %v1598
          %v1600 = vlaneseq
          %v1601 = vshrl.u32 %v1600, 7
          %v1602 = vsub.s32 %v1599, %v1601
          %v1603 = vrot.slane %v1571, %v1602
          %v1605 = vunpack.c.l.s4 1983009808
          %v1606 = vunpack.c.0.s8 %v1605
          %v1607 = vlaneseq
          %v1608 = vshrl.u32 %v1607, 7
          %v1609 = vsub.s32 %v1606, %v1608
          %v1610 = vrot.slane %v1596, %v1609
          %v1611 = vcombine.high %v1603, %v1603
          %v1612 = vcombine.high %v1610, %v1610
          %v1621 = vsel %vm1576, %v1586, 0.0
          %v1622 = vsel %vm1576, %v1594, 0.0
          %v1623 = vsel %vm1576, %v1593, 0.0
          %v1624 = vsel %vm1576, %v1595, 0.0
          %v1625 = vsel %vm1576, %v1603, 0.0
          %v1626 = vsel %vm1576, %v1611, 0.0
          %v1627 = vsel %vm1576, %v1610, 0.0
          %v1628 = vsel %vm1576, %v1612, 0.0
          %v1637 = vcombine.low %v1621, %v1622
          %v1638 = vcombine.low %v1623, %v1624
          %v1640 = vunpack.c.l.s4 1983009808
          %v1641 = vunpack.c.0.s8 %v1640
          %v1642 = vlaneseq
          %v1643 = vshrl.u32 %v1642, 7
          %v1644 = vsub.s32 %v1641, %v1643
          %v1645 = vrot.slane %v1637, %v1644
          %v1647 = vunpack.c.l.s4 1983009808
          %v1648 = vunpack.c.0.s8 %v1647
          %v1649 = vlaneseq
          %v1650 = vshrl.u32 %v1649, 7
          %v1651 = vsub.s32 %v1648, %v1650
          %v1652 = vrot.slane %v1638, %v1651
          %v1653 = vcombine.low %v1645, %v1652
          %v1654 = vcombine.low %v1625, %v1626
          %v1655 = vcombine.low %v1627, %v1628
          %v1657 = vunpack.c.l.s4 1983009808
          %v1658 = vunpack.c.0.s8 %v1657
          %v1659 = vlaneseq
          %v1660 = vshrl.u32 %v1659, 7
          %v1661 = vsub.s32 %v1658, %v1660
          %v1662 = vrot.slane %v1654, %v1661
          %v1664 = vunpack.c.l.s4 1983009808
          %v1665 = vunpack.c.0.s8 %v1664
          %v1666 = vlaneseq
          %v1667 = vshrl.u32 %v1666, 7
          %v1668 = vsub.s32 %v1665, %v1667
          %v1669 = vrot.slane %v1655, %v1668
          %v1670 = vcombine.low %v1662, %v1669
          %1673 = vst [vmem:[%s396] sm:$0xff] %v1653
          %1674 = vst [vmem:[%s396 + $0x8] sm:$0xff] %v1670
        $region102: #{point_gaussian_policy_forward.2} parent=77 // pred_fallthru
          _
        %p1675 = scmp.lt.s32.totalorder %s23, 0
        %s1676 = scalar_select %p1675, %s23, 0
        %s1677 = smul.addr %s1676, 8
        %s1678 = smul.addr %s1677, 2
        %s1679 = scalar_lea.vmem %s6, %s1678
        // Predicated region
        $region103: #{point_gaussian_policy_forward.2} parent=77 // pred_check
          %p1680 = pneg %p187
        $region104: #{point_gaussian_policy_forward.2} parent=77 // pred_check_branch
          %1682 = sbr.rel (%p1680) target = $region106
        $region105: #{point_gaussian_policy_forward.2} parent=77 // pred_region
          _
        $region106: #{point_gaussian_policy_forward.2} parent=77 // pred_fallthru
          _
        // Predicated region
        $region107: #{point_gaussian_policy_forward.2} parent=77 // pred_check
          %p1683 = pneg %p187
        $region108: #{point_gaussian_policy_forward.2} parent=77 // pred_check_branch
          %1685 = sbr.rel (%p1683) target = $region110
        $region109: #{point_gaussian_policy_forward.2} parent=77 // pred_region
          %p1686 = scmp.lt.s32.totalorder %s23, 0
          %s1687 = scalar_select %p1686, %s23, 0
          %s1688 = smul.addr %s1687, 8
          %s1689 = smul.addr %s1688, 2
          %s1690 = scalar_lea.vmem %s6, %s1689
        $region110: #{point_gaussian_policy_forward.2} parent=77 // pred_fallthru
          _
      $region78: #{point_gaussian_policy_forward.2} parent=5 // pred_fallthru
        _
      %p1691 = scmp.le.s32.totalorder 2, %s14
      // Predicated region
      $region111: #{point_gaussian_policy_forward.2} parent=5 // pred_check
        %p1692 = pneg %p1691
      $region112: #{point_gaussian_policy_forward.2} parent=5 // pred_check_branch
        %1694 = sbr.rel (%p1692) target = $region114
      $region113: #{point_gaussian_policy_forward.2} parent=5 // pred_region
        %s1695 = ssub.s32 %s14, 2
      $region114: #{point_gaussian_policy_forward.2} parent=5 // pred_fallthru
        _
    $region6: #{point_gaussian_policy_forward.2} parent=1 // loop_footer
      %s18 = sadd.s32 1, %s14
    $region7: #{point_gaussian_policy_forward.2} parent=1 // loop_footer_branch
      %13 = sbr.rel target = $region3
    $region8: #{point_gaussian_policy_forward.2} parent=1 // loop_exit
      _
    %1696 = vsyncpa [#allocation6], 1
    %s1697 = scalar_lea.sflag [#allocation6], 1
    %1698 = vsyncpa %s1697, 1
    %1699 = vsyncpa [#allocation8], 1

// kernel: point_gaussian_policy_forward.3
$region0: #{point_gaussian_policy_forward.3}
  #allocation0 [shape = 'u32[]', space=smem, size = 0x4, offset = 0x4, fixed_abs, tag = 'smem constant byte address 0x4 - core index']
  #allocation1 [shape = 'u32[144,128]{1,0:T(1,128)}', space=vmem, size = 0x12000, scoped, tag = 'internal scratch']
  %s0 = inlined_call_operand.vmem [shape: f32[2,1024], index: 0, kind: input, shape index: {}]
  %s1 = inlined_call_operand.vmem [shape: f32[1024,256], index: 1, kind: input, shape index: {}]
  %s2 = inlined_call_operand.vmem [shape: f32[1,256], index: 2, kind: input, shape index: {}]
  %s3 = inlined_call_operand.hbm [shape: f32[256,256], index: 3, kind: input, shape index: {}]
  %s4 = inlined_call_operand.vmem [shape: f32[1,256], index: 4, kind: input, shape index: {}]
  %s5 = inlined_call_operand.vmem [shape: f32[256,8], index: 5, kind: input, shape index: {}]
  %s6 = inlined_call_operand.vmem [shape: f32[1,8], index: 6, kind: input, shape index: {}]
  %s7 = inlined_call_operand.vmem [shape: f32[256,8], index: 7, kind: input, shape index: {}]
  %s8 = inlined_call_operand.vmem [shape: f32[1,8], index: 8, kind: input, shape index: {}]
  %s9 = inlined_call_operand.hbm [shape: f32[2,8], index: 9, kind: output, shape index: {0}]
  %s10 = inlined_call_operand.hbm [shape: f32[2,8], index: 10, kind: output, shape index: {1}]
  %11 = xla_tuple %s9, %s10
  %s12 = sld [smem:[#allocation0]]
  $region58: #{point_gaussian_policy_forward.3} parent=0
    _
  %s14 = ssub.s32 1, %s12
  %s15 = scalar_select 0, %s14, %s12
  $region1: #{point_gaussian_policy_forward.3} parent=0
    #allocation2 [shape = 'u8[262144]{0}', space=vmem, size = 0x40000, scoped, tag = 'input window, operand 3, single buffered']
    #allocation3 [shape = 's32[1]{0}', space=sflag, size = 0x4, scoped, tag = 'scoped memory for point_gaussian_policy_forward.3']
    #allocation4 [shape = 's32[1]{0}', space=sflag, size = 0x4, scoped, tag = 'scoped memory for point_gaussian_policy_forward.3']
    #allocation5 [shape = 'u8[1024]{0}', space=vmem, size = 0x400, scoped, tag = 'output window, operand 0, single buffered']
    #allocation6 [shape = 'u8[1024]{0}', space=vmem, size = 0x400, scoped, tag = 'output window, operand 1, single buffered']
    #allocation7 [shape = 's32[1]{0}', space=sflag, size = 0x4, scoped, tag = 'scoped memory for point_gaussian_policy_forward.3']
    %16 = vsyncpa [#allocation3], 0
    %17 = vsyncpa [#allocation4], 0
    %18 = vsyncpa [#allocation7], 0
    // Predicated region
    $region2: #{point_gaussian_policy_forward.3} parent=1 // pred_check
      _
    $region3: #{point_gaussian_policy_forward.3} parent=1 // pred_check_branch
      %20 = sbr.rel (0) target = $region5
    $region4: #{point_gaussian_policy_forward.3} parent=1 // pred_region
      _
    $region5: #{point_gaussian_policy_forward.3} parent=1 // pred_fallthru
      _
    // Predicated region
    $region6: #{point_gaussian_policy_forward.3} parent=1 // pred_check
      _
    $region7: #{point_gaussian_policy_forward.3} parent=1 // pred_check_branch
      %22 = sbr.rel (0) target = $region9
    $region8: #{point_gaussian_policy_forward.3} parent=1 // pred_region
      _
    $region9: #{point_gaussian_policy_forward.3} parent=1 // pred_fallthru
      _
    // Predicated region
    $region10: #{point_gaussian_policy_forward.3} parent=1 // pred_check
      _
    $region11: #{point_gaussian_policy_forward.3} parent=1 // pred_check_branch
      %24 = sbr.rel (0) target = $region13
    $region12: #{point_gaussian_policy_forward.3} parent=1 // pred_region
      _
    $region13: #{point_gaussian_policy_forward.3} parent=1 // pred_fallthru
      _
    // Predicated region
    $region14: #{point_gaussian_policy_forward.3} parent=1 // pred_check
      _
    $region15: #{point_gaussian_policy_forward.3} parent=1 // pred_check_branch
      %26 = sbr.rel (0) target = $region17
    $region16: #{point_gaussian_policy_forward.3} parent=1 // pred_region
      %s28 = ssub.s32 8192, 8192
      %29 = vsyncadd [#allocation3], %s28
      %s30 = sshll.u32 [#allocation2], 4
      %s31 = int_to_ptr.vmem [resolvable:$true] %s30
      %36 = dma.hbm_to_vmem [thread:$0]  %s3, 8192, %s31, [#allocation3], 256, 256, 16
    $region17: #{point_gaussian_policy_forward.3} parent=1 // pred_fallthru
      _
    // Predicated region
    $region18: #{point_gaussian_policy_forward.3} parent=1 // pred_check
      _
    $region19: #{point_gaussian_policy_forward.3} parent=1 // pred_check_branch
      %38 = sbr.rel (0) target = $region21
    $region20: #{point_gaussian_policy_forward.3} parent=1 // pred_region
      _
    $region21: #{point_gaussian_policy_forward.3} parent=1 // pred_fallthru
      _
    // Predicated region
    $region22: #{point_gaussian_policy_forward.3} parent=1 // pred_check
      _
    $region23: #{point_gaussian_policy_forward.3} parent=1 // pred_check_branch
      %40 = sbr.rel (0) target = $region25
    $region24: #{point_gaussian_policy_forward.3} parent=1 // pred_region
      _
    $region25: #{point_gaussian_policy_forward.3} parent=1 // pred_fallthru
      _
    // Predicated region
    $region26: #{point_gaussian_policy_forward.3} parent=1 // pred_check
      _
    $region27: #{point_gaussian_policy_forward.3} parent=1 // pred_check_branch
      %42 = sbr.rel (0) target = $region29
    $region28: #{point_gaussian_policy_forward.3} parent=1 // pred_region
      _
    $region29: #{point_gaussian_policy_forward.3} parent=1 // pred_fallthru
      _
    // Predicated region
    $region30: #{point_gaussian_policy_forward.3} parent=1 // pred_check
      _
    $region31: #{point_gaussian_policy_forward.3} parent=1 // pred_check_branch
      %44 = sbr.rel (0) target = $region33
    $region32: #{point_gaussian_policy_forward.3} parent=1 // pred_region
      _
    $region33: #{point_gaussian_policy_forward.3} parent=1 // pred_fallthru
      _
    // Predicated region
    $region34: #{point_gaussian_policy_forward.3} parent=1 // pred_check
      _
    $region35: #{point_gaussian_policy_forward.3} parent=1 // pred_check_branch
      %46 = sbr.rel (0) target = $region37
    $region36: #{point_gaussian_policy_forward.3} parent=1 // pred_region
      _
    $region37: #{point_gaussian_policy_forward.3} parent=1 // pred_fallthru
      _
    // Predicated region
    $region38: #{point_gaussian_policy_forward.3} parent=1 // pred_check
      _
    $region39: #{point_gaussian_policy_forward.3} parent=1 // pred_check_branch
      %48 = sbr.rel (0) target = $region41
    $region40: #{point_gaussian_policy_forward.3} parent=1 // pred_region
      %49 = dma.done [#allocation3], 8192
    $region41: #{point_gaussian_policy_forward.3} parent=1 // pred_fallthru
      _
    %v50 = vld [vmem:[%s0] sm:$0xff]
    %v51 = vld [vmem:[%s0 + $0x8] sm:$0xff]
    %v52 = vld [vmem:[%s1] sm:$0xff]
    %v53 = vld [vmem:[%s1 + $0x8] sm:$0xff]
    %v54 = vld [vmem:[%s1 + $0x10] sm:$0xff]
    %v55 = vld [vmem:[%s1 + $0x18] sm:$0xff]
    %v56 = vld [vmem:[%s1 + $0x20] sm:$0xff]
    %v57 = vld [vmem:[%s1 + $0x28] sm:$0xff]
    %v58 = vld [vmem:[%s1 + $0x30] sm:$0xff]
    %v59 = vld [vmem:[%s1 + $0x38] sm:$0xff]
    %v60 = vld [vmem:[%s1 + $0x40] sm:$0xff]
    %v61 = vld [vmem:[%s1 + $0x48] sm:$0xff]
    %v62 = vld [vmem:[%s1 + $0x50] sm:$0xff]
    %v63 = vld [vmem:[%s1 + $0x58] sm:$0xff]
    %v64 = vld [vmem:[%s1 + $0x60] sm:$0xff]
    %v65 = vld [vmem:[%s1 + $0x68] sm:$0xff]
    %v66 = vld [vmem:[%s1 + $0x70] sm:$0xff]
    %v67 = vld [vmem:[%s1 + $0x78] sm:$0xff]
    %v68 = vld [vmem:[%s1 + $0x80] sm:$0xff]
    %v69 = vld [vmem:[%s1 + $0x88] sm:$0xff]
    %v70 = vld [vmem:[%s1 + $0x90] sm:$0xff]
    %v71 = vld [vmem:[%s1 + $0x98] sm:$0xff]
    %v72 = vld [vmem:[%s1 + $0xa0] sm:$0xff]
    %v73 = vld [vmem:[%s1 + $0xa8] sm:$0xff]
    %v74 = vld [vmem:[%s1 + $0xb0] sm:$0xff]
    %v75 = vld [vmem:[%s1 + $0xb8] sm:$0xff]
    %v76 = vld [vmem:[%s1 + $0xc0] sm:$0xff]
    %v77 = vld [vmem:[%s1 + $0xc8] sm:$0xff]
    %v78 = vld [vmem:[%s1 + $0xd0] sm:$0xff]
    %v79 = vld [vmem:[%s1 + $0xd8] sm:$0xff]
    %v80 = vld [vmem:[%s1 + $0xe0] sm:$0xff]
    %v81 = vld [vmem:[%s1 + $0xe8] sm:$0xff]
    %v82 = vld [vmem:[%s1 + $0xf0] sm:$0xff]
    %v83 = vld [vmem:[%s1 + $0xf8] sm:$0xff]
    %v84 = vld [vmem:[%s1 + $0x100] sm:$0xff]
    %v85 = vld [vmem:[%s1 + $0x108] sm:$0xff]
    %v86 = vld [vmem:[%s1 + $0x110] sm:$0xff]
    %v87 = vld [vmem:[%s1 + $0x118] sm:$0xff]
    %v88 = vld [vmem:[%s1 + $0x120] sm:$0xff]
    %v89 = vld [vmem:[%s1 + $0x128] sm:$0xff]
    %v90 = vld [vmem:[%s1 + $0x130] sm:$0xff]
    %v91 = vld [vmem:[%s1 + $0x138] sm:$0xff]
    %v92 = vld [vmem:[%s1 + $0x140] sm:$0xff]
    %v93 = vld [vmem:[%s1 + $0x148] sm:$0xff]
    %v94 = vld [vmem:[%s1 + $0x150] sm:$0xff]
    %v95 = vld [vmem:[%s1 + $0x158] sm:$0xff]
    %v96 = vld [vmem:[%s1 + $0x160] sm:$0xff]
    %v97 = vld [vmem:[%s1 + $0x168] sm:$0xff]
    %v98 = vld [vmem:[%s1 + $0x170] sm:$0xff]
    %v99 = vld [vmem:[%s1 + $0x178] sm:$0xff]
    %v100 = vld [vmem:[%s1 + $0x180] sm:$0xff]
    %v101 = vld [vmem:[%s1 + $0x188] sm:$0xff]
    %v102 = vld [vmem:[%s1 + $0x190] sm:$0xff]
    %v103 = vld [vmem:[%s1 + $0x198] sm:$0xff]
    %v104 = vld [vmem:[%s1 + $0x1a0] sm:$0xff]
    %v105 = vld [vmem:[%s1 + $0x1a8] sm:$0xff]
    %v106 = vld [vmem:[%s1 + $0x1b0] sm:$0xff]
    %v107 = vld [vmem:[%s1 + $0x1b8] sm:$0xff]
    %v108 = vld [vmem:[%s1 + $0x1c0] sm:$0xff]
    %v109 = vld [vmem:[%s1 + $0x1c8] sm:$0xff]
    %v110 = vld [vmem:[%s1 + $0x1d0] sm:$0xff]
    %v111 = vld [vmem:[%s1 + $0x1d8] sm:$0xff]
    %v112 = vld [vmem:[%s1 + $0x1e0] sm:$0xff]
    %v113 = vld [vmem:[%s1 + $0x1e8] sm:$0xff]
    %v114 = vld [vmem:[%s1 + $0x1f0] sm:$0xff]
    %v115 = vld [vmem:[%s1 + $0x1f8] sm:$0xff]
    %v116 = vld [vmem:[%s1 + $0x200] sm:$0xff]
    %v117 = vld [vmem:[%s1 + $0x208] sm:$0xff]
    %v118 = vld [vmem:[%s1 + $0x210] sm:$0xff]
    %v119 = vld [vmem:[%s1 + $0x218] sm:$0xff]
    %v120 = vld [vmem:[%s1 + $0x220] sm:$0xff]
    %v121 = vld [vmem:[%s1 + $0x228] sm:$0xff]
    %v122 = vld [vmem:[%s1 + $0x230] sm:$0xff]
    %v123 = vld [vmem:[%s1 + $0x238] sm:$0xff]
    %v124 = vld [vmem:[%s1 + $0x240] sm:$0xff]
    %v125 = vld [vmem:[%s1 + $0x248] sm:$0xff]
    %v126 = vld [vmem:[%s1 + $0x250] sm:$0xff]
    %v127 = vld [vmem:[%s1 + $0x258] sm:$0xff]
    %v128 = vld [vmem:[%s1 + $0x260] sm:$0xff]
    %v129 = vld [vmem:[%s1 + $0x268] sm:$0xff]
    %v130 = vld [vmem:[%s1 + $0x270] sm:$0xff]
    %v131 = vld [vmem:[%s1 + $0x278] sm:$0xff]
    %v132 = vld [vmem:[%s1 + $0x280] sm:$0xff]
    %v133 = vld [vmem:[%s1 + $0x288] sm:$0xff]
    %v134 = vld [vmem:[%s1 + $0x290] sm:$0xff]
    %v135 = vld [vmem:[%s1 + $0x298] sm:$0xff]
    %v136 = vld [vmem:[%s1 + $0x2a0] sm:$0xff]
    %v137 = vld [vmem:[%s1 + $0x2a8] sm:$0xff]
    %v138 = vld [vmem:[%s1 + $0x2b0] sm:$0xff]
    %v139 = vld [vmem:[%s1 + $0x2b8] sm:$0xff]
    %v140 = vld [vmem:[%s1 + $0x2c0] sm:$0xff]
    %v141 = vld [vmem:[%s1 + $0x2c8] sm:$0xff]
    %v142 = vld [vmem:[%s1 + $0x2d0] sm:$0xff]
    %v143 = vld [vmem:[%s1 + $0x2d8] sm:$0xff]
    %v144 = vld [vmem:[%s1 + $0x2e0] sm:$0xff]
    %v145 = vld [vmem:[%s1 + $0x2e8] sm:$0xff]
    %v146 = vld [vmem:[%s1 + $0x2f0] sm:$0xff]
    %v147 = vld [vmem:[%s1 + $0x2f8] sm:$0xff]
    %v148 = vld [vmem:[%s1 + $0x300] sm:$0xff]
    %v149 = vld [vmem:[%s1 + $0x308] sm:$0xff]
    %v150 = vld [vmem:[%s1 + $0x310] sm:$0xff]
    %v151 = vld [vmem:[%s1 + $0x318] sm:$0xff]
    %v152 = vld [vmem:[%s1 + $0x320] sm:$0xff]
    %v153 = vld [vmem:[%s1 + $0x328] sm:$0xff]
    %v154 = vld [vmem:[%s1 + $0x330] sm:$0xff]
    %v155 = vld [vmem:[%s1 + $0x338] sm:$0xff]
    %v156 = vld [vmem:[%s1 + $0x340] sm:$0xff]
    %v157 = vld [vmem:[%s1 + $0x348] sm:$0xff]
    %v158 = vld [vmem:[%s1 + $0x350] sm:$0xff]
    %v159 = vld [vmem:[%s1 + $0x358] sm:$0xff]
    %v160 = vld [vmem:[%s1 + $0x360] sm:$0xff]
    %v161 = vld [vmem:[%s1 + $0x368] sm:$0xff]
    %v162 = vld [vmem:[%s1 + $0x370] sm:$0xff]
    %v163 = vld [vmem:[%s1 + $0x378] sm:$0xff]
    %v164 = vld [vmem:[%s1 + $0x380] sm:$0xff]
    %v165 = vld [vmem:[%s1 + $0x388] sm:$0xff]
    %v166 = vld [vmem:[%s1 + $0x390] sm:$0xff]
    %v167 = vld [vmem:[%s1 + $0x398] sm:$0xff]
    %v168 = vld [vmem:[%s1 + $0x3a0] sm:$0xff]
    %v169 = vld [vmem:[%s1 + $0x3a8] sm:$0xff]
    %v170 = vld [vmem:[%s1 + $0x3b0] sm:$0xff]
    %v171 = vld [vmem:[%s1 + $0x3b8] sm:$0xff]
    %v172 = vld [vmem:[%s1 + $0x3c0] sm:$0xff]
    %v173 = vld [vmem:[%s1 + $0x3c8] sm:$0xff]
    %v174 = vld [vmem:[%s1 + $0x3d0] sm:$0xff]
    %v175 = vld [vmem:[%s1 + $0x3d8] sm:$0xff]
    %v176 = vld [vmem:[%s1 + $0x3e0] sm:$0xff]
    %v177 = vld [vmem:[%s1 + $0x3e8] sm:$0xff]
    %v178 = vld [vmem:[%s1 + $0x3f0] sm:$0xff]
    %v179 = vld [vmem:[%s1 + $0x3f8] sm:$0xff]
    %v180 = vld [vmem:[%s1 + $0x400] sm:$0xff]
    %v181 = vld [vmem:[%s1 + $0x408] sm:$0xff]
    %v182 = vld [vmem:[%s1 + $0x410] sm:$0xff]
    %v183 = vld [vmem:[%s1 + $0x418] sm:$0xff]
    %v184 = vld [vmem:[%s1 + $0x420] sm:$0xff]
    %v185 = vld [vmem:[%s1 + $0x428] sm:$0xff]
    %v186 = vld [vmem:[%s1 + $0x430] sm:$0xff]
    %v187 = vld [vmem:[%s1 + $0x438] sm:$0xff]
    %v188 = vld [vmem:[%s1 + $0x440] sm:$0xff]
    %v189 = vld [vmem:[%s1 + $0x448] sm:$0xff]
    %v190 = vld [vmem:[%s1 + $0x450] sm:$0xff]
    %v191 = vld [vmem:[%s1 + $0x458] sm:$0xff]
    %v192 = vld [vmem:[%s1 + $0x460] sm:$0xff]
    %v193 = vld [vmem:[%s1 + $0x468] sm:$0xff]
    %v194 = vld [vmem:[%s1 + $0x470] sm:$0xff]
    %v195 = vld [vmem:[%s1 + $0x478] sm:$0xff]
    %v196 = vld [vmem:[%s1 + $0x480] sm:$0xff]
    %v197 = vld [vmem:[%s1 + $0x488] sm:$0xff]
    %v198 = vld [vmem:[%s1 + $0x490] sm:$0xff]
    %v199 = vld [vmem:[%s1 + $0x498] sm:$0xff]
    %v200 = vld [vmem:[%s1 + $0x4a0] sm:$0xff]
    %v201 = vld [vmem:[%s1 + $0x4a8] sm:$0xff]
    %v202 = vld [vmem:[%s1 + $0x4b0] sm:$0xff]
    %v203 = vld [vmem:[%s1 + $0x4b8] sm:$0xff]
    %v204 = vld [vmem:[%s1 + $0x4c0] sm:$0xff]
    %v205 = vld [vmem:[%s1 + $0x4c8] sm:$0xff]
    %v206 = vld [vmem:[%s1 + $0x4d0] sm:$0xff]
    %v207 = vld [vmem:[%s1 + $0x4d8] sm:$0xff]
    %v208 = vld [vmem:[%s1 + $0x4e0] sm:$0xff]
    %v209 = vld [vmem:[%s1 + $0x4e8] sm:$0xff]
    %v210 = vld [vmem:[%s1 + $0x4f0] sm:$0xff]
    %v211 = vld [vmem:[%s1 + $0x4f8] sm:$0xff]
    %v212 = vld [vmem:[%s1 + $0x500] sm:$0xff]
    %v213 = vld [vmem:[%s1 + $0x508] sm:$0xff]
    %v214 = vld [vmem:[%s1 + $0x510] sm:$0xff]
    %v215 = vld [vmem:[%s1 + $0x518] sm:$0xff]
    %v216 = vld [vmem:[%s1 + $0x520] sm:$0xff]
    %v217 = vld [vmem:[%s1 + $0x528] sm:$0xff]
    %v218 = vld [vmem:[%s1 + $0x530] sm:$0xff]
    %v219 = vld [vmem:[%s1 + $0x538] sm:$0xff]
    %v220 = vld [vmem:[%s1 + $0x540] sm:$0xff]
    %v221 = vld [vmem:[%s1 + $0x548] sm:$0xff]
    %v222 = vld [vmem:[%s1 + $0x550] sm:$0xff]
    %v223 = vld [vmem:[%s1 + $0x558] sm:$0xff]
    %v224 = vld [vmem:[%s1 + $0x560] sm:$0xff]
    %v225 = vld [vmem:[%s1 + $0x568] sm:$0xff]
    %v226 = vld [vmem:[%s1 + $0x570] sm:$0xff]
    %v227 = vld [vmem:[%s1 + $0x578] sm:$0xff]
    %v228 = vld [vmem:[%s1 + $0x580] sm:$0xff]
    %v229 = vld [vmem:[%s1 + $0x588] sm:$0xff]
    %v230 = vld [vmem:[%s1 + $0x590] sm:$0xff]
    %v231 = vld [vmem:[%s1 + $0x598] sm:$0xff]
    %v232 = vld [vmem:[%s1 + $0x5a0] sm:$0xff]
    %v233 = vld [vmem:[%s1 + $0x5a8] sm:$0xff]
    %v234 = vld [vmem:[%s1 + $0x5b0] sm:$0xff]
    %v235 = vld [vmem:[%s1 + $0x5b8] sm:$0xff]
    %v236 = vld [vmem:[%s1 + $0x5c0] sm:$0xff]
    %v237 = vld [vmem:[%s1 + $0x5c8] sm:$0xff]
    %v238 = vld [vmem:[%s1 + $0x5d0] sm:$0xff]
    %v239 = vld [vmem:[%s1 + $0x5d8] sm:$0xff]
    %v240 = vld [vmem:[%s1 + $0x5e0] sm:$0xff]
    %v241 = vld [vmem:[%s1 + $0x5e8] sm:$0xff]
    %v242 = vld [vmem:[%s1 + $0x5f0] sm:$0xff]
    %v243 = vld [vmem:[%s1 + $0x5f8] sm:$0xff]
    %v244 = vld [vmem:[%s1 + $0x600] sm:$0xff]
    %v245 = vld [vmem:[%s1 + $0x608] sm:$0xff]
    %v246 = vld [vmem:[%s1 + $0x610] sm:$0xff]
    %v247 = vld [vmem:[%s1 + $0x618] sm:$0xff]
    %v248 = vld [vmem:[%s1 + $0x620] sm:$0xff]
    %v249 = vld [vmem:[%s1 + $0x628] sm:$0xff]
    %v250 = vld [vmem:[%s1 + $0x630] sm:$0xff]
    %v251 = vld [vmem:[%s1 + $0x638] sm:$0xff]
    %v252 = vld [vmem:[%s1 + $0x640] sm:$0xff]
    %v253 = vld [vmem:[%s1 + $0x648] sm:$0xff]
    %v254 = vld [vmem:[%s1 + $0x650] sm:$0xff]
    %v255 = vld [vmem:[%s1 + $0x658] sm:$0xff]
    %v256 = vld [vmem:[%s1 + $0x660] sm:$0xff]
    %v257 = vld [vmem:[%s1 + $0x668] sm:$0xff]
    %v258 = vld [vmem:[%s1 + $0x670] sm:$0xff]
    %v259 = vld [vmem:[%s1 + $0x678] sm:$0xff]
    %v260 = vld [vmem:[%s1 + $0x680] sm:$0xff]
    %v261 = vld [vmem:[%s1 + $0x688] sm:$0xff]
    %v262 = vld [vmem:[%s1 + $0x690] sm:$0xff]
    %v263 = vld [vmem:[%s1 + $0x698] sm:$0xff]
    %v264 = vld [vmem:[%s1 + $0x6a0] sm:$0xff]
    %v265 = vld [vmem:[%s1 + $0x6a8] sm:$0xff]
    %v266 = vld [vmem:[%s1 + $0x6b0] sm:$0xff]
    %v267 = vld [vmem:[%s1 + $0x6b8] sm:$0xff]
    %v268 = vld [vmem:[%s1 + $0x6c0] sm:$0xff]
    %v269 = vld [vmem:[%s1 + $0x6c8] sm:$0xff]
    %v270 = vld [vmem:[%s1 + $0x6d0] sm:$0xff]
    %v271 = vld [vmem:[%s1 + $0x6d8] sm:$0xff]
    %v272 = vld [vmem:[%s1 + $0x6e0] sm:$0xff]
    %v273 = vld [vmem:[%s1 + $0x6e8] sm:$0xff]
    %v274 = vld [vmem:[%s1 + $0x6f0] sm:$0xff]
    %v275 = vld [vmem:[%s1 + $0x6f8] sm:$0xff]
    %v276 = vld [vmem:[%s1 + $0x700] sm:$0xff]
    %v277 = vld [vmem:[%s1 + $0x708] sm:$0xff]
    %v278 = vld [vmem:[%s1 + $0x710] sm:$0xff]
    %v279 = vld [vmem:[%s1 + $0x718] sm:$0xff]
    %v280 = vld [vmem:[%s1 + $0x720] sm:$0xff]
    %v281 = vld [vmem:[%s1 + $0x728] sm:$0xff]
    %v282 = vld [vmem:[%s1 + $0x730] sm:$0xff]
    %v283 = vld [vmem:[%s1 + $0x738] sm:$0xff]
    %v284 = vld [vmem:[%s1 + $0x740] sm:$0xff]
    %v285 = vld [vmem:[%s1 + $0x748] sm:$0xff]
    %v286 = vld [vmem:[%s1 + $0x750] sm:$0xff]
    %v287 = vld [vmem:[%s1 + $0x758] sm:$0xff]
    %v288 = vld [vmem:[%s1 + $0x760] sm:$0xff]
    %v289 = vld [vmem:[%s1 + $0x768] sm:$0xff]
    %v290 = vld [vmem:[%s1 + $0x770] sm:$0xff]
    %v291 = vld [vmem:[%s1 + $0x778] sm:$0xff]
    %v292 = vld [vmem:[%s1 + $0x780] sm:$0xff]
    %v293 = vld [vmem:[%s1 + $0x788] sm:$0xff]
    %v294 = vld [vmem:[%s1 + $0x790] sm:$0xff]
    %v295 = vld [vmem:[%s1 + $0x798] sm:$0xff]
    %v296 = vld [vmem:[%s1 + $0x7a0] sm:$0xff]
    %v297 = vld [vmem:[%s1 + $0x7a8] sm:$0xff]
    %v298 = vld [vmem:[%s1 + $0x7b0] sm:$0xff]
    %v299 = vld [vmem:[%s1 + $0x7b8] sm:$0xff]
    %v300 = vld [vmem:[%s1 + $0x7c0] sm:$0xff]
    %v301 = vld [vmem:[%s1 + $0x7c8] sm:$0xff]
    %v302 = vld [vmem:[%s1 + $0x7d0] sm:$0xff]
    %v303 = vld [vmem:[%s1 + $0x7d8] sm:$0xff]
    %v304 = vld [vmem:[%s1 + $0x7e0] sm:$0xff]
    %v305 = vld [vmem:[%s1 + $0x7e8] sm:$0xff]
    %v306 = vld [vmem:[%s1 + $0x7f0] sm:$0xff]
    %v307 = vld [vmem:[%s1 + $0x7f8] sm:$0xff]
    %v308 = vld [vmem:[%s2] sm:$0x3]
    %v310 = vlaneseq
    %v311 = vshrl.u32 %v310, 7
    %v312 = vsub.s32 0, %v311
    %v313 = vrot.slane %v308, %v312
    %v314 = vlaneseq
    %v315 = vshrl.u32 %v314, 7
    %v316 = vsub.s32 1, %v315
    %v317 = vrot.slane %v308, %v316
    %v322 = vcombine.high %v50, %v50
    %v324 = vunpack.c.l.s4 1983009808
    %v325 = vunpack.c.0.s8 %v324
    %v326 = vlaneseq
    %v327 = vshrl.u32 %v326, 7
    %v328 = vsub.s32 %v325, %v327
    %v329 = vrot.slane %v50, %v328
    %v331 = vunpack.c.l.s4 1983009808
    %v332 = vunpack.c.0.s8 %v331
    %v333 = vlaneseq
    %v334 = vshrl.u32 %v333, 7
    %v335 = vsub.s32 %v332, %v334
    %v336 = vrot.slane %v322, %v335
    %v337 = vcombine.high %v329, %v329
    %v338 = vcombine.high %v336, %v336
    %v339 = vcombine.high %v51, %v51
    %v341 = vunpack.c.l.s4 1983009808
    %v342 = vunpack.c.0.s8 %v341
    %v343 = vlaneseq
    %v344 = vshrl.u32 %v343, 7
    %v345 = vsub.s32 %v342, %v344
    %v346 = vrot.slane %v51, %v345
    %v348 = vunpack.c.l.s4 1983009808
    %v349 = vunpack.c.0.s8 %v348
    %v350 = vlaneseq
    %v351 = vshrl.u32 %v350, 7
    %v352 = vsub.s32 %v349, %v351
    %v353 = vrot.slane %v339, %v352
    %v354 = vcombine.high %v346, %v346
    %v355 = vcombine.high %v353, %v353
    %364 = vmatprep.subr.mxu0 %v83
    %365 = vmatpush1.msra.mxu0 %v82
    %366 = vmatprep.subr.mxu0 %v81
    %367 = vmatpush1.msra.mxu0 %v80
    %368 = vmatprep.subr.mxu0 %v79
    %369 = vmatpush1.msra.mxu0 %v78
    %370 = vmatprep.subr.mxu0 %v77
    %371 = vmatpush1.msra.mxu0 %v76
    %372 = vmatprep.subr.mxu0 %v75
    %373 = vmatpush1.msra.mxu0 %v74
    %374 = vmatprep.subr.mxu0 %v73
    %375 = vmatpush1.msra.mxu0 %v72
    %376 = vmatprep.subr.mxu0 %v71
    %377 = vmatpush1.msra.mxu0 %v70
    %378 = vmatprep.subr.mxu0 %v69
    %379 = vmatpush1.msra.mxu0 %v68
    %380 = vmatprep.subr.mxu0 %v67
    %381 = vmatpush1.msra.mxu0 %v66
    %382 = vmatprep.subr.mxu0 %v65
    %383 = vmatpush1.msra.mxu0 %v64
    %384 = vmatprep.subr.mxu0 %v63
    %385 = vmatpush1.msra.mxu0 %v62
    %386 = vmatprep.subr.mxu0 %v61
    %387 = vmatpush1.msra.mxu0 %v60
    %388 = vmatprep.subr.mxu0 %v59
    %389 = vmatpush1.msra.mxu0 %v58
    %390 = vmatprep.subr.mxu0 %v57
    %391 = vmatpush1.msra.mxu0 %v56
    %392 = vmatprep.subr.mxu0 %v55
    %393 = vmatpush1.msra.mxu0 %v54
    %394 = vmatprep.subr.mxu0 %v53
    %395 = vmatpush1.msra.mxu0 %v52
    %396 = vmatprep.subr.mxu0 %v115
    %397 = vmatpush2.msra.mxu0 %v114
    %398 = vmatprep.subr.mxu0 %v113
    %399 = vmatpush2.msra.mxu0 %v112
    %400 = vmatprep.subr.mxu0 %v111
    %401 = vmatpush2.msra.mxu0 %v110
    %402 = vmatprep.subr.mxu0 %v109
    %403 = vmatpush2.msra.mxu0 %v108
    %404 = vmatprep.subr.mxu0 %v107
    %405 = vmatpush2.msra.mxu0 %v106
    %406 = vmatprep.subr.mxu0 %v105
    %407 = vmatpush2.msra.mxu0 %v104
    %408 = vmatprep.subr.mxu0 %v103
    %409 = vmatpush2.msra.mxu0 %v102
    %410 = vmatprep.subr.mxu0 %v101
    %411 = vmatpush2.msra.mxu0 %v100
    %412 = vmatprep.subr.mxu0 %v99
    %413 = vmatpush2.msra.mxu0 %v98
    %414 = vmatprep.subr.mxu0 %v97
    %415 = vmatpush2.msra.mxu0 %v96
    %416 = vmatprep.subr.mxu0 %v95
    %417 = vmatpush2.msra.mxu0 %v94
    %418 = vmatprep.subr.mxu0 %v93
    %419 = vmatpush2.msra.mxu0 %v92
    %420 = vmatprep.subr.mxu0 %v91
    %421 = vmatpush2.msra.mxu0 %v90
    %422 = vmatprep.subr.mxu0 %v89
    %423 = vmatpush2.msra.mxu0 %v88
    %424 = vmatprep.subr.mxu0 %v87
    %425 = vmatpush2.msra.mxu0 %v86
    %426 = vmatprep.subr.mxu0 %v85
    %427 = vmatpush2.msra.mxu0 %v84
    %428 = vmatprep.mubr.f32.mxu0 %v337
    %429 = vmatmul.mubr.f32.gmra.mxu0 %v329
    %v430 = vpop.f32.mrf.mxu0
    %v431 = vadd.f32 %v313, %v430
    %v432 = vpop.f32.mrf.mxu0
    %v433 = vadd.f32 %v317, %v432
    %434 = vdwg.mxu0
    %435 = vmatprep.subr.mxu0 %v147
    %436 = vmatpush1.msra.mxu0 %v146
    %437 = vmatprep.subr.mxu0 %v145
    %438 = vmatpush1.msra.mxu0 %v144
    %439 = vmatprep.subr.mxu0 %v143
    %440 = vmatpush1.msra.mxu0 %v142
    %441 = vmatprep.subr.mxu0 %v141
    %442 = vmatpush1.msra.mxu0 %v140
    %443 = vmatprep.subr.mxu0 %v139
    %444 = vmatpush1.msra.mxu0 %v138
    %445 = vmatprep.subr.mxu0 %v137
    %446 = vmatpush1.msra.mxu0 %v136
    %447 = vmatprep.subr.mxu0 %v135
    %448 = vmatpush1.msra.mxu0 %v134
    %449 = vmatprep.subr.mxu0 %v133
    %450 = vmatpush1.msra.mxu0 %v132
    %451 = vmatprep.subr.mxu0 %v131
    %452 = vmatpush1.msra.mxu0 %v130
    %453 = vmatprep.subr.mxu0 %v129
    %454 = vmatpush1.msra.mxu0 %v128
    %455 = vmatprep.subr.mxu0 %v127
    %456 = vmatpush1.msra.mxu0 %v126
    %457 = vmatprep.subr.mxu0 %v125
    %458 = vmatpush1.msra.mxu0 %v124
    %459 = vmatprep.subr.mxu0 %v123
    %460 = vmatpush1.msra.mxu0 %v122
    %461 = vmatprep.subr.mxu0 %v121
    %462 = vmatpush1.msra.mxu0 %v120
    %463 = vmatprep.subr.mxu0 %v119
    %464 = vmatpush1.msra.mxu0 %v118
    %465 = vmatprep.subr.mxu0 %v117
    %466 = vmatpush1.msra.mxu0 %v116
    %467 = vmatprep.subr.mxu0 %v179
    %468 = vmatpush2.msra.mxu0 %v178
    %469 = vmatprep.subr.mxu0 %v177
    %470 = vmatpush2.msra.mxu0 %v176
    %471 = vmatprep.subr.mxu0 %v175
    %472 = vmatpush2.msra.mxu0 %v174
    %473 = vmatprep.subr.mxu0 %v173
    %474 = vmatpush2.msra.mxu0 %v172
    %475 = vmatprep.subr.mxu0 %v171
    %476 = vmatpush2.msra.mxu0 %v170
    %477 = vmatprep.subr.mxu0 %v169
    %478 = vmatpush2.msra.mxu0 %v168
    %479 = vmatprep.subr.mxu0 %v167
    %480 = vmatpush2.msra.mxu0 %v166
    %481 = vmatprep.subr.mxu0 %v165
    %482 = vmatpush2.msra.mxu0 %v164
    %483 = vmatprep.subr.mxu0 %v163
    %484 = vmatpush2.msra.mxu0 %v162
    %485 = vmatprep.subr.mxu0 %v161
    %486 = vmatpush2.msra.mxu0 %v160
    %487 = vmatprep.subr.mxu0 %v159
    %488 = vmatpush2.msra.mxu0 %v158
    %489 = vmatprep.subr.mxu0 %v157
    %490 = vmatpush2.msra.mxu0 %v156
    %491 = vmatprep.subr.mxu0 %v155
    %492 = vmatpush2.msra.mxu0 %v154
    %493 = vmatprep.subr.mxu0 %v153
    %494 = vmatpush2.msra.mxu0 %v152
    %495 = vmatprep.subr.mxu0 %v151
    %496 = vmatpush2.msra.mxu0 %v150
    %497 = vmatprep.subr.mxu0 %v149
    %498 = vmatpush2.msra.mxu0 %v148
    %499 = vmatprep.mubr.f32.mxu0 %v338
    %500 = vmatmul.mubr.f32.gmra.mxu0 %v336
    %v501 = vpop.f32.mrf.mxu0
    %v502 = vadd.f32 %v431, %v501
    %v503 = vpop.f32.mrf.mxu0
    %v504 = vadd.f32 %v433, %v503
    %505 = vdwg.mxu0
    %506 = vmatprep.subr.mxu0 %v211
    %507 = vmatpush1.msra.mxu0 %v210
    %508 = vmatprep.subr.mxu0 %v209
    %509 = vmatpush1.msra.mxu0 %v208
    %510 = vmatprep.subr.mxu0 %v207
    %511 = vmatpush1.msra.mxu0 %v206
    %512 = vmatprep.subr.mxu0 %v205
    %513 = vmatpush1.msra.mxu0 %v204
    %514 = vmatprep.subr.mxu0 %v203
    %515 = vmatpush1.msra.mxu0 %v202
    %516 = vmatprep.subr.mxu0 %v201
    %517 = vmatpush1.msra.mxu0 %v200
    %518 = vmatprep.subr.mxu0 %v199
    %519 = vmatpush1.msra.mxu0 %v198
    %520 = vmatprep.subr.mxu0 %v197
    %521 = vmatpush1.msra.mxu0 %v196
    %522 = vmatprep.subr.mxu0 %v195
    %523 = vmatpush1.msra.mxu0 %v194
    %524 = vmatprep.subr.mxu0 %v193
    %525 = vmatpush1.msra.mxu0 %v192
    %526 = vmatprep.subr.mxu0 %v191
    %527 = vmatpush1.msra.mxu0 %v190
    %528 = vmatprep.subr.mxu0 %v189
    %529 = vmatpush1.msra.mxu0 %v188
    %530 = vmatprep.subr.mxu0 %v187
    %531 = vmatpush1.msra.mxu0 %v186
    %532 = vmatprep.subr.mxu0 %v185
    %533 = vmatpush1.msra.mxu0 %v184
    %534 = vmatprep.subr.mxu0 %v183
    %535 = vmatpush1.msra.mxu0 %v182
    %536 = vmatprep.subr.mxu0 %v181
    %537 = vmatpush1.msra.mxu0 %v180
    %538 = vmatprep.subr.mxu0 %v243
    %539 = vmatpush2.msra.mxu0 %v242
    %540 = vmatprep.subr.mxu0 %v241
    %541 = vmatpush2.msra.mxu0 %v240
    %542 = vmatprep.subr.mxu0 %v239
    %543 = vmatpush2.msra.mxu0 %v238
    %544 = vmatprep.subr.mxu0 %v237
    %545 = vmatpush2.msra.mxu0 %v236
    %546 = vmatprep.subr.mxu0 %v235
    %547 = vmatpush2.msra.mxu0 %v234
    %548 = vmatprep.subr.mxu0 %v233
    %549 = vmatpush2.msra.mxu0 %v232
    %550 = vmatprep.subr.mxu0 %v231
    %551 = vmatpush2.msra.mxu0 %v230
    %552 = vmatprep.subr.mxu0 %v229
    %553 = vmatpush2.msra.mxu0 %v228
    %554 = vmatprep.subr.mxu0 %v227
    %555 = vmatpush2.msra.mxu0 %v226
    %556 = vmatprep.subr.mxu0 %v225
    %557 = vmatpush2.msra.mxu0 %v224
    %558 = vmatprep.subr.mxu0 %v223
    %559 = vmatpush2.msra.mxu0 %v222
    %560 = vmatprep.subr.mxu0 %v221
    %561 = vmatpush2.msra.mxu0 %v220
    %562 = vmatprep.subr.mxu0 %v219
    %563 = vmatpush2.msra.mxu0 %v218
    %564 = vmatprep.subr.mxu0 %v217
    %565 = vmatpush2.msra.mxu0 %v216
    %566 = vmatprep.subr.mxu0 %v215
    %567 = vmatpush2.msra.mxu0 %v214
    %568 = vmatprep.subr.mxu0 %v213
    %569 = vmatpush2.msra.mxu0 %v212
    %570 = vmatprep.mubr.f32.mxu0 %v354
    %571 = vmatmul.mubr.f32.gmra.mxu0 %v346
    %v572 = vpop.f32.mrf.mxu0
    %v573 = vadd.f32 %v502, %v572
    %v574 = vpop.f32.mrf.mxu0
    %v575 = vadd.f32 %v504, %v574
    %576 = vdwg.mxu0
    %577 = vmatprep.subr.mxu0 %v275
    %578 = vmatpush1.msra.mxu0 %v274
    %579 = vmatprep.subr.mxu0 %v273
    %580 = vmatpush1.msra.mxu0 %v272
    %581 = vmatprep.subr.mxu0 %v271
    %582 = vmatpush1.msra.mxu0 %v270
    %583 = vmatprep.subr.mxu0 %v269
    %584 = vmatpush1.msra.mxu0 %v268
    %585 = vmatprep.subr.mxu0 %v267
    %586 = vmatpush1.msra.mxu0 %v266
    %587 = vmatprep.subr.mxu0 %v265
    %588 = vmatpush1.msra.mxu0 %v264
    %589 = vmatprep.subr.mxu0 %v263
    %590 = vmatpush1.msra.mxu0 %v262
    %591 = vmatprep.subr.mxu0 %v261
    %592 = vmatpush1.msra.mxu0 %v260
    %593 = vmatprep.subr.mxu0 %v259
    %594 = vmatpush1.msra.mxu0 %v258
    %595 = vmatprep.subr.mxu0 %v257
    %596 = vmatpush1.msra.mxu0 %v256
    %597 = vmatprep.subr.mxu0 %v255
    %598 = vmatpush1.msra.mxu0 %v254
    %599 = vmatprep.subr.mxu0 %v253
    %600 = vmatpush1.msra.mxu0 %v252
    %601 = vmatprep.subr.mxu0 %v251
    %602 = vmatpush1.msra.mxu0 %v250
    %603 = vmatprep.subr.mxu0 %v249
    %604 = vmatpush1.msra.mxu0 %v248
    %605 = vmatprep.subr.mxu0 %v247
    %606 = vmatpush1.msra.mxu0 %v246
    %607 = vmatprep.subr.mxu0 %v245
    %608 = vmatpush1.msra.mxu0 %v244
    %609 = vmatprep.subr.mxu0 %v307
    %610 = vmatpush2.msra.mxu0 %v306
    %611 = vmatprep.subr.mxu0 %v305
    %612 = vmatpush2.msra.mxu0 %v304
    %613 = vmatprep.subr.mxu0 %v303
    %614 = vmatpush2.msra.mxu0 %v302
    %615 = vmatprep.subr.mxu0 %v301
    %616 = vmatpush2.msra.mxu0 %v300
    %617 = vmatprep.subr.mxu0 %v299
    %618 = vmatpush2.msra.mxu0 %v298
    %619 = vmatprep.subr.mxu0 %v297
    %620 = vmatpush2.msra.mxu0 %v296
    %621 = vmatprep.subr.mxu0 %v295
    %622 = vmatpush2.msra.mxu0 %v294
    %623 = vmatprep.subr.mxu0 %v293
    %624 = vmatpush2.msra.mxu0 %v292
    %625 = vmatprep.subr.mxu0 %v291
    %626 = vmatpush2.msra.mxu0 %v290
    %627 = vmatprep.subr.mxu0 %v289
    %628 = vmatpush2.msra.mxu0 %v288
    %629 = vmatprep.subr.mxu0 %v287
    %630 = vmatpush2.msra.mxu0 %v286
    %631 = vmatprep.subr.mxu0 %v285
    %632 = vmatpush2.msra.mxu0 %v284
    %633 = vmatprep.subr.mxu0 %v283
    %634 = vmatpush2.msra.mxu0 %v282
    %635 = vmatprep.subr.mxu0 %v281
    %636 = vmatpush2.msra.mxu0 %v280
    %637 = vmatprep.subr.mxu0 %v279
    %638 = vmatpush2.msra.mxu0 %v278
    %639 = vmatprep.subr.mxu0 %v277
    %640 = vmatpush2.msra.mxu0 %v276
    %641 = vmatprep.mubr.f32.mxu0 %v355
    %642 = vmatmul.mubr.f32.gmra.mxu0 %v353
    %v643 = vpop.f32.mrf.mxu0
    %v644 = vadd.f32 %v573, %v643
    %v645 = vpop.f32.mrf.mxu0
    %v646 = vadd.f32 %v575, %v645
    %647 = vdwg.mxu0
    %v648 = vmax.f32 %v644, 0.0
    %v649 = vmax.f32 %v646, 0.0
    %v650 = vld [vmem:[#allocation2] sm:$0xff]
    %v651 = vld [vmem:[#allocation2 + $0x8] sm:$0xff]
    %v652 = vld [vmem:[#allocation2 + $0x10] sm:$0xff]
    %v653 = vld [vmem:[#allocation2 + $0x18] sm:$0xff]
    %v654 = vld [vmem:[#allocation2 + $0x20] sm:$0xff]
    %v655 = vld [vmem:[#allocation2 + $0x28] sm:$0xff]
    %v656 = vld [vmem:[#allocation2 + $0x30] sm:$0xff]
    %v657 = vld [vmem:[#allocation2 + $0x38] sm:$0xff]
    %v658 = vld [vmem:[#allocation2 + $0x40] sm:$0xff]
    %v659 = vld [vmem:[#allocation2 + $0x48] sm:$0xff]
    %v660 = vld [vmem:[#allocation2 + $0x50] sm:$0xff]
    %v661 = vld [vmem:[#allocation2 + $0x58] sm:$0xff]
    %v662 = vld [vmem:[#allocation2 + $0x60] sm:$0xff]
    %v663 = vld [vmem:[#allocation2 + $0x68] sm:$0xff]
    %v664 = vld [vmem:[#allocation2 + $0x70] sm:$0xff]
    %v665 = vld [vmem:[#allocation2 + $0x78] sm:$0xff]
    %v666 = vld [vmem:[#allocation2 + $0x80] sm:$0xff]
    %v667 = vld [vmem:[#allocation2 + $0x88] sm:$0xff]
    %v668 = vld [vmem:[#allocation2 + $0x90] sm:$0xff]
    %v669 = vld [vmem:[#allocation2 + $0x98] sm:$0xff]
    %v670 = vld [vmem:[#allocation2 + $0xa0] sm:$0xff]
    %v671 = vld [vmem:[#allocation2 + $0xa8] sm:$0xff]
    %v672 = vld [vmem:[#allocation2 + $0xb0] sm:$0xff]
    %v673 = vld [vmem:[#allocation2 + $0xb8] sm:$0xff]
    %v674 = vld [vmem:[#allocation2 + $0xc0] sm:$0xff]
    %v675 = vld [vmem:[#allocation2 + $0xc8] sm:$0xff]
    %v676 = vld [vmem:[#allocation2 + $0xd0] sm:$0xff]
    %v677 = vld [vmem:[#allocation2 + $0xd8] sm:$0xff]
    %v678 = vld [vmem:[#allocation2 + $0xe0] sm:$0xff]
    %v679 = vld [vmem:[#allocation2 + $0xe8] sm:$0xff]
    %v680 = vld [vmem:[#allocation2 + $0xf0] sm:$0xff]
    %v681 = vld [vmem:[#allocation2 + $0xf8] sm:$0xff]
    %v682 = vld [vmem:[#allocation2 + $0x100] sm:$0xff]
    %v683 = vld [vmem:[#allocation2 + $0x108] sm:$0xff]
    %v684 = vld [vmem:[#allocation2 + $0x110] sm:$0xff]
    %v685 = vld [vmem:[#allocation2 + $0x118] sm:$0xff]
    %v686 = vld [vmem:[#allocation2 + $0x120] sm:$0xff]
    %v687 = vld [vmem:[#allocation2 + $0x128] sm:$0xff]
    %v688 = vld [vmem:[#allocation2 + $0x130] sm:$0xff]
    %v689 = vld [vmem:[#allocation2 + $0x138] sm:$0xff]
    %v690 = vld [vmem:[#allocation2 + $0x140] sm:$0xff]
    %v691 = vld [vmem:[#allocation2 + $0x148] sm:$0xff]
    %v692 = vld [vmem:[#allocation2 + $0x150] sm:$0xff]
    %v693 = vld [vmem:[#allocation2 + $0x158] sm:$0xff]
    %v694 = vld [vmem:[#allocation2 + $0x160] sm:$0xff]
    %v695 = vld [vmem:[#allocation2 + $0x168] sm:$0xff]
    %v696 = vld [vmem:[#allocation2 + $0x170] sm:$0xff]
    %v697 = vld [vmem:[#allocation2 + $0x178] sm:$0xff]
    %v698 = vld [vmem:[#allocation2 + $0x180] sm:$0xff]
    %v699 = vld [vmem:[#allocation2 + $0x188] sm:$0xff]
    %v700 = vld [vmem:[#allocation2 + $0x190] sm:$0xff]
    %v701 = vld [vmem:[#allocation2 + $0x198] sm:$0xff]
    %v702 = vld [vmem:[#allocation2 + $0x1a0] sm:$0xff]
    %v703 = vld [vmem:[#allocation2 + $0x1a8] sm:$0xff]
    %v704 = vld [vmem:[#allocation2 + $0x1b0] sm:$0xff]
    %v705 = vld [vmem:[#allocation2 + $0x1b8] sm:$0xff]
    %v706 = vld [vmem:[#allocation2 + $0x1c0] sm:$0xff]
    %v707 = vld [vmem:[#allocation2 + $0x1c8] sm:$0xff]
    %v708 = vld [vmem:[#allocation2 + $0x1d0] sm:$0xff]
    %v709 = vld [vmem:[#allocation2 + $0x1d8] sm:$0xff]
    %v710 = vld [vmem:[#allocation2 + $0x1e0] sm:$0xff]
    %v711 = vld [vmem:[#allocation2 + $0x1e8] sm:$0xff]
    %v712 = vld [vmem:[#allocation2 + $0x1f0] sm:$0xff]
    %v713 = vld [vmem:[#allocation2 + $0x1f8] sm:$0xff]
    %v714 = vld [vmem:[%s4] sm:$0x3]
    %v716 = vlaneseq
    %v717 = vshrl.u32 %v716, 7
    %v718 = vsub.s32 0, %v717
    %v719 = vrot.slane %v714, %v718
    %v720 = vlaneseq
    %v721 = vshrl.u32 %v720, 7
    %v722 = vsub.s32 1, %v721
    %v723 = vrot.slane %v714, %v722
    %726 = vmatprep.subr.mxu0 %v681
    %727 = vmatpush1.msra.mxu0 %v680
    %728 = vmatprep.subr.mxu0 %v679
    %729 = vmatpush1.msra.mxu0 %v678
    %730 = vmatprep.subr.mxu0 %v677
    %731 = vmatpush1.msra.mxu0 %v676
    %732 = vmatprep.subr.mxu0 %v675
    %733 = vmatpush1.msra.mxu0 %v674
    %734 = vmatprep.subr.mxu0 %v673
    %735 = vmatpush1.msra.mxu0 %v672
    %736 = vmatprep.subr.mxu0 %v671
    %737 = vmatpush1.msra.mxu0 %v670
    %738 = vmatprep.subr.mxu0 %v669
    %739 = vmatpush1.msra.mxu0 %v668
    %740 = vmatprep.subr.mxu0 %v667
    %741 = vmatpush1.msra.mxu0 %v666
    %742 = vmatprep.subr.mxu0 %v665
    %743 = vmatpush1.msra.mxu0 %v664
    %744 = vmatprep.subr.mxu0 %v663
    %745 = vmatpush1.msra.mxu0 %v662
    %746 = vmatprep.subr.mxu0 %v661
    %747 = vmatpush1.msra.mxu0 %v660
    %748 = vmatprep.subr.mxu0 %v659
    %749 = vmatpush1.msra.mxu0 %v658
    %750 = vmatprep.subr.mxu0 %v657
    %751 = vmatpush1.msra.mxu0 %v656
    %752 = vmatprep.subr.mxu0 %v655
    %753 = vmatpush1.msra.mxu0 %v654
    %754 = vmatprep.subr.mxu0 %v653
    %755 = vmatpush1.msra.mxu0 %v652
    %756 = vmatprep.subr.mxu0 %v651
    %757 = vmatpush1.msra.mxu0 %v650
    %758 = vmatprep.subr.mxu0 %v713
    %759 = vmatpush2.msra.mxu0 %v712
    %760 = vmatprep.subr.mxu0 %v711
    %761 = vmatpush2.msra.mxu0 %v710
    %762 = vmatprep.subr.mxu0 %v709
    %763 = vmatpush2.msra.mxu0 %v708
    %764 = vmatprep.subr.mxu0 %v707
    %765 = vmatpush2.msra.mxu0 %v706
    %766 = vmatprep.subr.mxu0 %v705
    %767 = vmatpush2.msra.mxu0 %v704
    %768 = vmatprep.subr.mxu0 %v703
    %769 = vmatpush2.msra.mxu0 %v702
    %770 = vmatprep.subr.mxu0 %v701
    %771 = vmatpush2.msra.mxu0 %v700
    %772 = vmatprep.subr.mxu0 %v699
    %773 = vmatpush2.msra.mxu0 %v698
    %774 = vmatprep.subr.mxu0 %v697
    %775 = vmatpush2.msra.mxu0 %v696
    %776 = vmatprep.subr.mxu0 %v695
    %777 = vmatpush2.msra.mxu0 %v694
    %778 = vmatprep.subr.mxu0 %v693
    %779 = vmatpush2.msra.mxu0 %v692
    %780 = vmatprep.subr.mxu0 %v691
    %781 = vmatpush2.msra.mxu0 %v690
    %782 = vmatprep.subr.mxu0 %v689
    %783 = vmatpush2.msra.mxu0 %v688
    %784 = vmatprep.subr.mxu0 %v687
    %785 = vmatpush2.msra.mxu0 %v686
    %786 = vmatprep.subr.mxu0 %v685
    %787 = vmatpush2.msra.mxu0 %v684
    %788 = vmatprep.subr.mxu0 %v683
    %789 = vmatpush2.msra.mxu0 %v682
    %790 = vmatprep.mubr.f32.mxu0 %v649
    %791 = vmatmul.mubr.f32.gmra.mxu0 %v648
    %v792 = vpop.f32.mrf.mxu0
    %v793 = vadd.f32 %v719, %v792
    %v794 = vpop.f32.mrf.mxu0
    %v795 = vadd.f32 %v723, %v794
    %796 = vdwg.mxu0
    %v797 = vmax.f32 %v793, 0.0
    %v798 = vmax.f32 %v795, 0.0
    %v799 = vld [vmem:[%s5] sm:$0xff]
    %v800 = vld [vmem:[%s5 + $0x8] sm:$0xff]
    %v801 = vld [vmem:[%s5 + $0x10] sm:$0xff]
    %v802 = vld [vmem:[%s5 + $0x18] sm:$0xff]
    %v803 = vld [vmem:[%s5 + $0x20] sm:$0xff]
    %v804 = vld [vmem:[%s5 + $0x28] sm:$0xff]
    %v805 = vld [vmem:[%s5 + $0x30] sm:$0xff]
    %v806 = vld [vmem:[%s5 + $0x38] sm:$0xff]
    %v807 = vld [vmem:[%s5 + $0x40] sm:$0xff]
    %v808 = vld [vmem:[%s5 + $0x48] sm:$0xff]
    %v809 = vld [vmem:[%s5 + $0x50] sm:$0xff]
    %v810 = vld [vmem:[%s5 + $0x58] sm:$0xff]
    %v811 = vld [vmem:[%s5 + $0x60] sm:$0xff]
    %v812 = vld [vmem:[%s5 + $0x68] sm:$0xff]
    %v813 = vld [vmem:[%s5 + $0x70] sm:$0xff]
    %v814 = vld [vmem:[%s5 + $0x78] sm:$0xff]
    %v815 = vld [vmem:[%s5 + $0x80] sm:$0xff]
    %v816 = vld [vmem:[%s5 + $0x88] sm:$0xff]
    %v817 = vld [vmem:[%s5 + $0x90] sm:$0xff]
    %v818 = vld [vmem:[%s5 + $0x98] sm:$0xff]
    %v819 = vld [vmem:[%s5 + $0xa0] sm:$0xff]
    %v820 = vld [vmem:[%s5 + $0xa8] sm:$0xff]
    %v821 = vld [vmem:[%s5 + $0xb0] sm:$0xff]
    %v822 = vld [vmem:[%s5 + $0xb8] sm:$0xff]
    %v823 = vld [vmem:[%s5 + $0xc0] sm:$0xff]
    %v824 = vld [vmem:[%s5 + $0xc8] sm:$0xff]
    %v825 = vld [vmem:[%s5 + $0xd0] sm:$0xff]
    %v826 = vld [vmem:[%s5 + $0xd8] sm:$0xff]
    %v827 = vld [vmem:[%s5 + $0xe0] sm:$0xff]
    %v828 = vld [vmem:[%s5 + $0xe8] sm:$0xff]
    %v829 = vld [vmem:[%s5 + $0xf0] sm:$0xff]
    %v830 = vld [vmem:[%s5 + $0xf8] sm:$0xff]
    %v831 = vld [vmem:[%s6] sm:$0x1]
    %v833 = vlaneseq
    %v834 = vshrl.u32 %v833, 7
    %v835 = vsub.s32 0, %v834
    %v836 = vrot.slane %v831, %v835
    %838 = vmatprep.subr.mxu0 0.0
    %839 = vmatpush1.msra.mxu0 %v814
    %840 = vmatprep.subr.mxu0 0.0
    %841 = vmatpush1.msra.mxu0 %v813
    %842 = vmatprep.subr.mxu0 0.0
    %843 = vmatpush1.msra.mxu0 %v812
    %844 = vmatprep.subr.mxu0 0.0
    %845 = vmatpush1.msra.mxu0 %v811
    %846 = vmatprep.subr.mxu0 0.0
    %847 = vmatpush1.msra.mxu0 %v810
    %848 = vmatprep.subr.mxu0 0.0
    %849 = vmatpush1.msra.mxu0 %v809
    %850 = vmatprep.subr.mxu0 0.0
    %851 = vmatpush1.msra.mxu0 %v808
    %852 = vmatprep.subr.mxu0 0.0
    %853 = vmatpush1.msra.mxu0 %v807
    %854 = vmatprep.subr.mxu0 0.0
    %855 = vmatpush1.msra.mxu0 %v806
    %856 = vmatprep.subr.mxu0 0.0
    %857 = vmatpush1.msra.mxu0 %v805
    %858 = vmatprep.subr.mxu0 0.0
    %859 = vmatpush1.msra.mxu0 %v804
    %860 = vmatprep.subr.mxu0 0.0
    %861 = vmatpush1.msra.mxu0 %v803
    %862 = vmatprep.subr.mxu0 0.0
    %863 = vmatpush1.msra.mxu0 %v802
    %864 = vmatprep.subr.mxu0 0.0
    %865 = vmatpush1.msra.mxu0 %v801
    %866 = vmatprep.subr.mxu0 0.0
    %867 = vmatpush1.msra.mxu0 %v800
    %868 = vmatprep.subr.mxu0 0.0
    %869 = vmatpush1.msra.mxu0 %v799
    %870 = vmatprep.subr.mxu0 0.0
    %871 = vmatpush2.msra.mxu0 %v830
    %872 = vmatprep.subr.mxu0 0.0
    %873 = vmatpush2.msra.mxu0 %v829
    %874 = vmatprep.subr.mxu0 0.0
    %875 = vmatpush2.msra.mxu0 %v828
    %876 = vmatprep.subr.mxu0 0.0
    %877 = vmatpush2.msra.mxu0 %v827
    %878 = vmatprep.subr.mxu0 0.0
    %879 = vmatpush2.msra.mxu0 %v826
    %880 = vmatprep.subr.mxu0 0.0
    %881 = vmatpush2.msra.mxu0 %v825
    %882 = vmatprep.subr.mxu0 0.0
    %883 = vmatpush2.msra.mxu0 %v824
    %884 = vmatprep.subr.mxu0 0.0
    %885 = vmatpush2.msra.mxu0 %v823
    %886 = vmatprep.subr.mxu0 0.0
    %887 = vmatpush2.msra.mxu0 %v822
    %888 = vmatprep.subr.mxu0 0.0
    %889 = vmatpush2.msra.mxu0 %v821
    %890 = vmatprep.subr.mxu0 0.0
    %891 = vmatpush2.msra.mxu0 %v820
    %892 = vmatprep.subr.mxu0 0.0
    %893 = vmatpush2.msra.mxu0 %v819
    %894 = vmatprep.subr.mxu0 0.0
    %895 = vmatpush2.msra.mxu0 %v818
    %896 = vmatprep.subr.mxu0 0.0
    %897 = vmatpush2.msra.mxu0 %v817
    %898 = vmatprep.subr.mxu0 0.0
    %899 = vmatpush2.msra.mxu0 %v816
    %900 = vmatprep.subr.mxu0 0.0
    %901 = vmatpush2.msra.mxu0 %v815
    %902 = vmatprep.mubr.f32.mxu0 %v798
    %903 = vmatmul.mubr.f32.gmra.mxu0 %v797
    %v904 = vpop.f32.mrf.mxu0
    %v905 = vadd.f32 %v836, %v904
    %v906 = vpop.f32.mrf.mxu0
    %907 = vdwg.mxu0
    %vm908 = vcmask 58368
    %909 = vst.msk [vmem:[#allocation5] sm:$0x3] %vm908, %v905
    %v910 = vld [vmem:[%s7] sm:$0xff]
    %v911 = vld [vmem:[%s7 + $0x8] sm:$0xff]
    %v912 = vld [vmem:[%s7 + $0x10] sm:$0xff]
    %v913 = vld [vmem:[%s7 + $0x18] sm:$0xff]
    %v914 = vld [vmem:[%s7 + $0x20] sm:$0xff]
    %v915 = vld [vmem:[%s7 + $0x28] sm:$0xff]
    %v916 = vld [vmem:[%s7 + $0x30] sm:$0xff]
    %v917 = vld [vmem:[%s7 + $0x38] sm:$0xff]
    %v918 = vld [vmem:[%s7 + $0x40] sm:$0xff]
    %v919 = vld [vmem:[%s7 + $0x48] sm:$0xff]
    %v920 = vld [vmem:[%s7 + $0x50] sm:$0xff]
    %v921 = vld [vmem:[%s7 + $0x58] sm:$0xff]
    %v922 = vld [vmem:[%s7 + $0x60] sm:$0xff]
    %v923 = vld [vmem:[%s7 + $0x68] sm:$0xff]
    %v924 = vld [vmem:[%s7 + $0x70] sm:$0xff]
    %v925 = vld [vmem:[%s7 + $0x78] sm:$0xff]
    %v926 = vld [vmem:[%s7 + $0x80] sm:$0xff]
    %v927 = vld [vmem:[%s7 + $0x88] sm:$0xff]
    %v928 = vld [vmem:[%s7 + $0x90] sm:$0xff]
    %v929 = vld [vmem:[%s7 + $0x98] sm:$0xff]
    %v930 = vld [vmem:[%s7 + $0xa0] sm:$0xff]
    %v931 = vld [vmem:[%s7 + $0xa8] sm:$0xff]
    %v932 = vld [vmem:[%s7 + $0xb0] sm:$0xff]
    %v933 = vld [vmem:[%s7 + $0xb8] sm:$0xff]
    %v934 = vld [vmem:[%s7 + $0xc0] sm:$0xff]
    %v935 = vld [vmem:[%s7 + $0xc8] sm:$0xff]
    %v936 = vld [vmem:[%s7 + $0xd0] sm:$0xff]
    %v937 = vld [vmem:[%s7 + $0xd8] sm:$0xff]
    %v938 = vld [vmem:[%s7 + $0xe0] sm:$0xff]
    %v939 = vld [vmem:[%s7 + $0xe8] sm:$0xff]
    %v940 = vld [vmem:[%s7 + $0xf0] sm:$0xff]
    %v941 = vld [vmem:[%s7 + $0xf8] sm:$0xff]
    %v942 = vld [vmem:[%s8] sm:$0x1]
    %v944 = vlaneseq
    %v945 = vshrl.u32 %v944, 7
    %v946 = vsub.s32 0, %v945
    %v947 = vrot.slane %v942, %v946
    %949 = vmatprep.subr.mxu0 0.0
    %950 = vmatpush1.msra.mxu0 %v925
    %951 = vmatprep.subr.mxu0 0.0
    %952 = vmatpush1.msra.mxu0 %v924
    %953 = vmatprep.subr.mxu0 0.0
    %954 = vmatpush1.msra.mxu0 %v923
    %955 = vmatprep.subr.mxu0 0.0
    %956 = vmatpush1.msra.mxu0 %v922
    %957 = vmatprep.subr.mxu0 0.0
    %958 = vmatpush1.msra.mxu0 %v921
    %959 = vmatprep.subr.mxu0 0.0
    %960 = vmatpush1.msra.mxu0 %v920
    %961 = vmatprep.subr.mxu0 0.0
    %962 = vmatpush1.msra.mxu0 %v919
    %963 = vmatprep.subr.mxu0 0.0
    %964 = vmatpush1.msra.mxu0 %v918
    %965 = vmatprep.subr.mxu0 0.0
    %966 = vmatpush1.msra.mxu0 %v917
    %967 = vmatprep.subr.mxu0 0.0
    %968 = vmatpush1.msra.mxu0 %v916
    %969 = vmatprep.subr.mxu0 0.0
    %970 = vmatpush1.msra.mxu0 %v915
    %971 = vmatprep.subr.mxu0 0.0
    %972 = vmatpush1.msra.mxu0 %v914
    %973 = vmatprep.subr.mxu0 0.0
    %974 = vmatpush1.msra.mxu0 %v913
    %975 = vmatprep.subr.mxu0 0.0
    %976 = vmatpush1.msra.mxu0 %v912
    %977 = vmatprep.subr.mxu0 0.0
    %978 = vmatpush1.msra.mxu0 %v911
    %979 = vmatprep.subr.mxu0 0.0
    %980 = vmatpush1.msra.mxu0 %v910
    %981 = vmatprep.subr.mxu0 0.0
    %982 = vmatpush2.msra.mxu0 %v941
    %983 = vmatprep.subr.mxu0 0.0
    %984 = vmatpush2.msra.mxu0 %v940
    %985 = vmatprep.subr.mxu0 0.0
    %986 = vmatpush2.msra.mxu0 %v939
    %987 = vmatprep.subr.mxu0 0.0
    %988 = vmatpush2.msra.mxu0 %v938
    %989 = vmatprep.subr.mxu0 0.0
    %990 = vmatpush2.msra.mxu0 %v937
    %991 = vmatprep.subr.mxu0 0.0
    %992 = vmatpush2.msra.mxu0 %v936
    %993 = vmatprep.subr.mxu0 0.0
    %994 = vmatpush2.msra.mxu0 %v935
    %995 = vmatprep.subr.mxu0 0.0
    %996 = vmatpush2.msra.mxu0 %v934
    %997 = vmatprep.subr.mxu0 0.0
    %998 = vmatpush2.msra.mxu0 %v933
    %999 = vmatprep.subr.mxu0 0.0
    %1000 = vmatpush2.msra.mxu0 %v932
    %1001 = vmatprep.subr.mxu0 0.0
    %1002 = vmatpush2.msra.mxu0 %v931
    %1003 = vmatprep.subr.mxu0 0.0
    %1004 = vmatpush2.msra.mxu0 %v930
    %1005 = vmatprep.subr.mxu0 0.0
    %1006 = vmatpush2.msra.mxu0 %v929
    %1007 = vmatprep.subr.mxu0 0.0
    %1008 = vmatpush2.msra.mxu0 %v928
    %1009 = vmatprep.subr.mxu0 0.0
    %1010 = vmatpush2.msra.mxu0 %v927
    %1011 = vmatprep.subr.mxu0 0.0
    %1012 = vmatpush2.msra.mxu0 %v926
    %1013 = vmatprep.mubr.f32.mxu0 %v798
    %1014 = vmatmul.mubr.f32.gmra.mxu0 %v797
    %v1015 = vpop.f32.mrf.mxu0
    %v1016 = vadd.f32 %v947, %v1015
    %v1017 = vpop.f32.mrf.mxu0
    %1018 = vdwg.mxu0
    %v1019 = vmax.f32 %v1016, -20.0
    %v1020 = vmin.f32 %v1019, 2.0
    %1021 = vst.msk [vmem:[#allocation6] sm:$0x3] %vm908, %v1020
    // Predicated region
    $region42: #{point_gaussian_policy_forward.3} parent=1 // pred_check
      _
    $region43: #{point_gaussian_policy_forward.3} parent=1 // pred_check_branch
      %1023 = sbr.rel (0) target = $region45
    $region44: #{point_gaussian_policy_forward.3} parent=1 // pred_region
      %s1025 = ssub.s32 32, 32
      %1026 = vsyncadd [#allocation4], %s1025
      %s1028 = sshll.u32 [#allocation5], 4
      %s1029 = int_to_ptr.vmem [resolvable:$true] %s1028
      %1031 = dma.vmem_to_hbm [thread:$0]  %s1029, 32, %s9, [#allocation4]
    $region45: #{point_gaussian_policy_forward.3} parent=1 // pred_fallthru
      _
    // Predicated region
    $region46: #{point_gaussian_policy_forward.3} parent=1 // pred_check
      _
    $region47: #{point_gaussian_policy_forward.3} parent=1 // pred_check_branch
      %1033 = sbr.rel (0) target = $region49
    $region48: #{point_gaussian_policy_forward.3} parent=1 // pred_region
      %s1035 = ssub.s32 32, 32
      %1036 = vsyncadd [#allocation7], %s1035
      %s1038 = sshll.u32 [#allocation6], 4
      %s1039 = int_to_ptr.vmem [resolvable:$true] %s1038
      %1041 = dma.vmem_to_hbm [thread:$0]  %s1039, 32, %s10, [#allocation7]
    $region49: #{point_gaussian_policy_forward.3} parent=1 // pred_fallthru
      _
    // Predicated region
    $region50: #{point_gaussian_policy_forward.3} parent=1 // pred_check
      _
    $region51: #{point_gaussian_policy_forward.3} parent=1 // pred_check_branch
      %1043 = sbr.rel (0) target = $region53
    $region52: #{point_gaussian_policy_forward.3} parent=1 // pred_region
      %1044 = dma.done [#allocation4], 32
    $region53: #{point_gaussian_policy_forward.3} parent=1 // pred_fallthru
      _
    // Predicated region
    $region54: #{point_gaussian_policy_forward.3} parent=1 // pred_check
      _
    $region55: #{point_gaussian_policy_forward.3} parent=1 // pred_check_branch
      %1046 = sbr.rel (0) target = $region57
    $region56: #{point_gaussian_policy_forward.3} parent=1 // pred_region
      %1047 = dma.done [#allocation7], 32
    $region57: #{point_gaussian_policy_forward.3} parent=1 // pred_fallthru
      _
    %1048 = vsyncpa [#allocation3], 1
    %1049 = vsyncpa [#allocation4], 1
    %1050 = vsyncpa [#allocation7], 1

</llo_original>
